<compile_context>
chip_gen: v6e
topology: v6e:2x2x1
jax: 0.10.0
libtpu: 0.0.40
codegen_flags: <defaults>
</compile_context>

<pallas_src>
import jax
import jax.numpy as jnp
import numpy as np
from jax.experimental import pallas as pl
from jax.experimental.pallas import tpu as pltpu


def round_up(x, m):
    return ((x + m - 1) // m) * m


# ----------------------------------------------------------------------------
# Single fused kernel: grid=(2,)  [stream 0 = context LSTM, stream 1 = aspect
# LSTM + attention/dense head].  Recurrence runs as an unrolled in-kernel loop.
# ----------------------------------------------------------------------------
def ian_kernel(gx_ref, len_ref, whh_ref, b_ref, feat_ref,
               wk_a, bk_a, pw_a, pb_a,
               wk_c, bk_c, pw_c, pb_c,
               w2, b2, wd_a, wd_c, wd_f, bd,
               out_ref, ctx_sc):
    f32 = jnp.float32
    s = pl.program_id(0)
    Bp, Hp = ctx_sc.shape
    T = gx_ref.shape[1]

    whh = whh_ref[0]          # (Hp, 4*Hp)   recurrent weights for this stream
    bias = b_ref[0]           # (1, 4*Hp)
    lens = len_ref[0]         # (Bp, 1)      float lengths (epilogue + mask)

    def step(t, carry):
        h, c, acc = carry
        # pre-activations Gx[t] were computed outside as one big matmul;
        # only the recurrent matmul stays on the serial critical path.
        gates = (jnp.dot(h, whh, preferred_element_type=f32)
                 + gx_ref[0, t] + bias)                      # (Bp, 4*Hp)
        i_g = jax.nn.sigmoid(gates[:, 0 * Hp:1 * Hp])        # 128-lane aligned
        f_g = jax.nn.sigmoid(gates[:, 1 * Hp:2 * Hp])
        g_g = jnp.tanh(gates[:, 2 * Hp:3 * Hp])
        o_g = jax.nn.sigmoid(gates[:, 3 * Hp:4 * Hp])
        c_new = f_g * c + i_g * g_g
        h_new = o_g * jnp.tanh(c_new)
        m = (lens > t).astype(f32)                           # (Bp, 1)
        h = m * h_new + (1.0 - m) * h
        c = m * c_new + (1.0 - m) * c
        acc = acc + m * h_new        # packed LSTM pads with zeros -> masked sum
        return h, c, acc

    z = jnp.zeros((Bp, Hp), f32)
    _, _, acc = jax.lax.fori_loop(0, T, step, (z, z, z), unroll=True)
    mean = acc / lens                                        # sum / length

    @pl.when(s == 0)
    def _():
        ctx_sc[...] = mean           # stash the context mean for the head

    @pl.when(s == pl.num_programs(0) - 1)
    def _():
        asp_mean = mean
        ctx_mean = ctx_sc[...]
        # bi_linear attention with k_len = q_len = 1: softmax over a length-1
        # axis is exactly 1.0, so output == W_k(k) + b_k (score path elided,
        # numerically identical).
        kx_a = jnp.dot(asp_mean, wk_a[...], preferred_element_type=jnp.float32) + bk_a[...]
        aspect_final = jnp.dot(kx_a, pw_a[...], preferred_element_type=jnp.float32) + pb_a[...]
        kx_c = jnp.dot(ctx_mean, wk_c[...], preferred_element_type=jnp.float32) + bk_c[...]
        context_final = jnp.dot(kx_c, pw_c[...], preferred_element_type=jnp.float32) + pb_c[...]
        feat500 = jnp.dot(feat_ref[...], w2[...], preferred_element_type=jnp.float32) + b2[...]
        # cat([aspect_final, context_final, feat500]) @ Wd + bd  as a split matmul
        out_ref[...] = (jnp.dot(aspect_final, wd_a[...], preferred_element_type=jnp.float32)
                        + jnp.dot(context_final, wd_c[...], preferred_element_type=jnp.float32)
                        + jnp.dot(feat500, wd_f[...], preferred_element_type=jnp.float32)
                        + bd[...])


# ----------------------------------------------------------------------------
# Full forward (embedding gather, hoisted input projection and zero-padding in
# plain JAX; all recurrence + attention + dense math in the Pallas kernel).
# ----------------------------------------------------------------------------
@jax.jit
def ian_features1_forward(text_raw_indices, aspect_indices, features, params):
    emb = params["embedding"]
    H = params["ctx_w_hh"].shape[0]
    B, Tc = text_raw_indices.shape
    _, Ta = aspect_indices.shape
    F = features.shape[1]
    D2 = params["b2"].shape[1]
    P = params["bd"].shape[1]

    Hp = round_up(H, 128)
    Bp = round_up(max(B, 8), 8)
    Fp = round_up(F, 128)
    D2p = round_up(D2, 128)
    Pp = round_up(P, 128)
    Tm = max(Tc, Ta)
    G4 = 4 * Hp

    text_raw_len = jnp.sum(text_raw_indices != 0, axis=-1).astype(jnp.float32)
    aspect_len = jnp.sum(aspect_indices != 0, axis=-1).astype(jnp.float32)

    context = jnp.take(emb, text_raw_indices, axis=0)      # (B, Tc, E)
    aspect = jnp.take(emb, aspect_indices, axis=0)         # (B, Ta, E)

    # --- gate-aligned weight padding helpers (each gate gets Hp=128 lanes) ---
    def pad_gates(w):                                      # (in, 4H) -> (in, 4Hp)
        w4 = w.reshape(w.shape[0], 4, H)
        return jnp.pad(w4, ((0, 0), (0, 0), (0, Hp - H))).reshape(w.shape[0], G4)

    def pad_hh(w):                                         # (H, 4H) -> (Hp, 4Hp)
        w4 = w.reshape(H, 4, H)
        return jnp.pad(w4, ((0, Hp - H), (0, 0), (0, Hp - H))).reshape(Hp, G4)

    def pad2(x, r, c):
        return jnp.pad(x, ((0, r - x.shape[0]), (0, c - x.shape[1])))

    # --- hoisted input projection: one big lane-dense matmul per stream -----
    w_ih_c = pad_gates(params["ctx_w_ih"])
    w_ih_a = pad_gates(params["asp_w_ih"])
    gx_c = jnp.einsum("bte,eg->tbg", context, w_ih_c)      # (Tc, B, 4Hp)
    gx_a = jnp.einsum("bte,eg->tbg", aspect, w_ih_a)       # (Ta, B, 4Hp)
    gx_c = jnp.pad(gx_c, ((0, Tm - Tc), (0, Bp - B), (0, 0)))
    gx_a = jnp.pad(gx_a, ((0, Tm - Ta), (0, Bp - B), (0, 0)))
    gx = jnp.stack([gx_c, gx_a])                           # (2, Tm, Bp, 4Hp)

    w_hh = jnp.stack([pad_hh(params["ctx_w_hh"]), pad_hh(params["asp_w_hh"])])
    b_g = jnp.stack([pad_gates(params["ctx_b"]), pad_gates(params["asp_b"])])   # (2,1,4Hp)

    # padded batch rows get length 1 so the epilogue divide stays finite.
    lens = jnp.stack([
        jnp.pad(text_raw_len, (0, Bp - B), constant_values=1.0),
        jnp.pad(aspect_len, (0, Bp - B), constant_values=1.0)])[..., None]      # (2,Bp,1)

    feat_p = pad2(features.astype(jnp.float32), Bp, Fp)

    wk_a = pad2(params["wk_a"], Hp, Hp); bk_a = pad2(params["bk_a"], 1, Hp)
    pw_a = pad2(params["pw_a"], Hp, Hp); pb_a = pad2(params["pb_a"], 1, Hp)
    wk_c = pad2(params["wk_c"], Hp, Hp); bk_c = pad2(params["bk_c"], 1, Hp)
    pw_c = pad2(params["pw_c"], Hp, Hp); pb_c = pad2(params["pb_c"], 1, Hp)
    w2 = pad2(params["w2"], Fp, D2p);    b2 = pad2(params["b2"], 1, D2p)
    wd = params["wd"]
    wd_a = pad2(wd[0:H, :], Hp, Pp)
    wd_c = pad2(wd[H:2 * H, :], Hp, Pp)
    wd_f = pad2(wd[2 * H:, :], D2p, Pp)
    bd = pad2(params["bd"], 1, Pp)

    out_p = pl.pallas_call(
        ian_kernel,
        out_shape=jax.ShapeDtypeStruct((Bp, Pp), jnp.float32),
        grid_spec=pltpu.PrefetchScalarGridSpec(
            num_scalar_prefetch=0,
            grid=(2,),                                   # 0: context, 1: aspect+head
            in_specs=[
                pl.BlockSpec((1, Tm, Bp, G4), lambda s: (s, 0, 0, 0)),  # Gx
                pl.BlockSpec((1, Bp, 1), lambda s: (s, 0, 0)),          # lengths
                pl.BlockSpec((1, Hp, G4), lambda s: (s, 0, 0)),         # W_hh
                pl.BlockSpec((1, 1, G4), lambda s: (s, 0, 0)),          # bias
                pl.BlockSpec((Bp, Fp), lambda s: (0, 0)),               # features
                pl.BlockSpec((Hp, Hp), lambda s: (0, 0)),               # wk_a
                pl.BlockSpec((1, Hp), lambda s: (0, 0)),                # bk_a
                pl.BlockSpec((Hp, Hp), lambda s: (0, 0)),               # pw_a
                pl.BlockSpec((1, Hp), lambda s: (0, 0)),                # pb_a
                pl.BlockSpec((Hp, Hp), lambda s: (0, 0)),               # wk_c
                pl.BlockSpec((1, Hp), lambda s: (0, 0)),                # bk_c
                pl.BlockSpec((Hp, Hp), lambda s: (0, 0)),               # pw_c
                pl.BlockSpec((1, Hp), lambda s: (0, 0)),                # pb_c
                pl.BlockSpec((Fp, D2p), lambda s: (0, 0)),              # w2
                pl.BlockSpec((1, D2p), lambda s: (0, 0)),               # b2
                pl.BlockSpec((Hp, Pp), lambda s: (0, 0)),               # wd_a
                pl.BlockSpec((Hp, Pp), lambda s: (0, 0)),               # wd_c
                pl.BlockSpec((D2p, Pp), lambda s: (0, 0)),              # wd_f
                pl.BlockSpec((1, Pp), lambda s: (0, 0)),                # bd
            ],
            out_specs=pl.BlockSpec((Bp, Pp), lambda s: (0, 0)),
            scratch_shapes=[pltpu.VMEM((Bp, Hp), jnp.float32)],         # context mean
        ),
        compiler_params=pltpu.CompilerParams(
            dimension_semantics=("arbitrary",),          # stream 1 reads stream 0's scratch
            vmem_limit_bytes=64 * 1024 * 1024),
    )(gx, lens, w_hh, b_g, feat_p,
      wk_a, bk_a, pw_a, pb_a, wk_c, bk_c, pw_c, pb_c,
      w2, b2, wd_a, wd_c, wd_f, bd)

    return out_p[:B, :P]


# ----------------------------------------------------------------------------
# Pure-JAX reference (mirrors the PyTorch math, full attention path).
# ----------------------------------------------------------------------------
def _lstm_mean_ref(x_bte, lengths, w_ih, w_hh, b):
    B, T, _ = x_bte.shape
    H = w_hh.shape[0]
    h = jnp.zeros((B, H)); c = jnp.zeros((B, H)); acc = jnp.zeros((B, H))
    for t in range(T):
        gates = x_bte[:, t, :] @ w_ih + h @ w_hh + b
        i = jax.nn.sigmoid(gates[:, :H]); f = jax.nn.sigmoid(gates[:, H:2 * H])
        g = jnp.tanh(gates[:, 2 * H:3 * H]); o = jax.nn.sigmoid(gates[:, 3 * H:])
        c_new = f * c + i * g
        h_new = o * jnp.tanh(c_new)
        m = (t < lengths).astype(jnp.float32)[:, None]
        h = m * h_new + (1 - m) * h
        c = m * c_new + (1 - m) * c
        acc = acc + m * h_new
    return acc / lengths[:, None]


def _attention_ref(k, q, wk, bk, wq, bq, W, pw, pb):
    kx = k @ wk + bk
    qx = q @ wq + bq
    score = jnp.sum((qx @ W) * kx, axis=-1, keepdims=True)
    attn = jax.nn.softmax(score, axis=-1)
    return (attn * kx) @ pw + pb


def forward_ref(text_raw_indices, aspect_indices, features, p):
    emb = p["embedding"]
    tl = jnp.sum(text_raw_indices != 0, axis=-1).astype(jnp.float32)
    al = jnp.sum(aspect_indices != 0, axis=-1).astype(jnp.float32)
    ctx = jnp.take(emb, text_raw_indices, axis=0)
    asp = jnp.take(emb, aspect_indices, axis=0)
    ctx_m = _lstm_mean_ref(ctx, tl, p["ctx_w_ih"], p["ctx_w_hh"], p["ctx_b"])
    asp_m = _lstm_mean_ref(asp, al, p["asp_w_ih"], p["asp_w_hh"], p["asp_b"])
    a_fin = _attention_ref(asp_m, ctx_m, p["wk_a"], p["bk_a"], p["wq_a"],
                           p["bq_a"], p["W_a"], p["pw_a"], p["pb_a"])
    c_fin = _attention_ref(ctx_m, asp_m, p["wk_c"], p["bk_c"], p["wq_c"],
                           p["bq_c"], p["W_c"], p["pw_c"], p["pb_c"])
    f500 = features.astype(jnp.float32) @ p["w2"] + p["b2"]
    x = jnp.concatenate([a_fin, c_fin, f500], axis=-1)
    return x @ p["wd"] + p["bd"]


# ----------------------------------------------------------------------------
# Deterministic parameter / input construction and test.
# ----------------------------------------------------------------------------
def make_params(key, vocab, E, H, F, P):
    ks = list(jax.random.split(key, 32))
    def nrm(k, shape, s=0.1):
        return s * jax.random.normal(k, shape, dtype=jnp.float32)
    p = {}
    p["embedding"] = nrm(ks[0], (vocab, E), 0.5)
    # LSTM weights stored as (in, 4H) so the projection is x @ W (== x @ W_ih^T).
    p["ctx_w_ih"] = nrm(ks[1], (E, 4 * H)); p["ctx_w_hh"] = nrm(ks[2], (H, 4 * H))
    p["ctx_b"] = nrm(ks[3], (1, 4 * H), 0.05)
    p["asp_w_ih"] = nrm(ks[4], (E, 4 * H)); p["asp_w_hh"] = nrm(ks[5], (H, 4 * H))
    p["asp_b"] = nrm(ks[6], (1, 4 * H), 0.05)
    # attention_aspect
    p["wk_a"] = nrm(ks[7], (H, H)); p["bk_a"] = nrm(ks[8], (1, H), 0.05)
    p["wq_a"] = nrm(ks[9], (H, H)); p["bq_a"] = nrm(ks[10], (1, H), 0.05)
    p["W_a"] = nrm(ks[11], (H, H))
    p["pw_a"] = nrm(ks[12], (H, H)); p["pb_a"] = nrm(ks[13], (1, H), 0.05)
    # attention_context
    p["wk_c"] = nrm(ks[14], (H, H)); p["bk_c"] = nrm(ks[15], (1, H), 0.05)
    p["wq_c"] = nrm(ks[16], (H, H)); p["bq_c"] = nrm(ks[17], (1, H), 0.05)
    p["W_c"] = nrm(ks[18], (H, H))
    p["pw_c"] = nrm(ks[19], (H, H)); p["pb_c"] = nrm(ks[20], (1, H), 0.05)
    # dense2: features_length -> 500 ; dense: 2H + 500 -> P
    p["w2"] = nrm(ks[21], (F, 500)); p["b2"] = nrm(ks[22], (1, 500), 0.05)
    p["wd"] = nrm(ks[23], (2 * H + 500, P)); p["bd"] = nrm(ks[24], (1, P), 0.05)
    return p


if __name__ == "__main__":
    B, Tc, Ta = 4, 8, 4
    vocab, E, H = 20, 32, 32
    F, P = 40, 3

    key = jax.random.PRNGKey(0)
    k_par, k_ctx, k_asp, k_feat = jax.random.split(key, 4)
    params = make_params(k_par, vocab, E, H, F, P)

    # indices: non-zero tokens up to each sequence length, zero-padded tail
    ctx_len = np.array([8, 5, 3, 6])
    asp_len = np.array([2, 1, 3, 4])
    ctx_idx = np.array(jax.random.randint(k_ctx, (B, Tc), 1, vocab))
    asp_idx = np.array(jax.random.randint(k_asp, (B, Ta), 1, vocab))
    for b in range(B):
        ctx_idx[b, ctx_len[b]:] = 0
        asp_idx[b, asp_len[b]:] = 0
    text_raw_indices = jnp.asarray(ctx_idx, dtype=jnp.int32)
    aspect_indices = jnp.asarray(asp_idx, dtype=jnp.int32)
    features = jax.random.normal(k_feat, (B, F), dtype=jnp.float32)

    out = ian_features1_forward(text_raw_indices, aspect_indices, features, params)
    out = jax.block_until_ready(out)

    ref = jax.block_until_ready(
        forward_ref(text_raw_indices, aspect_indices, features, params))

    assert out.shape == (B, P), out.shape
    np.testing.assert_allclose(np.asarray(out), np.asarray(ref),
                               rtol=1e-4, atol=1e-4)
    print("KERNEL_OK")
</pallas_src>

<mosaic_0001>
module attributes {stable_mosaic.version = 11 : i64} {
  func.func @ian_kernel(%arg0: i32, %arg1: memref<1x8x8x512xf32, #tpu.memory_space<vmem>>, %arg2: memref<1x8x1xf32, #tpu.memory_space<vmem>>, %arg3: memref<1x128x512xf32, #tpu.memory_space<vmem>>, %arg4: memref<1x1x512xf32, #tpu.memory_space<vmem>>, %arg5: memref<8x128xf32, #tpu.memory_space<vmem>>, %arg6: memref<128x128xf32, #tpu.memory_space<vmem>>, %arg7: memref<1x128xf32, #tpu.memory_space<vmem>>, %arg8: memref<128x128xf32, #tpu.memory_space<vmem>>, %arg9: memref<1x128xf32, #tpu.memory_space<vmem>>, %arg10: memref<128x128xf32, #tpu.memory_space<vmem>>, %arg11: memref<1x128xf32, #tpu.memory_space<vmem>>, %arg12: memref<128x128xf32, #tpu.memory_space<vmem>>, %arg13: memref<1x128xf32, #tpu.memory_space<vmem>>, %arg14: memref<128x512xf32, #tpu.memory_space<vmem>>, %arg15: memref<1x512xf32, #tpu.memory_space<vmem>>, %arg16: memref<128x128xf32, #tpu.memory_space<vmem>>, %arg17: memref<128x128xf32, #tpu.memory_space<vmem>>, %arg18: memref<512x128xf32, #tpu.memory_space<vmem>>, %arg19: memref<1x128xf32, #tpu.memory_space<vmem>>, %arg20: memref<8x128xf32, #tpu.memory_space<vmem>>, %arg21: memref<8x128xf32, #tpu.memory_space<vmem>>) attributes {dimension_semantics = [#tpu.dimension_semantics<arbitrary>], iteration_bounds = array<i64: 2>, scalar_prefetch = 0 : i64, scratch_operands = 1 : i64, tpu.core_type = #tpu.core_type<tc>, window_params = [{transform_indices = @transform_0, window_bounds = array<i64: 1, 8, 8, 512>}, {transform_indices = @transform_1, window_bounds = array<i64: 1, 8, 1>}, {transform_indices = @transform_2, window_bounds = array<i64: 1, 128, 512>}, {transform_indices = @transform_3, window_bounds = array<i64: 1, 1, 512>}, {pipeline_mode = #tpu.pipeline_mode<synchronous>, transform_indices = @transform_4, window_bounds = array<i64: 8, 128>}, {pipeline_mode = #tpu.pipeline_mode<synchronous>, transform_indices = @transform_5, window_bounds = array<i64: 128, 128>}, {pipeline_mode = #tpu.pipeline_mode<synchronous>, transform_indices = @transform_6, window_bounds = array<i64: 1, 128>}, {pipeline_mode = #tpu.pipeline_mode<synchronous>, transform_indices = @transform_7, window_bounds = array<i64: 128, 128>}, {pipeline_mode = #tpu.pipeline_mode<synchronous>, transform_indices = @transform_8, window_bounds = array<i64: 1, 128>}, {pipeline_mode = #tpu.pipeline_mode<synchronous>, transform_indices = @transform_9, window_bounds = array<i64: 128, 128>}, {pipeline_mode = #tpu.pipeline_mode<synchronous>, transform_indices = @transform_10, window_bounds = array<i64: 1, 128>}, {pipeline_mode = #tpu.pipeline_mode<synchronous>, transform_indices = @transform_11, window_bounds = array<i64: 128, 128>}, {pipeline_mode = #tpu.pipeline_mode<synchronous>, transform_indices = @transform_12, window_bounds = array<i64: 1, 128>}, {pipeline_mode = #tpu.pipeline_mode<synchronous>, transform_indices = @transform_13, window_bounds = array<i64: 128, 512>}, {pipeline_mode = #tpu.pipeline_mode<synchronous>, transform_indices = @transform_14, window_bounds = array<i64: 1, 512>}, {pipeline_mode = #tpu.pipeline_mode<synchronous>, transform_indices = @transform_15, window_bounds = array<i64: 128, 128>}, {pipeline_mode = #tpu.pipeline_mode<synchronous>, transform_indices = @transform_16, window_bounds = array<i64: 128, 128>}, {pipeline_mode = #tpu.pipeline_mode<synchronous>, transform_indices = @transform_17, window_bounds = array<i64: 512, 128>}, {pipeline_mode = #tpu.pipeline_mode<synchronous>, transform_indices = @transform_18, window_bounds = array<i64: 1, 128>}, {pipeline_mode = #tpu.pipeline_mode<synchronous>, transform_indices = @transform_19, window_bounds = array<i64: 8, 128>}]} {
    %c0 = arith.constant 0 : index
    %c0_0 = arith.constant 0 : index
    %c0_1 = arith.constant 0 : index
    %0 = vector.load %arg3[%c0, %c0_0, %c0_1] : memref<1x128x512xf32, #tpu.memory_space<vmem>>, vector<1x128x512xf32>
    %1 = vector.shape_cast %0 : vector<1x128x512xf32> to vector<128x512xf32>
    %c0_2 = arith.constant 0 : index
    %c0_3 = arith.constant 0 : index
    %c0_4 = arith.constant 0 : index
    %2 = vector.load %arg4[%c0_2, %c0_3, %c0_4] : memref<1x1x512xf32, #tpu.memory_space<vmem>>, vector<1x1x512xf32>
    %3 = vector.shape_cast %2 : vector<1x1x512xf32> to vector<1x512xf32>
    %c0_5 = arith.constant 0 : index
    %c0_6 = arith.constant 0 : index
    %c0_7 = arith.constant 0 : index
    %4 = vector.load %arg2[%c0_5, %c0_6, %c0_7] : memref<1x8x1xf32, #tpu.memory_space<vmem>>, vector<1x8x1xf32>
    %5 = vector.shape_cast %4 : vector<1x8x1xf32> to vector<8x1xf32>
    %cst = arith.constant 0.000000e+00 : f32
    %6 = vector.broadcast %cst : f32 to vector<8x128xf32>
    %c0_i32 = arith.constant 0 : i32
    %cst_8 = arith.constant dense<0.000000e+00> : vector<8x512xf32>
    %7 = tpu.matmul %6, %1, %cst_8 {dimension_numbers = #tpu.dot_dimension_numbers<[1], [0], [0], [1], [0, 0, 1, 1], [], []>} : vector<8x128xf32>, vector<128x512xf32>, vector<8x512xf32> -> vector<8x512xf32>
    %c0_9 = arith.constant 0 : index
    %8 = arith.index_cast %c0_i32 : i32 to index
    %c0_10 = arith.constant 0 : index
    %c0_11 = arith.constant 0 : index
    %9 = vector.load %arg1[%c0_9, %8, %c0_10, %c0_11] : memref<1x8x8x512xf32, #tpu.memory_space<vmem>>, vector<1x1x8x512xf32>
    %10 = vector.shape_cast %9 : vector<1x1x8x512xf32> to vector<8x512xf32>
    %11 = arith.addf %7, %10 : vector<8x512xf32>
    %12 = vector.broadcast %3 : vector<1x512xf32> to vector<8x512xf32>
    %13 = arith.addf %11, %12 : vector<8x512xf32>
    %14 = vector.extract_strided_slice %13 {offsets = [0, 0], sizes = [8, 128], strides = [1, 1]} : vector<8x512xf32> to vector<8x128xf32>
    %15 = arith.negf %14 : vector<8x128xf32>
    %16 = math.exp %15 : vector<8x128xf32>
    %cst_12 = arith.constant 1.000000e+00 : f32
    %17 = vector.broadcast %cst_12 : f32 to vector<8x128xf32>
    %18 = arith.addf %17, %16 : vector<8x128xf32>
    %19 = arith.divf %17, %18 : vector<8x128xf32>
    %20 = vector.extract_strided_slice %13 {offsets = [0, 128], sizes = [8, 128], strides = [1, 1]} : vector<8x512xf32> to vector<8x128xf32>
    %21 = arith.negf %20 : vector<8x128xf32>
    %22 = math.exp %21 : vector<8x128xf32>
    %cst_13 = arith.constant 1.000000e+00 : f32
    %23 = vector.broadcast %cst_13 : f32 to vector<8x128xf32>
    %24 = arith.addf %23, %22 : vector<8x128xf32>
    %25 = arith.divf %23, %24 : vector<8x128xf32>
    %26 = vector.extract_strided_slice %13 {offsets = [0, 256], sizes = [8, 128], strides = [1, 1]} : vector<8x512xf32> to vector<8x128xf32>
    %27 = math.tanh %26 : vector<8x128xf32>
    %28 = vector.extract_strided_slice %13 {offsets = [0, 384], sizes = [8, 128], strides = [1, 1]} : vector<8x512xf32> to vector<8x128xf32>
    %29 = arith.negf %28 : vector<8x128xf32>
    %30 = math.exp %29 : vector<8x128xf32>
    %cst_14 = arith.constant 1.000000e+00 : f32
    %31 = vector.broadcast %cst_14 : f32 to vector<8x128xf32>
    %32 = arith.addf %31, %30 : vector<8x128xf32>
    %33 = arith.divf %31, %32 : vector<8x128xf32>
    %34 = arith.mulf %25, %6 : vector<8x128xf32>
    %35 = arith.mulf %19, %27 : vector<8x128xf32>
    %36 = arith.addf %34, %35 : vector<8x128xf32>
    %37 = math.tanh %36 : vector<8x128xf32>
    %38 = arith.mulf %33, %37 : vector<8x128xf32>
    %39 = arith.sitofp %c0_i32 : i32 to f32
    %40 = vector.broadcast %39 : f32 to vector<8x1xf32>
    %41 = arith.cmpf ogt, %5, %40 : vector<8x1xf32>
    %42 = arith.extui %41 : vector<8x1xi1> to vector<8x1xi32>
    %43 = arith.sitofp %42 : vector<8x1xi32> to vector<8x1xf32>
    %44 = vector.broadcast %43 : vector<8x1xf32> to vector<8x128xf32>
    %45 = arith.mulf %44, %38 : vector<8x128xf32>
    %cst_15 = arith.constant 1.000000e+00 : f32
    %46 = vector.broadcast %cst_15 : f32 to vector<8x1xf32>
    %47 = arith.subf %46, %43 : vector<8x1xf32>
    %48 = vector.broadcast %47 : vector<8x1xf32> to vector<8x128xf32>
    %49 = arith.mulf %48, %6 : vector<8x128xf32>
    %50 = arith.addf %45, %49 : vector<8x128xf32>
    %51 = vector.broadcast %43 : vector<8x1xf32> to vector<8x128xf32>
    %52 = arith.mulf %51, %36 : vector<8x128xf32>
    %cst_16 = arith.constant 1.000000e+00 : f32
    %53 = vector.broadcast %cst_16 : f32 to vector<8x1xf32>
    %54 = arith.subf %53, %43 : vector<8x1xf32>
    %55 = vector.broadcast %54 : vector<8x1xf32> to vector<8x128xf32>
    %56 = arith.mulf %55, %6 : vector<8x128xf32>
    %57 = arith.addf %52, %56 : vector<8x128xf32>
    %58 = vector.broadcast %43 : vector<8x1xf32> to vector<8x128xf32>
    %59 = arith.mulf %58, %38 : vector<8x128xf32>
    %60 = arith.addf %6, %59 : vector<8x128xf32>
    %c1_i32 = arith.constant 1 : i32
    %cst_17 = arith.constant dense<0.000000e+00> : vector<8x512xf32>
    %61 = tpu.matmul %50, %1, %cst_17 {dimension_numbers = #tpu.dot_dimension_numbers<[1], [0], [0], [1], [0, 0, 1, 1], [], []>} : vector<8x128xf32>, vector<128x512xf32>, vector<8x512xf32> -> vector<8x512xf32>
    %c0_18 = arith.constant 0 : index
    %62 = arith.index_cast %c1_i32 : i32 to index
    %c0_19 = arith.constant 0 : index
    %c0_20 = arith.constant 0 : index
    %63 = vector.load %arg1[%c0_18, %62, %c0_19, %c0_20] : memref<1x8x8x512xf32, #tpu.memory_space<vmem>>, vector<1x1x8x512xf32>
    %64 = vector.shape_cast %63 : vector<1x1x8x512xf32> to vector<8x512xf32>
    %65 = arith.addf %61, %64 : vector<8x512xf32>
    %66 = vector.broadcast %3 : vector<1x512xf32> to vector<8x512xf32>
    %67 = arith.addf %65, %66 : vector<8x512xf32>
    %68 = vector.extract_strided_slice %67 {offsets = [0, 0], sizes = [8, 128], strides = [1, 1]} : vector<8x512xf32> to vector<8x128xf32>
    %69 = arith.negf %68 : vector<8x128xf32>
    %70 = math.exp %69 : vector<8x128xf32>
    %cst_21 = arith.constant 1.000000e+00 : f32
    %71 = vector.broadcast %cst_21 : f32 to vector<8x128xf32>
    %72 = arith.addf %71, %70 : vector<8x128xf32>
    %73 = arith.divf %71, %72 : vector<8x128xf32>
    %74 = vector.extract_strided_slice %67 {offsets = [0, 128], sizes = [8, 128], strides = [1, 1]} : vector<8x512xf32> to vector<8x128xf32>
    %75 = arith.negf %74 : vector<8x128xf32>
    %76 = math.exp %75 : vector<8x128xf32>
    %cst_22 = arith.constant 1.000000e+00 : f32
    %77 = vector.broadcast %cst_22 : f32 to vector<8x128xf32>
    %78 = arith.addf %77, %76 : vector<8x128xf32>
    %79 = arith.divf %77, %78 : vector<8x128xf32>
    %80 = vector.extract_strided_slice %67 {offsets = [0, 256], sizes = [8, 128], strides = [1, 1]} : vector<8x512xf32> to vector<8x128xf32>
    %81 = math.tanh %80 : vector<8x128xf32>
    %82 = vector.extract_strided_slice %67 {offsets = [0, 384], sizes = [8, 128], strides = [1, 1]} : vector<8x512xf32> to vector<8x128xf32>
    %83 = arith.negf %82 : vector<8x128xf32>
    %84 = math.exp %83 : vector<8x128xf32>
    %cst_23 = arith.constant 1.000000e+00 : f32
    %85 = vector.broadcast %cst_23 : f32 to vector<8x128xf32>
    %86 = arith.addf %85, %84 : vector<8x128xf32>
    %87 = arith.divf %85, %86 : vector<8x128xf32>
    %88 = arith.mulf %79, %57 : vector<8x128xf32>
    %89 = arith.mulf %73, %81 : vector<8x128xf32>
    %90 = arith.addf %88, %89 : vector<8x128xf32>
    %91 = math.tanh %90 : vector<8x128xf32>
    %92 = arith.mulf %87, %91 : vector<8x128xf32>
    %93 = arith.sitofp %c1_i32 : i32 to f32
    %94 = vector.broadcast %93 : f32 to vector<8x1xf32>
    %95 = arith.cmpf ogt, %5, %94 : vector<8x1xf32>
    %96 = arith.extui %95 : vector<8x1xi1> to vector<8x1xi32>
    %97 = arith.sitofp %96 : vector<8x1xi32> to vector<8x1xf32>
    %98 = vector.broadcast %97 : vector<8x1xf32> to vector<8x128xf32>
    %99 = arith.mulf %98, %92 : vector<8x128xf32>
    %cst_24 = arith.constant 1.000000e+00 : f32
    %100 = vector.broadcast %cst_24 : f32 to vector<8x1xf32>
    %101 = arith.subf %100, %97 : vector<8x1xf32>
    %102 = vector.broadcast %101 : vector<8x1xf32> to vector<8x128xf32>
    %103 = arith.mulf %102, %50 : vector<8x128xf32>
    %104 = arith.addf %99, %103 : vector<8x128xf32>
    %105 = vector.broadcast %97 : vector<8x1xf32> to vector<8x128xf32>
    %106 = arith.mulf %105, %90 : vector<8x128xf32>
    %cst_25 = arith.constant 1.000000e+00 : f32
    %107 = vector.broadcast %cst_25 : f32 to vector<8x1xf32>
    %108 = arith.subf %107, %97 : vector<8x1xf32>
    %109 = vector.broadcast %108 : vector<8x1xf32> to vector<8x128xf32>
    %110 = arith.mulf %109, %57 : vector<8x128xf32>
    %111 = arith.addf %106, %110 : vector<8x128xf32>
    %112 = vector.broadcast %97 : vector<8x1xf32> to vector<8x128xf32>
    %113 = arith.mulf %112, %92 : vector<8x128xf32>
    %114 = arith.addf %60, %113 : vector<8x128xf32>
    %c2_i32 = arith.constant 2 : i32
    %cst_26 = arith.constant dense<0.000000e+00> : vector<8x512xf32>
    %115 = tpu.matmul %104, %1, %cst_26 {dimension_numbers = #tpu.dot_dimension_numbers<[1], [0], [0], [1], [0, 0, 1, 1], [], []>} : vector<8x128xf32>, vector<128x512xf32>, vector<8x512xf32> -> vector<8x512xf32>
    %c0_27 = arith.constant 0 : index
    %116 = arith.index_cast %c2_i32 : i32 to index
    %c0_28 = arith.constant 0 : index
    %c0_29 = arith.constant 0 : index
    %117 = vector.load %arg1[%c0_27, %116, %c0_28, %c0_29] : memref<1x8x8x512xf32, #tpu.memory_space<vmem>>, vector<1x1x8x512xf32>
    %118 = vector.shape_cast %117 : vector<1x1x8x512xf32> to vector<8x512xf32>
    %119 = arith.addf %115, %118 : vector<8x512xf32>
    %120 = vector.broadcast %3 : vector<1x512xf32> to vector<8x512xf32>
    %121 = arith.addf %119, %120 : vector<8x512xf32>
    %122 = vector.extract_strided_slice %121 {offsets = [0, 0], sizes = [8, 128], strides = [1, 1]} : vector<8x512xf32> to vector<8x128xf32>
    %123 = arith.negf %122 : vector<8x128xf32>
    %124 = math.exp %123 : vector<8x128xf32>
    %cst_30 = arith.constant 1.000000e+00 : f32
    %125 = vector.broadcast %cst_30 : f32 to vector<8x128xf32>
    %126 = arith.addf %125, %124 : vector<8x128xf32>
    %127 = arith.divf %125, %126 : vector<8x128xf32>
    %128 = vector.extract_strided_slice %121 {offsets = [0, 128], sizes = [8, 128], strides = [1, 1]} : vector<8x512xf32> to vector<8x128xf32>
    %129 = arith.negf %128 : vector<8x128xf32>
    %130 = math.exp %129 : vector<8x128xf32>
    %cst_31 = arith.constant 1.000000e+00 : f32
    %131 = vector.broadcast %cst_31 : f32 to vector<8x128xf32>
    %132 = arith.addf %131, %130 : vector<8x128xf32>
    %133 = arith.divf %131, %132 : vector<8x128xf32>
    %134 = vector.extract_strided_slice %121 {offsets = [0, 256], sizes = [8, 128], strides = [1, 1]} : vector<8x512xf32> to vector<8x128xf32>
    %135 = math.tanh %134 : vector<8x128xf32>
    %136 = vector.extract_strided_slice %121 {offsets = [0, 384], sizes = [8, 128], strides = [1, 1]} : vector<8x512xf32> to vector<8x128xf32>
    %137 = arith.negf %136 : vector<8x128xf32>
    %138 = math.exp %137 : vector<8x128xf32>
    %cst_32 = arith.constant 1.000000e+00 : f32
    %139 = vector.broadcast %cst_32 : f32 to vector<8x128xf32>
    %140 = arith.addf %139, %138 : vector<8x128xf32>
    %141 = arith.divf %139, %140 : vector<8x128xf32>
    %142 = arith.mulf %133, %111 : vector<8x128xf32>
    %143 = arith.mulf %127, %135 : vector<8x128xf32>
    %144 = arith.addf %142, %143 : vector<8x128xf32>
    %145 = math.tanh %144 : vector<8x128xf32>
    %146 = arith.mulf %141, %145 : vector<8x128xf32>
    %147 = arith.sitofp %c2_i32 : i32 to f32
    %148 = vector.broadcast %147 : f32 to vector<8x1xf32>
    %149 = arith.cmpf ogt, %5, %148 : vector<8x1xf32>
    %150 = arith.extui %149 : vector<8x1xi1> to vector<8x1xi32>
    %151 = arith.sitofp %150 : vector<8x1xi32> to vector<8x1xf32>
    %152 = vector.broadcast %151 : vector<8x1xf32> to vector<8x128xf32>
    %153 = arith.mulf %152, %146 : vector<8x128xf32>
    %cst_33 = arith.constant 1.000000e+00 : f32
    %154 = vector.broadcast %cst_33 : f32 to vector<8x1xf32>
    %155 = arith.subf %154, %151 : vector<8x1xf32>
    %156 = vector.broadcast %155 : vector<8x1xf32> to vector<8x128xf32>
    %157 = arith.mulf %156, %104 : vector<8x128xf32>
    %158 = arith.addf %153, %157 : vector<8x128xf32>
    %159 = vector.broadcast %151 : vector<8x1xf32> to vector<8x128xf32>
    %160 = arith.mulf %159, %144 : vector<8x128xf32>
    %cst_34 = arith.constant 1.000000e+00 : f32
    %161 = vector.broadcast %cst_34 : f32 to vector<8x1xf32>
    %162 = arith.subf %161, %151 : vector<8x1xf32>
    %163 = vector.broadcast %162 : vector<8x1xf32> to vector<8x128xf32>
    %164 = arith.mulf %163, %111 : vector<8x128xf32>
    %165 = arith.addf %160, %164 : vector<8x128xf32>
    %166 = vector.broadcast %151 : vector<8x1xf32> to vector<8x128xf32>
    %167 = arith.mulf %166, %146 : vector<8x128xf32>
    %168 = arith.addf %114, %167 : vector<8x128xf32>
    %c3_i32 = arith.constant 3 : i32
    %cst_35 = arith.constant dense<0.000000e+00> : vector<8x512xf32>
    %169 = tpu.matmul %158, %1, %cst_35 {dimension_numbers = #tpu.dot_dimension_numbers<[1], [0], [0], [1], [0, 0, 1, 1], [], []>} : vector<8x128xf32>, vector<128x512xf32>, vector<8x512xf32> -> vector<8x512xf32>
    %c0_36 = arith.constant 0 : index
    %170 = arith.index_cast %c3_i32 : i32 to index
    %c0_37 = arith.constant 0 : index
    %c0_38 = arith.constant 0 : index
    %171 = vector.load %arg1[%c0_36, %170, %c0_37, %c0_38] : memref<1x8x8x512xf32, #tpu.memory_space<vmem>>, vector<1x1x8x512xf32>
    %172 = vector.shape_cast %171 : vector<1x1x8x512xf32> to vector<8x512xf32>
    %173 = arith.addf %169, %172 : vector<8x512xf32>
    %174 = vector.broadcast %3 : vector<1x512xf32> to vector<8x512xf32>
    %175 = arith.addf %173, %174 : vector<8x512xf32>
    %176 = vector.extract_strided_slice %175 {offsets = [0, 0], sizes = [8, 128], strides = [1, 1]} : vector<8x512xf32> to vector<8x128xf32>
    %177 = arith.negf %176 : vector<8x128xf32>
    %178 = math.exp %177 : vector<8x128xf32>
    %cst_39 = arith.constant 1.000000e+00 : f32
    %179 = vector.broadcast %cst_39 : f32 to vector<8x128xf32>
    %180 = arith.addf %179, %178 : vector<8x128xf32>
    %181 = arith.divf %179, %180 : vector<8x128xf32>
    %182 = vector.extract_strided_slice %175 {offsets = [0, 128], sizes = [8, 128], strides = [1, 1]} : vector<8x512xf32> to vector<8x128xf32>
    %183 = arith.negf %182 : vector<8x128xf32>
    %184 = math.exp %183 : vector<8x128xf32>
    %cst_40 = arith.constant 1.000000e+00 : f32
    %185 = vector.broadcast %cst_40 : f32 to vector<8x128xf32>
    %186 = arith.addf %185, %184 : vector<8x128xf32>
    %187 = arith.divf %185, %186 : vector<8x128xf32>
    %188 = vector.extract_strided_slice %175 {offsets = [0, 256], sizes = [8, 128], strides = [1, 1]} : vector<8x512xf32> to vector<8x128xf32>
    %189 = math.tanh %188 : vector<8x128xf32>
    %190 = vector.extract_strided_slice %175 {offsets = [0, 384], sizes = [8, 128], strides = [1, 1]} : vector<8x512xf32> to vector<8x128xf32>
    %191 = arith.negf %190 : vector<8x128xf32>
    %192 = math.exp %191 : vector<8x128xf32>
    %cst_41 = arith.constant 1.000000e+00 : f32
    %193 = vector.broadcast %cst_41 : f32 to vector<8x128xf32>
    %194 = arith.addf %193, %192 : vector<8x128xf32>
    %195 = arith.divf %193, %194 : vector<8x128xf32>
    %196 = arith.mulf %187, %165 : vector<8x128xf32>
    %197 = arith.mulf %181, %189 : vector<8x128xf32>
    %198 = arith.addf %196, %197 : vector<8x128xf32>
    %199 = math.tanh %198 : vector<8x128xf32>
    %200 = arith.mulf %195, %199 : vector<8x128xf32>
    %201 = arith.sitofp %c3_i32 : i32 to f32
    %202 = vector.broadcast %201 : f32 to vector<8x1xf32>
    %203 = arith.cmpf ogt, %5, %202 : vector<8x1xf32>
    %204 = arith.extui %203 : vector<8x1xi1> to vector<8x1xi32>
    %205 = arith.sitofp %204 : vector<8x1xi32> to vector<8x1xf32>
    %206 = vector.broadcast %205 : vector<8x1xf32> to vector<8x128xf32>
    %207 = arith.mulf %206, %200 : vector<8x128xf32>
    %cst_42 = arith.constant 1.000000e+00 : f32
    %208 = vector.broadcast %cst_42 : f32 to vector<8x1xf32>
    %209 = arith.subf %208, %205 : vector<8x1xf32>
    %210 = vector.broadcast %209 : vector<8x1xf32> to vector<8x128xf32>
    %211 = arith.mulf %210, %158 : vector<8x128xf32>
    %212 = arith.addf %207, %211 : vector<8x128xf32>
    %213 = vector.broadcast %205 : vector<8x1xf32> to vector<8x128xf32>
    %214 = arith.mulf %213, %198 : vector<8x128xf32>
    %cst_43 = arith.constant 1.000000e+00 : f32
    %215 = vector.broadcast %cst_43 : f32 to vector<8x1xf32>
    %216 = arith.subf %215, %205 : vector<8x1xf32>
    %217 = vector.broadcast %216 : vector<8x1xf32> to vector<8x128xf32>
    %218 = arith.mulf %217, %165 : vector<8x128xf32>
    %219 = arith.addf %214, %218 : vector<8x128xf32>
    %220 = vector.broadcast %205 : vector<8x1xf32> to vector<8x128xf32>
    %221 = arith.mulf %220, %200 : vector<8x128xf32>
    %222 = arith.addf %168, %221 : vector<8x128xf32>
    %c4_i32 = arith.constant 4 : i32
    %cst_44 = arith.constant dense<0.000000e+00> : vector<8x512xf32>
    %223 = tpu.matmul %212, %1, %cst_44 {dimension_numbers = #tpu.dot_dimension_numbers<[1], [0], [0], [1], [0, 0, 1, 1], [], []>} : vector<8x128xf32>, vector<128x512xf32>, vector<8x512xf32> -> vector<8x512xf32>
    %c0_45 = arith.constant 0 : index
    %224 = arith.index_cast %c4_i32 : i32 to index
    %c0_46 = arith.constant 0 : index
    %c0_47 = arith.constant 0 : index
    %225 = vector.load %arg1[%c0_45, %224, %c0_46, %c0_47] : memref<1x8x8x512xf32, #tpu.memory_space<vmem>>, vector<1x1x8x512xf32>
    %226 = vector.shape_cast %225 : vector<1x1x8x512xf32> to vector<8x512xf32>
    %227 = arith.addf %223, %226 : vector<8x512xf32>
    %228 = vector.broadcast %3 : vector<1x512xf32> to vector<8x512xf32>
    %229 = arith.addf %227, %228 : vector<8x512xf32>
    %230 = vector.extract_strided_slice %229 {offsets = [0, 0], sizes = [8, 128], strides = [1, 1]} : vector<8x512xf32> to vector<8x128xf32>
    %231 = arith.negf %230 : vector<8x128xf32>
    %232 = math.exp %231 : vector<8x128xf32>
    %cst_48 = arith.constant 1.000000e+00 : f32
    %233 = vector.broadcast %cst_48 : f32 to vector<8x128xf32>
    %234 = arith.addf %233, %232 : vector<8x128xf32>
    %235 = arith.divf %233, %234 : vector<8x128xf32>
    %236 = vector.extract_strided_slice %229 {offsets = [0, 128], sizes = [8, 128], strides = [1, 1]} : vector<8x512xf32> to vector<8x128xf32>
    %237 = arith.negf %236 : vector<8x128xf32>
    %238 = math.exp %237 : vector<8x128xf32>
    %cst_49 = arith.constant 1.000000e+00 : f32
    %239 = vector.broadcast %cst_49 : f32 to vector<8x128xf32>
    %240 = arith.addf %239, %238 : vector<8x128xf32>
    %241 = arith.divf %239, %240 : vector<8x128xf32>
    %242 = vector.extract_strided_slice %229 {offsets = [0, 256], sizes = [8, 128], strides = [1, 1]} : vector<8x512xf32> to vector<8x128xf32>
    %243 = math.tanh %242 : vector<8x128xf32>
    %244 = vector.extract_strided_slice %229 {offsets = [0, 384], sizes = [8, 128], strides = [1, 1]} : vector<8x512xf32> to vector<8x128xf32>
    %245 = arith.negf %244 : vector<8x128xf32>
    %246 = math.exp %245 : vector<8x128xf32>
    %cst_50 = arith.constant 1.000000e+00 : f32
    %247 = vector.broadcast %cst_50 : f32 to vector<8x128xf32>
    %248 = arith.addf %247, %246 : vector<8x128xf32>
    %249 = arith.divf %247, %248 : vector<8x128xf32>
    %250 = arith.mulf %241, %219 : vector<8x128xf32>
    %251 = arith.mulf %235, %243 : vector<8x128xf32>
    %252 = arith.addf %250, %251 : vector<8x128xf32>
    %253 = math.tanh %252 : vector<8x128xf32>
    %254 = arith.mulf %249, %253 : vector<8x128xf32>
    %255 = arith.sitofp %c4_i32 : i32 to f32
    %256 = vector.broadcast %255 : f32 to vector<8x1xf32>
    %257 = arith.cmpf ogt, %5, %256 : vector<8x1xf32>
    %258 = arith.extui %257 : vector<8x1xi1> to vector<8x1xi32>
    %259 = arith.sitofp %258 : vector<8x1xi32> to vector<8x1xf32>
    %260 = vector.broadcast %259 : vector<8x1xf32> to vector<8x128xf32>
    %261 = arith.mulf %260, %254 : vector<8x128xf32>
    %cst_51 = arith.constant 1.000000e+00 : f32
    %262 = vector.broadcast %cst_51 : f32 to vector<8x1xf32>
    %263 = arith.subf %262, %259 : vector<8x1xf32>
    %264 = vector.broadcast %263 : vector<8x1xf32> to vector<8x128xf32>
    %265 = arith.mulf %264, %212 : vector<8x128xf32>
    %266 = arith.addf %261, %265 : vector<8x128xf32>
    %267 = vector.broadcast %259 : vector<8x1xf32> to vector<8x128xf32>
    %268 = arith.mulf %267, %252 : vector<8x128xf32>
    %cst_52 = arith.constant 1.000000e+00 : f32
    %269 = vector.broadcast %cst_52 : f32 to vector<8x1xf32>
    %270 = arith.subf %269, %259 : vector<8x1xf32>
    %271 = vector.broadcast %270 : vector<8x1xf32> to vector<8x128xf32>
    %272 = arith.mulf %271, %219 : vector<8x128xf32>
    %273 = arith.addf %268, %272 : vector<8x128xf32>
    %274 = vector.broadcast %259 : vector<8x1xf32> to vector<8x128xf32>
    %275 = arith.mulf %274, %254 : vector<8x128xf32>
    %276 = arith.addf %222, %275 : vector<8x128xf32>
    %c5_i32 = arith.constant 5 : i32
    %cst_53 = arith.constant dense<0.000000e+00> : vector<8x512xf32>
    %277 = tpu.matmul %266, %1, %cst_53 {dimension_numbers = #tpu.dot_dimension_numbers<[1], [0], [0], [1], [0, 0, 1, 1], [], []>} : vector<8x128xf32>, vector<128x512xf32>, vector<8x512xf32> -> vector<8x512xf32>
    %c0_54 = arith.constant 0 : index
    %278 = arith.index_cast %c5_i32 : i32 to index
    %c0_55 = arith.constant 0 : index
    %c0_56 = arith.constant 0 : index
    %279 = vector.load %arg1[%c0_54, %278, %c0_55, %c0_56] : memref<1x8x8x512xf32, #tpu.memory_space<vmem>>, vector<1x1x8x512xf32>
    %280 = vector.shape_cast %279 : vector<1x1x8x512xf32> to vector<8x512xf32>
    %281 = arith.addf %277, %280 : vector<8x512xf32>
    %282 = vector.broadcast %3 : vector<1x512xf32> to vector<8x512xf32>
    %283 = arith.addf %281, %282 : vector<8x512xf32>
    %284 = vector.extract_strided_slice %283 {offsets = [0, 0], sizes = [8, 128], strides = [1, 1]} : vector<8x512xf32> to vector<8x128xf32>
    %285 = arith.negf %284 : vector<8x128xf32>
    %286 = math.exp %285 : vector<8x128xf32>
    %cst_57 = arith.constant 1.000000e+00 : f32
    %287 = vector.broadcast %cst_57 : f32 to vector<8x128xf32>
    %288 = arith.addf %287, %286 : vector<8x128xf32>
    %289 = arith.divf %287, %288 : vector<8x128xf32>
    %290 = vector.extract_strided_slice %283 {offsets = [0, 128], sizes = [8, 128], strides = [1, 1]} : vector<8x512xf32> to vector<8x128xf32>
    %291 = arith.negf %290 : vector<8x128xf32>
    %292 = math.exp %291 : vector<8x128xf32>
    %cst_58 = arith.constant 1.000000e+00 : f32
    %293 = vector.broadcast %cst_58 : f32 to vector<8x128xf32>
    %294 = arith.addf %293, %292 : vector<8x128xf32>
    %295 = arith.divf %293, %294 : vector<8x128xf32>
    %296 = vector.extract_strided_slice %283 {offsets = [0, 256], sizes = [8, 128], strides = [1, 1]} : vector<8x512xf32> to vector<8x128xf32>
    %297 = math.tanh %296 : vector<8x128xf32>
    %298 = vector.extract_strided_slice %283 {offsets = [0, 384], sizes = [8, 128], strides = [1, 1]} : vector<8x512xf32> to vector<8x128xf32>
    %299 = arith.negf %298 : vector<8x128xf32>
    %300 = math.exp %299 : vector<8x128xf32>
    %cst_59 = arith.constant 1.000000e+00 : f32
    %301 = vector.broadcast %cst_59 : f32 to vector<8x128xf32>
    %302 = arith.addf %301, %300 : vector<8x128xf32>
    %303 = arith.divf %301, %302 : vector<8x128xf32>
    %304 = arith.mulf %295, %273 : vector<8x128xf32>
    %305 = arith.mulf %289, %297 : vector<8x128xf32>
    %306 = arith.addf %304, %305 : vector<8x128xf32>
    %307 = math.tanh %306 : vector<8x128xf32>
    %308 = arith.mulf %303, %307 : vector<8x128xf32>
    %309 = arith.sitofp %c5_i32 : i32 to f32
    %310 = vector.broadcast %309 : f32 to vector<8x1xf32>
    %311 = arith.cmpf ogt, %5, %310 : vector<8x1xf32>
    %312 = arith.extui %311 : vector<8x1xi1> to vector<8x1xi32>
    %313 = arith.sitofp %312 : vector<8x1xi32> to vector<8x1xf32>
    %314 = vector.broadcast %313 : vector<8x1xf32> to vector<8x128xf32>
    %315 = arith.mulf %314, %308 : vector<8x128xf32>
    %cst_60 = arith.constant 1.000000e+00 : f32
    %316 = vector.broadcast %cst_60 : f32 to vector<8x1xf32>
    %317 = arith.subf %316, %313 : vector<8x1xf32>
    %318 = vector.broadcast %317 : vector<8x1xf32> to vector<8x128xf32>
    %319 = arith.mulf %318, %266 : vector<8x128xf32>
    %320 = arith.addf %315, %319 : vector<8x128xf32>
    %321 = vector.broadcast %313 : vector<8x1xf32> to vector<8x128xf32>
    %322 = arith.mulf %321, %306 : vector<8x128xf32>
    %cst_61 = arith.constant 1.000000e+00 : f32
    %323 = vector.broadcast %cst_61 : f32 to vector<8x1xf32>
    %324 = arith.subf %323, %313 : vector<8x1xf32>
    %325 = vector.broadcast %324 : vector<8x1xf32> to vector<8x128xf32>
    %326 = arith.mulf %325, %273 : vector<8x128xf32>
    %327 = arith.addf %322, %326 : vector<8x128xf32>
    %328 = vector.broadcast %313 : vector<8x1xf32> to vector<8x128xf32>
    %329 = arith.mulf %328, %308 : vector<8x128xf32>
    %330 = arith.addf %276, %329 : vector<8x128xf32>
    %c6_i32 = arith.constant 6 : i32
    %cst_62 = arith.constant dense<0.000000e+00> : vector<8x512xf32>
    %331 = tpu.matmul %320, %1, %cst_62 {dimension_numbers = #tpu.dot_dimension_numbers<[1], [0], [0], [1], [0, 0, 1, 1], [], []>} : vector<8x128xf32>, vector<128x512xf32>, vector<8x512xf32> -> vector<8x512xf32>
    %c0_63 = arith.constant 0 : index
    %332 = arith.index_cast %c6_i32 : i32 to index
    %c0_64 = arith.constant 0 : index
    %c0_65 = arith.constant 0 : index
    %333 = vector.load %arg1[%c0_63, %332, %c0_64, %c0_65] : memref<1x8x8x512xf32, #tpu.memory_space<vmem>>, vector<1x1x8x512xf32>
    %334 = vector.shape_cast %333 : vector<1x1x8x512xf32> to vector<8x512xf32>
    %335 = arith.addf %331, %334 : vector<8x512xf32>
    %336 = vector.broadcast %3 : vector<1x512xf32> to vector<8x512xf32>
    %337 = arith.addf %335, %336 : vector<8x512xf32>
    %338 = vector.extract_strided_slice %337 {offsets = [0, 0], sizes = [8, 128], strides = [1, 1]} : vector<8x512xf32> to vector<8x128xf32>
    %339 = arith.negf %338 : vector<8x128xf32>
    %340 = math.exp %339 : vector<8x128xf32>
    %cst_66 = arith.constant 1.000000e+00 : f32
    %341 = vector.broadcast %cst_66 : f32 to vector<8x128xf32>
    %342 = arith.addf %341, %340 : vector<8x128xf32>
    %343 = arith.divf %341, %342 : vector<8x128xf32>
    %344 = vector.extract_strided_slice %337 {offsets = [0, 128], sizes = [8, 128], strides = [1, 1]} : vector<8x512xf32> to vector<8x128xf32>
    %345 = arith.negf %344 : vector<8x128xf32>
    %346 = math.exp %345 : vector<8x128xf32>
    %cst_67 = arith.constant 1.000000e+00 : f32
    %347 = vector.broadcast %cst_67 : f32 to vector<8x128xf32>
    %348 = arith.addf %347, %346 : vector<8x128xf32>
    %349 = arith.divf %347, %348 : vector<8x128xf32>
    %350 = vector.extract_strided_slice %337 {offsets = [0, 256], sizes = [8, 128], strides = [1, 1]} : vector<8x512xf32> to vector<8x128xf32>
    %351 = math.tanh %350 : vector<8x128xf32>
    %352 = vector.extract_strided_slice %337 {offsets = [0, 384], sizes = [8, 128], strides = [1, 1]} : vector<8x512xf32> to vector<8x128xf32>
    %353 = arith.negf %352 : vector<8x128xf32>
    %354 = math.exp %353 : vector<8x128xf32>
    %cst_68 = arith.constant 1.000000e+00 : f32
    %355 = vector.broadcast %cst_68 : f32 to vector<8x128xf32>
    %356 = arith.addf %355, %354 : vector<8x128xf32>
    %357 = arith.divf %355, %356 : vector<8x128xf32>
    %358 = arith.mulf %349, %327 : vector<8x128xf32>
    %359 = arith.mulf %343, %351 : vector<8x128xf32>
    %360 = arith.addf %358, %359 : vector<8x128xf32>
    %361 = math.tanh %360 : vector<8x128xf32>
    %362 = arith.mulf %357, %361 : vector<8x128xf32>
    %363 = arith.sitofp %c6_i32 : i32 to f32
    %364 = vector.broadcast %363 : f32 to vector<8x1xf32>
    %365 = arith.cmpf ogt, %5, %364 : vector<8x1xf32>
    %366 = arith.extui %365 : vector<8x1xi1> to vector<8x1xi32>
    %367 = arith.sitofp %366 : vector<8x1xi32> to vector<8x1xf32>
    %368 = vector.broadcast %367 : vector<8x1xf32> to vector<8x128xf32>
    %369 = arith.mulf %368, %362 : vector<8x128xf32>
    %cst_69 = arith.constant 1.000000e+00 : f32
    %370 = vector.broadcast %cst_69 : f32 to vector<8x1xf32>
    %371 = arith.subf %370, %367 : vector<8x1xf32>
    %372 = vector.broadcast %371 : vector<8x1xf32> to vector<8x128xf32>
    %373 = arith.mulf %372, %320 : vector<8x128xf32>
    %374 = arith.addf %369, %373 : vector<8x128xf32>
    %375 = vector.broadcast %367 : vector<8x1xf32> to vector<8x128xf32>
    %376 = arith.mulf %375, %360 : vector<8x128xf32>
    %cst_70 = arith.constant 1.000000e+00 : f32
    %377 = vector.broadcast %cst_70 : f32 to vector<8x1xf32>
    %378 = arith.subf %377, %367 : vector<8x1xf32>
    %379 = vector.broadcast %378 : vector<8x1xf32> to vector<8x128xf32>
    %380 = arith.mulf %379, %327 : vector<8x128xf32>
    %381 = arith.addf %376, %380 : vector<8x128xf32>
    %382 = vector.broadcast %367 : vector<8x1xf32> to vector<8x128xf32>
    %383 = arith.mulf %382, %362 : vector<8x128xf32>
    %384 = arith.addf %330, %383 : vector<8x128xf32>
    %c7_i32 = arith.constant 7 : i32
    %cst_71 = arith.constant dense<0.000000e+00> : vector<8x512xf32>
    %385 = tpu.matmul %374, %1, %cst_71 {dimension_numbers = #tpu.dot_dimension_numbers<[1], [0], [0], [1], [0, 0, 1, 1], [], []>} : vector<8x128xf32>, vector<128x512xf32>, vector<8x512xf32> -> vector<8x512xf32>
    %c0_72 = arith.constant 0 : index
    %386 = arith.index_cast %c7_i32 : i32 to index
    %c0_73 = arith.constant 0 : index
    %c0_74 = arith.constant 0 : index
    %387 = vector.load %arg1[%c0_72, %386, %c0_73, %c0_74] : memref<1x8x8x512xf32, #tpu.memory_space<vmem>>, vector<1x1x8x512xf32>
    %388 = vector.shape_cast %387 : vector<1x1x8x512xf32> to vector<8x512xf32>
    %389 = arith.addf %385, %388 : vector<8x512xf32>
    %390 = vector.broadcast %3 : vector<1x512xf32> to vector<8x512xf32>
    %391 = arith.addf %389, %390 : vector<8x512xf32>
    %392 = vector.extract_strided_slice %391 {offsets = [0, 0], sizes = [8, 128], strides = [1, 1]} : vector<8x512xf32> to vector<8x128xf32>
    %393 = arith.negf %392 : vector<8x128xf32>
    %394 = math.exp %393 : vector<8x128xf32>
    %cst_75 = arith.constant 1.000000e+00 : f32
    %395 = vector.broadcast %cst_75 : f32 to vector<8x128xf32>
    %396 = arith.addf %395, %394 : vector<8x128xf32>
    %397 = arith.divf %395, %396 : vector<8x128xf32>
    %398 = vector.extract_strided_slice %391 {offsets = [0, 128], sizes = [8, 128], strides = [1, 1]} : vector<8x512xf32> to vector<8x128xf32>
    %399 = arith.negf %398 : vector<8x128xf32>
    %400 = math.exp %399 : vector<8x128xf32>
    %cst_76 = arith.constant 1.000000e+00 : f32
    %401 = vector.broadcast %cst_76 : f32 to vector<8x128xf32>
    %402 = arith.addf %401, %400 : vector<8x128xf32>
    %403 = arith.divf %401, %402 : vector<8x128xf32>
    %404 = vector.extract_strided_slice %391 {offsets = [0, 256], sizes = [8, 128], strides = [1, 1]} : vector<8x512xf32> to vector<8x128xf32>
    %405 = math.tanh %404 : vector<8x128xf32>
    %406 = vector.extract_strided_slice %391 {offsets = [0, 384], sizes = [8, 128], strides = [1, 1]} : vector<8x512xf32> to vector<8x128xf32>
    %407 = arith.negf %406 : vector<8x128xf32>
    %408 = math.exp %407 : vector<8x128xf32>
    %cst_77 = arith.constant 1.000000e+00 : f32
    %409 = vector.broadcast %cst_77 : f32 to vector<8x128xf32>
    %410 = arith.addf %409, %408 : vector<8x128xf32>
    %411 = arith.divf %409, %410 : vector<8x128xf32>
    %412 = arith.mulf %403, %381 : vector<8x128xf32>
    %413 = arith.mulf %397, %405 : vector<8x128xf32>
    %414 = arith.addf %412, %413 : vector<8x128xf32>
    %415 = math.tanh %414 : vector<8x128xf32>
    %416 = arith.mulf %411, %415 : vector<8x128xf32>
    %417 = arith.sitofp %c7_i32 : i32 to f32
    %418 = vector.broadcast %417 : f32 to vector<8x1xf32>
    %419 = arith.cmpf ogt, %5, %418 : vector<8x1xf32>
    %420 = arith.extui %419 : vector<8x1xi1> to vector<8x1xi32>
    %421 = arith.sitofp %420 : vector<8x1xi32> to vector<8x1xf32>
    %422 = vector.broadcast %421 : vector<8x1xf32> to vector<8x128xf32>
    %423 = arith.mulf %422, %416 : vector<8x128xf32>
    %cst_78 = arith.constant 1.000000e+00 : f32
    %424 = vector.broadcast %cst_78 : f32 to vector<8x1xf32>
    %425 = arith.subf %424, %421 : vector<8x1xf32>
    %426 = vector.broadcast %425 : vector<8x1xf32> to vector<8x128xf32>
    %427 = arith.mulf %426, %374 : vector<8x128xf32>
    %428 = arith.addf %423, %427 : vector<8x128xf32>
    %429 = vector.broadcast %421 : vector<8x1xf32> to vector<8x128xf32>
    %430 = arith.mulf %429, %414 : vector<8x128xf32>
    %cst_79 = arith.constant 1.000000e+00 : f32
    %431 = vector.broadcast %cst_79 : f32 to vector<8x1xf32>
    %432 = arith.subf %431, %421 : vector<8x1xf32>
    %433 = vector.broadcast %432 : vector<8x1xf32> to vector<8x128xf32>
    %434 = arith.mulf %433, %381 : vector<8x128xf32>
    %435 = arith.addf %430, %434 : vector<8x128xf32>
    %436 = vector.broadcast %421 : vector<8x1xf32> to vector<8x128xf32>
    %437 = arith.mulf %436, %416 : vector<8x128xf32>
    %438 = arith.addf %384, %437 : vector<8x128xf32>
    %c8_i32 = arith.constant 8 : i32
    %439 = vector.broadcast %5 : vector<8x1xf32> to vector<8x128xf32>
    %440 = arith.divf %438, %439 : vector<8x128xf32>
    %c0_i32_80 = arith.constant 0 : i32
    %441 = arith.cmpi eq, %arg0, %c0_i32_80 : i32
    %442 = arith.extui %441 : i1 to i32
    %c0_i32_81 = arith.constant 0 : i32
    %443 = arith.cmpi ne, %442, %c0_i32_81 : i32
    scf.if %443 {
      %c0_84 = arith.constant 0 : index
      %c0_85 = arith.constant 0 : index
      %447 = vector.load %arg21[%c0_84, %c0_85] : memref<8x128xf32, #tpu.memory_space<vmem>>, vector<8x128xf32>
      tpu.vector_store %arg21[%c0_84, %c0_85], %440 {strides = array<i32>} : memref<8x128xf32, #tpu.memory_space<vmem>>, vector<8x128xf32>,
    } else {
    }
    %c1_i32_82 = arith.constant 1 : i32
    %444 = arith.cmpi eq, %arg0, %c1_i32_82 : i32
    %445 = arith.extui %444 : i1 to i32
    %c0_i32_83 = arith.constant 0 : i32
    %446 = arith.cmpi ne, %445, %c0_i32_83 : i32
    scf.if %446 {
      %c0_84 = arith.constant 0 : index
      %c0_85 = arith.constant 0 : index
      %447 = vector.load %arg21[%c0_84, %c0_85] : memref<8x128xf32, #tpu.memory_space<vmem>>, vector<8x128xf32>
      %c0_86 = arith.constant 0 : index
      %c0_87 = arith.constant 0 : index
      %448 = vector.load %arg6[%c0_86, %c0_87] : memref<128x128xf32, #tpu.memory_space<vmem>>, vector<128x128xf32>
      %cst_88 = arith.constant dense<0.000000e+00> : vector<8x128xf32>
      %449 = tpu.matmul %440, %448, %cst_88 {dimension_numbers = #tpu.dot_dimension_numbers<[1], [0], [0], [1], [0, 0, 1, 1], [], []>} : vector<8x128xf32>, vector<128x128xf32>, vector<8x128xf32> -> vector<8x128xf32>
      %c0_89 = arith.constant 0 : index
      %c0_90 = arith.constant 0 : index
      %450 = vector.load %arg7[%c0_89, %c0_90] : memref<1x128xf32, #tpu.memory_space<vmem>>, vector<1x128xf32>
      %451 = vector.broadcast %450 : vector<1x128xf32> to vector<8x128xf32>
      %452 = arith.addf %449, %451 : vector<8x128xf32>
      %c0_91 = arith.constant 0 : index
      %c0_92 = arith.constant 0 : index
      %453 = vector.load %arg8[%c0_91, %c0_92] : memref<128x128xf32, #tpu.memory_space<vmem>>, vector<128x128xf32>
      %cst_93 = arith.constant dense<0.000000e+00> : vector<8x128xf32>
      %454 = tpu.matmul %452, %453, %cst_93 {dimension_numbers = #tpu.dot_dimension_numbers<[1], [0], [0], [1], [0, 0, 1, 1], [], []>} : vector<8x128xf32>, vector<128x128xf32>, vector<8x128xf32> -> vector<8x128xf32>
      %c0_94 = arith.constant 0 : index
      %c0_95 = arith.constant 0 : index
      %455 = vector.load %arg9[%c0_94, %c0_95] : memref<1x128xf32, #tpu.memory_space<vmem>>, vector<1x128xf32>
      %456 = vector.broadcast %455 : vector<1x128xf32> to vector<8x128xf32>
      %457 = arith.addf %454, %456 : vector<8x128xf32>
      %c0_96 = arith.constant 0 : index
      %c0_97 = arith.constant 0 : index
      %458 = vector.load %arg10[%c0_96, %c0_97] : memref<128x128xf32, #tpu.memory_space<vmem>>, vector<128x128xf32>
      %cst_98 = arith.constant dense<0.000000e+00> : vector<8x128xf32>
      %459 = tpu.matmul %447, %458, %cst_98 {dimension_numbers = #tpu.dot_dimension_numbers<[1], [0], [0], [1], [0, 0, 1, 1], [], []>} : vector<8x128xf32>, vector<128x128xf32>, vector<8x128xf32> -> vector<8x128xf32>
      %c0_99 = arith.constant 0 : index
      %c0_100 = arith.constant 0 : index
      %460 = vector.load %arg11[%c0_99, %c0_100] : memref<1x128xf32, #tpu.memory_space<vmem>>, vector<1x128xf32>
      %461 = vector.broadcast %460 : vector<1x128xf32> to vector<8x128xf32>
      %462 = arith.addf %459, %461 : vector<8x128xf32>
      %c0_101 = arith.constant 0 : index
      %c0_102 = arith.constant 0 : index
      %463 = vector.load %arg12[%c0_101, %c0_102] : memref<128x128xf32, #tpu.memory_space<vmem>>, vector<128x128xf32>
      %cst_103 = arith.constant dense<0.000000e+00> : vector<8x128xf32>
      %464 = tpu.matmul %462, %463, %cst_103 {dimension_numbers = #tpu.dot_dimension_numbers<[1], [0], [0], [1], [0, 0, 1, 1], [], []>} : vector<8x128xf32>, vector<128x128xf32>, vector<8x128xf32> -> vector<8x128xf32>
      %c0_104 = arith.constant 0 : index
      %c0_105 = arith.constant 0 : index
      %465 = vector.load %arg13[%c0_104, %c0_105] : memref<1x128xf32, #tpu.memory_space<vmem>>, vector<1x128xf32>
      %466 = vector.broadcast %465 : vector<1x128xf32> to vector<8x128xf32>
      %467 = arith.addf %464, %466 : vector<8x128xf32>
      %c0_106 = arith.constant 0 : index
      %c0_107 = arith.constant 0 : index
      %468 = vector.load %arg5[%c0_106, %c0_107] : memref<8x128xf32, #tpu.memory_space<vmem>>, vector<8x128xf32>
      %c0_108 = arith.constant 0 : index
      %c0_109 = arith.constant 0 : index
      %469 = vector.load %arg14[%c0_108, %c0_109] : memref<128x512xf32, #tpu.memory_space<vmem>>, vector<128x512xf32>
      %cst_110 = arith.constant dense<0.000000e+00> : vector<8x512xf32>
      %470 = tpu.matmul %468, %469, %cst_110 {dimension_numbers = #tpu.dot_dimension_numbers<[1], [0], [0], [1], [0, 0, 1, 1], [], []>} : vector<8x128xf32>, vector<128x512xf32>, vector<8x512xf32> -> vector<8x512xf32>
      %c0_111 = arith.constant 0 : index
      %c0_112 = arith.constant 0 : index
      %471 = vector.load %arg15[%c0_111, %c0_112] : memref<1x512xf32, #tpu.memory_space<vmem>>, vector<1x512xf32>
      %472 = vector.broadcast %471 : vector<1x512xf32> to vector<8x512xf32>
      %473 = arith.addf %470, %472 : vector<8x512xf32>
      %c0_113 = arith.constant 0 : index
      %c0_114 = arith.constant 0 : index
      %474 = vector.load %arg16[%c0_113, %c0_114] : memref<128x128xf32, #tpu.memory_space<vmem>>, vector<128x128xf32>
      %cst_115 = arith.constant dense<0.000000e+00> : vector<8x128xf32>
      %475 = tpu.matmul %457, %474, %cst_115 {dimension_numbers = #tpu.dot_dimension_numbers<[1], [0], [0], [1], [0, 0, 1, 1], [], []>} : vector<8x128xf32>, vector<128x128xf32>, vector<8x128xf32> -> vector<8x128xf32>
      %c0_116 = arith.constant 0 : index
      %c0_117 = arith.constant 0 : index
      %476 = vector.load %arg17[%c0_116, %c0_117] : memref<128x128xf32, #tpu.memory_space<vmem>>, vector<128x128xf32>
      %cst_118 = arith.constant dense<0.000000e+00> : vector<8x128xf32>
      %477 = tpu.matmul %467, %476, %cst_118 {dimension_numbers = #tpu.dot_dimension_numbers<[1], [0], [0], [1], [0, 0, 1, 1], [], []>} : vector<8x128xf32>, vector<128x128xf32>, vector<8x128xf32> -> vector<8x128xf32>
      %478 = arith.addf %475, %477 : vector<8x128xf32>
      %c0_119 = arith.constant 0 : index
      %c0_120 = arith.constant 0 : index
      %479 = vector.load %arg18[%c0_119, %c0_120] : memref<512x128xf32, #tpu.memory_space<vmem>>, vector<512x128xf32>
      %cst_121 = arith.constant dense<0.000000e+00> : vector<8x128xf32>
      %480 = tpu.matmul %473, %479, %cst_121 {dimension_numbers = #tpu.dot_dimension_numbers<[1], [0], [0], [1], [0, 0, 1, 1], [], []>} : vector<8x512xf32>, vector<512x128xf32>, vector<8x128xf32> -> vector<8x128xf32>
      %481 = arith.addf %478, %480 : vector<8x128xf32>
      %c0_122 = arith.constant 0 : index
      %c0_123 = arith.constant 0 : index
      %482 = vector.load %arg19[%c0_122, %c0_123] : memref<1x128xf32, #tpu.memory_space<vmem>>, vector<1x128xf32>
      %483 = vector.broadcast %482 : vector<1x128xf32> to vector<8x128xf32>
      %484 = arith.addf %481, %483 : vector<8x128xf32>
      %c0_124 = arith.constant 0 : index
      %c0_125 = arith.constant 0 : index
      %485 = vector.load %arg20[%c0_124, %c0_125] : memref<8x128xf32, #tpu.memory_space<vmem>>, vector<8x128xf32>
      tpu.vector_store %arg20[%c0_124, %c0_125], %484 {strides = array<i32>} : memref<8x128xf32, #tpu.memory_space<vmem>>, vector<8x128xf32>,
    } else {
    }
    return
  }
  func.func @transform_0(%arg0: i32) -> (i32, i32, i32, i32) {
    %c0_i32 = arith.constant 0 : i32
    %c0_i32_0 = arith.constant 0 : i32
    %c0_i32_1 = arith.constant 0 : i32
    %c0_i32_2 = arith.constant 0 : i32
    return %arg0, %c0_i32, %c0_i32_0, %c0_i32_1 : i32, i32, i32, i32
  }
  func.func @transform_1(%arg0: i32) -> (i32, i32, i32) {
    %c0_i32 = arith.constant 0 : i32
    %c0_i32_0 = arith.constant 0 : i32
    %c0_i32_1 = arith.constant 0 : i32
    return %arg0, %c0_i32, %c0_i32_0 : i32, i32, i32
  }
  func.func @transform_2(%arg0: i32) -> (i32, i32, i32) {
    %c0_i32 = arith.constant 0 : i32
    %c0_i32_0 = arith.constant 0 : i32
    %c0_i32_1 = arith.constant 0 : i32
    return %arg0, %c0_i32, %c0_i32_0 : i32, i32, i32
  }
  func.func @transform_3(%arg0: i32) -> (i32, i32, i32) {
    %c0_i32 = arith.constant 0 : i32
    %c0_i32_0 = arith.constant 0 : i32
    %c0_i32_1 = arith.constant 0 : i32
    return %arg0, %c0_i32, %c0_i32_0 : i32, i32, i32
  }
  func.func @transform_4(%arg0: i32) -> (i32, i32) {
    %c0_i32 = arith.constant 0 : i32
    %c0_i32_0 = arith.constant 0 : i32
    %c0_i32_1 = arith.constant 0 : i32
    return %c0_i32, %c0_i32_0 : i32, i32
  }
  func.func @transform_5(%arg0: i32) -> (i32, i32) {
    %c0_i32 = arith.constant 0 : i32
    %c0_i32_0 = arith.constant 0 : i32
    %c0_i32_1 = arith.constant 0 : i32
    return %c0_i32, %c0_i32_0 : i32, i32
  }
  func.func @transform_6(%arg0: i32) -> (i32, i32) {
    %c0_i32 = arith.constant 0 : i32
    %c0_i32_0 = arith.constant 0 : i32
    %c0_i32_1 = arith.constant 0 : i32
    return %c0_i32, %c0_i32_0 : i32, i32
  }
  func.func @transform_7(%arg0: i32) -> (i32, i32) {
    %c0_i32 = arith.constant 0 : i32
    %c0_i32_0 = arith.constant 0 : i32
    %c0_i32_1 = arith.constant 0 : i32
    return %c0_i32, %c0_i32_0 : i32, i32
  }
  func.func @transform_8(%arg0: i32) -> (i32, i32) {
    %c0_i32 = arith.constant 0 : i32
    %c0_i32_0 = arith.constant 0 : i32
    %c0_i32_1 = arith.constant 0 : i32
    return %c0_i32, %c0_i32_0 : i32, i32
  }
  func.func @transform_9(%arg0: i32) -> (i32, i32) {
    %c0_i32 = arith.constant 0 : i32
    %c0_i32_0 = arith.constant 0 : i32
    %c0_i32_1 = arith.constant 0 : i32
    return %c0_i32, %c0_i32_0 : i32, i32
  }
  func.func @transform_10(%arg0: i32) -> (i32, i32) {
    %c0_i32 = arith.constant 0 : i32
    %c0_i32_0 = arith.constant 0 : i32
    %c0_i32_1 = arith.constant 0 : i32
    return %c0_i32, %c0_i32_0 : i32, i32
  }
  func.func @transform_11(%arg0: i32) -> (i32, i32) {
    %c0_i32 = arith.constant 0 : i32
    %c0_i32_0 = arith.constant 0 : i32
    %c0_i32_1 = arith.constant 0 : i32
    return %c0_i32, %c0_i32_0 : i32, i32
  }
  func.func @transform_12(%arg0: i32) -> (i32, i32) {
    %c0_i32 = arith.constant 0 : i32
    %c0_i32_0 = arith.constant 0 : i32
    %c0_i32_1 = arith.constant 0 : i32
    return %c0_i32, %c0_i32_0 : i32, i32
  }
  func.func @transform_13(%arg0: i32) -> (i32, i32) {
    %c0_i32 = arith.constant 0 : i32
    %c0_i32_0 = arith.constant 0 : i32
    %c0_i32_1 = arith.constant 0 : i32
    return %c0_i32, %c0_i32_0 : i32, i32
  }
  func.func @transform_14(%arg0: i32) -> (i32, i32) {
    %c0_i32 = arith.constant 0 : i32
    %c0_i32_0 = arith.constant 0 : i32
    %c0_i32_1 = arith.constant 0 : i32
    return %c0_i32, %c0_i32_0 : i32, i32
  }
  func.func @transform_15(%arg0: i32) -> (i32, i32) {
    %c0_i32 = arith.constant 0 : i32
    %c0_i32_0 = arith.constant 0 : i32
    %c0_i32_1 = arith.constant 0 : i32
    return %c0_i32, %c0_i32_0 : i32, i32
  }
  func.func @transform_16(%arg0: i32) -> (i32, i32) {
    %c0_i32 = arith.constant 0 : i32
    %c0_i32_0 = arith.constant 0 : i32
    %c0_i32_1 = arith.constant 0 : i32
    return %c0_i32, %c0_i32_0 : i32, i32
  }
  func.func @transform_17(%arg0: i32) -> (i32, i32) {
    %c0_i32 = arith.constant 0 : i32
    %c0_i32_0 = arith.constant 0 : i32
    %c0_i32_1 = arith.constant 0 : i32
    return %c0_i32, %c0_i32_0 : i32, i32
  }
  func.func @transform_18(%arg0: i32) -> (i32, i32) {
    %c0_i32 = arith.constant 0 : i32
    %c0_i32_0 = arith.constant 0 : i32
    %c0_i32_1 = arith.constant 0 : i32
    return %c0_i32, %c0_i32_0 : i32, i32
  }
  func.func @transform_19(%arg0: i32) -> (i32, i32) {
    %c0_i32 = arith.constant 0 : i32
    %c0_i32_0 = arith.constant 0 : i32
    %c0_i32_1 = arith.constant 0 : i32
    return %c0_i32, %c0_i32_0 : i32, i32
  }
}

</mosaic_0001>

<llo_original>
// kernel: ian_features1_forward.1
$region0: #{ian_features1_forward.1}
  #allocation0 [shape = 'u32[]', space=smem, size = 0x4, offset = 0x4, fixed_abs, tag = 'smem constant byte address 0x4 - core index']
  #allocation1 [shape = 'u32[144,128]{1,0:T(1,128)}', space=vmem, size = 0x12000, scoped, tag = 'internal scratch']
  #allocation2 [shape = 'f32[8,128]{1,0:T(8,128)}', space=vmem, size = 0x1000, scoped, tag = 'scratch operand']
  %s0 = inlined_call_operand.vmem [shape: f32[2,8,8,512], index: 0, kind: input, shape index: {}]
  %s1 = inlined_call_operand.vmem [shape: f32[2,8,1], index: 1, kind: input, shape index: {}]
  %s2 = inlined_call_operand.vmem [shape: f32[2,128,512], index: 2, kind: input, shape index: {}]
  %s3 = inlined_call_operand.vmem [shape: f32[2,1,512], index: 3, kind: input, shape index: {}]
  %s4 = inlined_call_operand.vmem [shape: f32[8,128], index: 4, kind: input, shape index: {}]
  %s5 = inlined_call_operand.vmem [shape: f32[128,128], index: 5, kind: input, shape index: {}]
  %s6 = inlined_call_operand.vmem [shape: f32[1,128], index: 6, kind: input, shape index: {}]
  %s7 = inlined_call_operand.vmem [shape: f32[128,128], index: 7, kind: input, shape index: {}]
  %s8 = inlined_call_operand.vmem [shape: f32[1,128], index: 8, kind: input, shape index: {}]
  %s9 = inlined_call_operand.vmem [shape: f32[128,128], index: 9, kind: input, shape index: {}]
  %s10 = inlined_call_operand.vmem [shape: f32[1,128], index: 10, kind: input, shape index: {}]
  %s11 = inlined_call_operand.vmem [shape: f32[128,128], index: 11, kind: input, shape index: {}]
  %s12 = inlined_call_operand.vmem [shape: f32[1,128], index: 12, kind: input, shape index: {}]
  %s13 = inlined_call_operand.vmem [shape: f32[128,512], index: 13, kind: input, shape index: {}]
  %s14 = inlined_call_operand.vmem [shape: f32[1,512], index: 14, kind: input, shape index: {}]
  %s15 = inlined_call_operand.vmem [shape: f32[128,128], index: 15, kind: input, shape index: {}]
  %s16 = inlined_call_operand.vmem [shape: f32[128,128], index: 16, kind: input, shape index: {}]
  %s17 = inlined_call_operand.vmem [shape: f32[512,128], index: 17, kind: input, shape index: {}]
  %s18 = inlined_call_operand.vmem [shape: f32[1,128], index: 18, kind: input, shape index: {}]
  %s19 = inlined_call_operand.vmem [shape: f32[8,128], index: 19, kind: output, shape index: {}]
  %s20 = sld [smem:[#allocation0]]
  $region117: #{ian_features1_forward.1} parent=0
    _
  %s22 = ssub.s32 1, %s20
  %s23 = scalar_select 0, %s22, %s20
  loop: start=0, step=1, limit=4
  $region2: #{ian_features1_forward.1} parent=0 // loop_pre_header
    _
  $region3: #{ian_features1_forward.1} parent=0 // loop_header
    %s25 = sphi 0, %s29
    %p26 = scmp.ge.s32.totalorder %s25, 4
    %s35 = sphi 0, %s37
    %s38 = sphi 0, %s35
    %s39 = sphi 0, %s38
    %s55 = sphi 0, %s39
    %s61 = sphi 0, %s63
    %s64 = sphi 0, %s61
    %s65 = sphi 0, %s64
    %s81 = sphi 0, %s65
    %s87 = sphi 0, %s89
    %s90 = sphi 0, %s87
    %s91 = sphi 0, %s90
    %s107 = sphi 0, %s91
    %s113 = sphi 0, %s115
    %s116 = sphi 0, %s113
    %s117 = sphi 0, %s116
    %s133 = sphi 0, %s117
    %s137 = sphi 0, %s137
    %s139 = sphi 0, %s137
    %s140 = sphi 0, %s139
    %s154 = sphi 0, %s140
    %s158 = sphi 0, %s158
    %s160 = sphi 0, %s158
    %s161 = sphi 0, %s160
    %s175 = sphi 0, %s161
    %s179 = sphi 0, %s179
    %s181 = sphi 0, %s179
    %s182 = sphi 0, %s181
    %s196 = sphi 0, %s182
    %s200 = sphi 0, %s200
    %s202 = sphi 0, %s200
    %s203 = sphi 0, %s202
    %s217 = sphi 0, %s203
    %s221 = sphi 0, %s221
    %s223 = sphi 0, %s221
    %s224 = sphi 0, %s223
    %s238 = sphi 0, %s224
    %s242 = sphi 0, %s242
    %s244 = sphi 0, %s242
    %s245 = sphi 0, %s244
    %s259 = sphi 0, %s245
    %s263 = sphi 0, %s263
    %s265 = sphi 0, %s263
    %s266 = sphi 0, %s265
    %s280 = sphi 0, %s266
    %s284 = sphi 0, %s284
    %s286 = sphi 0, %s284
    %s287 = sphi 0, %s286
    %s301 = sphi 0, %s287
    %s305 = sphi 0, %s305
    %s307 = sphi 0, %s305
    %s308 = sphi 0, %s307
    %s322 = sphi 0, %s308
    %s326 = sphi 0, %s326
    %s328 = sphi 0, %s326
    %s329 = sphi 0, %s328
    %s343 = sphi 0, %s329
    %s347 = sphi 0, %s347
    %s349 = sphi 0, %s347
    %s350 = sphi 0, %s349
    %s364 = sphi 0, %s350
    %s368 = sphi 0, %s368
    %s370 = sphi 0, %s368
    %s371 = sphi 0, %s370
    %s385 = sphi 0, %s371
    %s389 = sphi 0, %s389
    %s391 = sphi 0, %s389
    %s392 = sphi 0, %s391
    %s406 = sphi 0, %s392
    %s410 = sphi 0, %s410
    %s412 = sphi 0, %s410
    %s413 = sphi 0, %s412
    %s427 = sphi 0, %s413
    %s431 = sphi 0, %s431
    %s433 = sphi 0, %s431
    %s434 = sphi 0, %s433
    %s448 = sphi 0, %s434
    %s452 = sphi 0, %s452
    %s454 = sphi 0, %s452
    %s455 = sphi 0, %s454
    %s469 = sphi 0, %s455
  $region4: #{ian_features1_forward.1} parent=0 // loop_header_branch
    %28 = sbr.rel (%p26) target = $region8
  $region5: #{ian_features1_forward.1} parent=0 // loop_body
    %s30 = ssub.s32 %s25, 1
    %s31 = ssub.s32 %s25, 2
    %s32 = sadd.s32 %s25, 1
    %s33 = ssub.s32 %s25, %s32
    %p34 = scmp.eq.s32.totalorder %s33, 0
    %s36 = sadd.s32 %s35, 1
    %s37 = scalar_select %p34, %s35, %s36
    %p40 = pneg %p34
    %p41 = scmp.eq.s32.totalorder %s25, 1
    %p42 = por %p40, %p41
    %p43 = scmp.ne.s32.totalorder %s35, %s38
    %p44 = scmp.eq.s32.totalorder %s25, 0
    %p45 = por %p43, %p44
    %p46 = scmp.ne.s32.totalorder %s35, %s38
    %p47 = scmp.eq.s32.totalorder %s30, 1
    %p48 = por %p46, %p47
    %p49 = scmp.ne.s32.totalorder %s38, %s39
    %p50 = scmp.eq.s32.totalorder %s30, 0
    %p51 = por %p49, %p50
    %p52 = scmp.ne.s32.totalorder %s38, %s39
    %p53 = scmp.eq.s32.totalorder %s31, 1
    %p54 = por %p52, %p53
    %p56 = scmp.ne.s32.totalorder %s39, %s55
    %p57 = scmp.eq.s32.totalorder %s31, 0
    %p58 = por %p56, %p57
    %s59 = ssub.s32 %s25, %s32
    %p60 = scmp.eq.s32.totalorder %s59, 0
    %s62 = sadd.s32 %s61, 1
    %s63 = scalar_select %p60, %s61, %s62
    %p66 = pneg %p60
    %p67 = scmp.eq.s32.totalorder %s25, 1
    %p68 = por %p66, %p67
    %p69 = scmp.ne.s32.totalorder %s61, %s64
    %p70 = scmp.eq.s32.totalorder %s25, 0
    %p71 = por %p69, %p70
    %p72 = scmp.ne.s32.totalorder %s61, %s64
    %p73 = scmp.eq.s32.totalorder %s30, 1
    %p74 = por %p72, %p73
    %p75 = scmp.ne.s32.totalorder %s64, %s65
    %p76 = scmp.eq.s32.totalorder %s30, 0
    %p77 = por %p75, %p76
    %p78 = scmp.ne.s32.totalorder %s64, %s65
    %p79 = scmp.eq.s32.totalorder %s31, 1
    %p80 = por %p78, %p79
    %p82 = scmp.ne.s32.totalorder %s65, %s81
    %p83 = scmp.eq.s32.totalorder %s31, 0
    %p84 = por %p82, %p83
    %s85 = ssub.s32 %s25, %s32
    %p86 = scmp.eq.s32.totalorder %s85, 0
    %s88 = sadd.s32 %s87, 1
    %s89 = scalar_select %p86, %s87, %s88
    %p92 = pneg %p86
    %p93 = scmp.eq.s32.totalorder %s25, 1
    %p94 = por %p92, %p93
    %p95 = scmp.ne.s32.totalorder %s87, %s90
    %p96 = scmp.eq.s32.totalorder %s25, 0
    %p97 = por %p95, %p96
    %p98 = scmp.ne.s32.totalorder %s87, %s90
    %p99 = scmp.eq.s32.totalorder %s30, 1
    %p100 = por %p98, %p99
    %p101 = scmp.ne.s32.totalorder %s90, %s91
    %p102 = scmp.eq.s32.totalorder %s30, 0
    %p103 = por %p101, %p102
    %p104 = scmp.ne.s32.totalorder %s90, %s91
    %p105 = scmp.eq.s32.totalorder %s31, 1
    %p106 = por %p104, %p105
    %p108 = scmp.ne.s32.totalorder %s91, %s107
    %p109 = scmp.eq.s32.totalorder %s31, 0
    %p110 = por %p108, %p109
    %s111 = ssub.s32 %s25, %s32
    %p112 = scmp.eq.s32.totalorder %s111, 0
    %s114 = sadd.s32 %s113, 1
    %s115 = scalar_select %p112, %s113, %s114
    %p118 = pneg %p112
    %p119 = scmp.eq.s32.totalorder %s25, 1
    %p120 = por %p118, %p119
    %p121 = scmp.ne.s32.totalorder %s113, %s116
    %p122 = scmp.eq.s32.totalorder %s25, 0
    %p123 = por %p121, %p122
    %p124 = scmp.ne.s32.totalorder %s113, %s116
    %p125 = scmp.eq.s32.totalorder %s30, 1
    %p126 = por %p124, %p125
    %p127 = scmp.ne.s32.totalorder %s116, %s117
    %p128 = scmp.eq.s32.totalorder %s30, 0
    %p129 = por %p127, %p128
    %p130 = scmp.ne.s32.totalorder %s116, %s117
    %p131 = scmp.eq.s32.totalorder %s31, 1
    %p132 = por %p130, %p131
    %p134 = scmp.ne.s32.totalorder %s117, %s133
    %p135 = scmp.eq.s32.totalorder %s31, 0
    %p136 = por %p134, %p135
    %s138 = sadd.s32 %s137, 1
    %p141 = scmp.eq.s32.totalorder %s25, 1
    %p142 = scmp.ne.s32.totalorder %s137, %s139
    %p143 = scmp.eq.s32.totalorder %s25, 0
    %p144 = por %p142, %p143
    %p145 = scmp.ne.s32.totalorder %s137, %s139
    %p146 = scmp.eq.s32.totalorder %s30, 1
    %p147 = por %p145, %p146
    %p148 = scmp.ne.s32.totalorder %s139, %s140
    %p149 = scmp.eq.s32.totalorder %s30, 0
    %p150 = por %p148, %p149
    %p151 = scmp.ne.s32.totalorder %s139, %s140
    %p152 = scmp.eq.s32.totalorder %s31, 1
    %p153 = por %p151, %p152
    %p155 = scmp.ne.s32.totalorder %s140, %s154
    %p156 = scmp.eq.s32.totalorder %s31, 0
    %p157 = por %p155, %p156
    %s159 = sadd.s32 %s158, 1
    %p162 = scmp.eq.s32.totalorder %s25, 1
    %p163 = scmp.ne.s32.totalorder %s158, %s160
    %p164 = scmp.eq.s32.totalorder %s25, 0
    %p165 = por %p163, %p164
    %p166 = scmp.ne.s32.totalorder %s158, %s160
    %p167 = scmp.eq.s32.totalorder %s30, 1
    %p168 = por %p166, %p167
    %p169 = scmp.ne.s32.totalorder %s160, %s161
    %p170 = scmp.eq.s32.totalorder %s30, 0
    %p171 = por %p169, %p170
    %p172 = scmp.ne.s32.totalorder %s160, %s161
    %p173 = scmp.eq.s32.totalorder %s31, 1
    %p174 = por %p172, %p173
    %p176 = scmp.ne.s32.totalorder %s161, %s175
    %p177 = scmp.eq.s32.totalorder %s31, 0
    %p178 = por %p176, %p177
    %s180 = sadd.s32 %s179, 1
    %p183 = scmp.eq.s32.totalorder %s25, 1
    %p184 = scmp.ne.s32.totalorder %s179, %s181
    %p185 = scmp.eq.s32.totalorder %s25, 0
    %p186 = por %p184, %p185
    %p187 = scmp.ne.s32.totalorder %s179, %s181
    %p188 = scmp.eq.s32.totalorder %s30, 1
    %p189 = por %p187, %p188
    %p190 = scmp.ne.s32.totalorder %s181, %s182
    %p191 = scmp.eq.s32.totalorder %s30, 0
    %p192 = por %p190, %p191
    %p193 = scmp.ne.s32.totalorder %s181, %s182
    %p194 = scmp.eq.s32.totalorder %s31, 1
    %p195 = por %p193, %p194
    %p197 = scmp.ne.s32.totalorder %s182, %s196
    %p198 = scmp.eq.s32.totalorder %s31, 0
    %p199 = por %p197, %p198
    %s201 = sadd.s32 %s200, 1
    %p204 = scmp.eq.s32.totalorder %s25, 1
    %p205 = scmp.ne.s32.totalorder %s200, %s202
    %p206 = scmp.eq.s32.totalorder %s25, 0
    %p207 = por %p205, %p206
    %p208 = scmp.ne.s32.totalorder %s200, %s202
    %p209 = scmp.eq.s32.totalorder %s30, 1
    %p210 = por %p208, %p209
    %p211 = scmp.ne.s32.totalorder %s202, %s203
    %p212 = scmp.eq.s32.totalorder %s30, 0
    %p213 = por %p211, %p212
    %p214 = scmp.ne.s32.totalorder %s202, %s203
    %p215 = scmp.eq.s32.totalorder %s31, 1
    %p216 = por %p214, %p215
    %p218 = scmp.ne.s32.totalorder %s203, %s217
    %p219 = scmp.eq.s32.totalorder %s31, 0
    %p220 = por %p218, %p219
    %s222 = sadd.s32 %s221, 1
    %p225 = scmp.eq.s32.totalorder %s25, 1
    %p226 = scmp.ne.s32.totalorder %s221, %s223
    %p227 = scmp.eq.s32.totalorder %s25, 0
    %p228 = por %p226, %p227
    %p229 = scmp.ne.s32.totalorder %s221, %s223
    %p230 = scmp.eq.s32.totalorder %s30, 1
    %p231 = por %p229, %p230
    %p232 = scmp.ne.s32.totalorder %s223, %s224
    %p233 = scmp.eq.s32.totalorder %s30, 0
    %p234 = por %p232, %p233
    %p235 = scmp.ne.s32.totalorder %s223, %s224
    %p236 = scmp.eq.s32.totalorder %s31, 1
    %p237 = por %p235, %p236
    %p239 = scmp.ne.s32.totalorder %s224, %s238
    %p240 = scmp.eq.s32.totalorder %s31, 0
    %p241 = por %p239, %p240
    %s243 = sadd.s32 %s242, 1
    %p246 = scmp.eq.s32.totalorder %s25, 1
    %p247 = scmp.ne.s32.totalorder %s242, %s244
    %p248 = scmp.eq.s32.totalorder %s25, 0
    %p249 = por %p247, %p248
    %p250 = scmp.ne.s32.totalorder %s242, %s244
    %p251 = scmp.eq.s32.totalorder %s30, 1
    %p252 = por %p250, %p251
    %p253 = scmp.ne.s32.totalorder %s244, %s245
    %p254 = scmp.eq.s32.totalorder %s30, 0
    %p255 = por %p253, %p254
    %p256 = scmp.ne.s32.totalorder %s244, %s245
    %p257 = scmp.eq.s32.totalorder %s31, 1
    %p258 = por %p256, %p257
    %p260 = scmp.ne.s32.totalorder %s245, %s259
    %p261 = scmp.eq.s32.totalorder %s31, 0
    %p262 = por %p260, %p261
    %s264 = sadd.s32 %s263, 1
    %p267 = scmp.eq.s32.totalorder %s25, 1
    %p268 = scmp.ne.s32.totalorder %s263, %s265
    %p269 = scmp.eq.s32.totalorder %s25, 0
    %p270 = por %p268, %p269
    %p271 = scmp.ne.s32.totalorder %s263, %s265
    %p272 = scmp.eq.s32.totalorder %s30, 1
    %p273 = por %p271, %p272
    %p274 = scmp.ne.s32.totalorder %s265, %s266
    %p275 = scmp.eq.s32.totalorder %s30, 0
    %p276 = por %p274, %p275
    %p277 = scmp.ne.s32.totalorder %s265, %s266
    %p278 = scmp.eq.s32.totalorder %s31, 1
    %p279 = por %p277, %p278
    %p281 = scmp.ne.s32.totalorder %s266, %s280
    %p282 = scmp.eq.s32.totalorder %s31, 0
    %p283 = por %p281, %p282
    %s285 = sadd.s32 %s284, 1
    %p288 = scmp.eq.s32.totalorder %s25, 1
    %p289 = scmp.ne.s32.totalorder %s284, %s286
    %p290 = scmp.eq.s32.totalorder %s25, 0
    %p291 = por %p289, %p290
    %p292 = scmp.ne.s32.totalorder %s284, %s286
    %p293 = scmp.eq.s32.totalorder %s30, 1
    %p294 = por %p292, %p293
    %p295 = scmp.ne.s32.totalorder %s286, %s287
    %p296 = scmp.eq.s32.totalorder %s30, 0
    %p297 = por %p295, %p296
    %p298 = scmp.ne.s32.totalorder %s286, %s287
    %p299 = scmp.eq.s32.totalorder %s31, 1
    %p300 = por %p298, %p299
    %p302 = scmp.ne.s32.totalorder %s287, %s301
    %p303 = scmp.eq.s32.totalorder %s31, 0
    %p304 = por %p302, %p303
    %s306 = sadd.s32 %s305, 1
    %p309 = scmp.eq.s32.totalorder %s25, 1
    %p310 = scmp.ne.s32.totalorder %s305, %s307
    %p311 = scmp.eq.s32.totalorder %s25, 0
    %p312 = por %p310, %p311
    %p313 = scmp.ne.s32.totalorder %s305, %s307
    %p314 = scmp.eq.s32.totalorder %s30, 1
    %p315 = por %p313, %p314
    %p316 = scmp.ne.s32.totalorder %s307, %s308
    %p317 = scmp.eq.s32.totalorder %s30, 0
    %p318 = por %p316, %p317
    %p319 = scmp.ne.s32.totalorder %s307, %s308
    %p320 = scmp.eq.s32.totalorder %s31, 1
    %p321 = por %p319, %p320
    %p323 = scmp.ne.s32.totalorder %s308, %s322
    %p324 = scmp.eq.s32.totalorder %s31, 0
    %p325 = por %p323, %p324
    %s327 = sadd.s32 %s326, 1
    %p330 = scmp.eq.s32.totalorder %s25, 1
    %p331 = scmp.ne.s32.totalorder %s326, %s328
    %p332 = scmp.eq.s32.totalorder %s25, 0
    %p333 = por %p331, %p332
    %p334 = scmp.ne.s32.totalorder %s326, %s328
    %p335 = scmp.eq.s32.totalorder %s30, 1
    %p336 = por %p334, %p335
    %p337 = scmp.ne.s32.totalorder %s328, %s329
    %p338 = scmp.eq.s32.totalorder %s30, 0
    %p339 = por %p337, %p338
    %p340 = scmp.ne.s32.totalorder %s328, %s329
    %p341 = scmp.eq.s32.totalorder %s31, 1
    %p342 = por %p340, %p341
    %p344 = scmp.ne.s32.totalorder %s329, %s343
    %p345 = scmp.eq.s32.totalorder %s31, 0
    %p346 = por %p344, %p345
    %s348 = sadd.s32 %s347, 1
    %p351 = scmp.eq.s32.totalorder %s25, 1
    %p352 = scmp.ne.s32.totalorder %s347, %s349
    %p353 = scmp.eq.s32.totalorder %s25, 0
    %p354 = por %p352, %p353
    %p355 = scmp.ne.s32.totalorder %s347, %s349
    %p356 = scmp.eq.s32.totalorder %s30, 1
    %p357 = por %p355, %p356
    %p358 = scmp.ne.s32.totalorder %s349, %s350
    %p359 = scmp.eq.s32.totalorder %s30, 0
    %p360 = por %p358, %p359
    %p361 = scmp.ne.s32.totalorder %s349, %s350
    %p362 = scmp.eq.s32.totalorder %s31, 1
    %p363 = por %p361, %p362
    %p365 = scmp.ne.s32.totalorder %s350, %s364
    %p366 = scmp.eq.s32.totalorder %s31, 0
    %p367 = por %p365, %p366
    %s369 = sadd.s32 %s368, 1
    %p372 = scmp.eq.s32.totalorder %s25, 1
    %p373 = scmp.ne.s32.totalorder %s368, %s370
    %p374 = scmp.eq.s32.totalorder %s25, 0
    %p375 = por %p373, %p374
    %p376 = scmp.ne.s32.totalorder %s368, %s370
    %p377 = scmp.eq.s32.totalorder %s30, 1
    %p378 = por %p376, %p377
    %p379 = scmp.ne.s32.totalorder %s370, %s371
    %p380 = scmp.eq.s32.totalorder %s30, 0
    %p381 = por %p379, %p380
    %p382 = scmp.ne.s32.totalorder %s370, %s371
    %p383 = scmp.eq.s32.totalorder %s31, 1
    %p384 = por %p382, %p383
    %p386 = scmp.ne.s32.totalorder %s371, %s385
    %p387 = scmp.eq.s32.totalorder %s31, 0
    %p388 = por %p386, %p387
    %s390 = sadd.s32 %s389, 1
    %p393 = scmp.eq.s32.totalorder %s25, 1
    %p394 = scmp.ne.s32.totalorder %s389, %s391
    %p395 = scmp.eq.s32.totalorder %s25, 0
    %p396 = por %p394, %p395
    %p397 = scmp.ne.s32.totalorder %s389, %s391
    %p398 = scmp.eq.s32.totalorder %s30, 1
    %p399 = por %p397, %p398
    %p400 = scmp.ne.s32.totalorder %s391, %s392
    %p401 = scmp.eq.s32.totalorder %s30, 0
    %p402 = por %p400, %p401
    %p403 = scmp.ne.s32.totalorder %s391, %s392
    %p404 = scmp.eq.s32.totalorder %s31, 1
    %p405 = por %p403, %p404
    %p407 = scmp.ne.s32.totalorder %s392, %s406
    %p408 = scmp.eq.s32.totalorder %s31, 0
    %p409 = por %p407, %p408
    %s411 = sadd.s32 %s410, 1
    %p414 = scmp.eq.s32.totalorder %s25, 1
    %p415 = scmp.ne.s32.totalorder %s410, %s412
    %p416 = scmp.eq.s32.totalorder %s25, 0
    %p417 = por %p415, %p416
    %p418 = scmp.ne.s32.totalorder %s410, %s412
    %p419 = scmp.eq.s32.totalorder %s30, 1
    %p420 = por %p418, %p419
    %p421 = scmp.ne.s32.totalorder %s412, %s413
    %p422 = scmp.eq.s32.totalorder %s30, 0
    %p423 = por %p421, %p422
    %p424 = scmp.ne.s32.totalorder %s412, %s413
    %p425 = scmp.eq.s32.totalorder %s31, 1
    %p426 = por %p424, %p425
    %p428 = scmp.ne.s32.totalorder %s413, %s427
    %p429 = scmp.eq.s32.totalorder %s31, 0
    %p430 = por %p428, %p429
    %s432 = sadd.s32 %s431, 1
    %p435 = scmp.eq.s32.totalorder %s25, 1
    %p436 = scmp.ne.s32.totalorder %s431, %s433
    %p437 = scmp.eq.s32.totalorder %s25, 0
    %p438 = por %p436, %p437
    %p439 = scmp.ne.s32.totalorder %s431, %s433
    %p440 = scmp.eq.s32.totalorder %s30, 1
    %p441 = por %p439, %p440
    %p442 = scmp.ne.s32.totalorder %s433, %s434
    %p443 = scmp.eq.s32.totalorder %s30, 0
    %p444 = por %p442, %p443
    %p445 = scmp.ne.s32.totalorder %s433, %s434
    %p446 = scmp.eq.s32.totalorder %s31, 1
    %p447 = por %p445, %p446
    %p449 = scmp.ne.s32.totalorder %s434, %s448
    %p450 = scmp.eq.s32.totalorder %s31, 0
    %p451 = por %p449, %p450
    %s453 = sadd.s32 %s452, 1
    %p456 = scmp.eq.s32.totalorder %s25, 1
    %p457 = scmp.ne.s32.totalorder %s452, %s454
    %p458 = scmp.eq.s32.totalorder %s25, 0
    %p459 = por %p457, %p458
    %p460 = scmp.ne.s32.totalorder %s452, %s454
    %p461 = scmp.eq.s32.totalorder %s30, 1
    %p462 = por %p460, %p461
    %p463 = scmp.ne.s32.totalorder %s454, %s455
    %p464 = scmp.eq.s32.totalorder %s30, 0
    %p465 = por %p463, %p464
    %p466 = scmp.ne.s32.totalorder %s454, %s455
    %p467 = scmp.eq.s32.totalorder %s31, 1
    %p468 = por %p466, %p467
    %p470 = scmp.ne.s32.totalorder %s455, %s469
    %p471 = scmp.eq.s32.totalorder %s31, 0
    %p472 = por %p470, %p471
    %p473 = scmp.le.s32.totalorder 1, %s25
    %p474 = scmp.lt.s32.totalorder %s25, 3
    %p475 = pnand %p473, %p474
    %p476 = pneg %p475
    // Predicated region
    $region9: #{ian_features1_forward.1} parent=5 // pred_check
      _
    $region10: #{ian_features1_forward.1} parent=5 // pred_check_branch
      %478 = sbr.rel (%p475) target = $region12
    $region11: #{ian_features1_forward.1} parent=5 // pred_region
      %s479 = ssub.s32 %s25, 1
      // Predicated region
      $region13: #{ian_features1_forward.1} parent=11 // pred_check
        %p480 = pneg %p150
      $region14: #{ian_features1_forward.1} parent=11 // pred_check_branch
        %482 = sbr.rel (%p480) target = $region16
      $region15: #{ian_features1_forward.1} parent=11 // pred_region
        _
      $region16: #{ian_features1_forward.1} parent=11 // pred_fallthru
        _
      // Predicated region
      $region17: #{ian_features1_forward.1} parent=11 // pred_check
        %p483 = pneg %p171
      $region18: #{ian_features1_forward.1} parent=11 // pred_check_branch
        %485 = sbr.rel (%p483) target = $region20
      $region19: #{ian_features1_forward.1} parent=11 // pred_region
        _
      $region20: #{ian_features1_forward.1} parent=11 // pred_fallthru
        _
      // Predicated region
      $region21: #{ian_features1_forward.1} parent=11 // pred_check
        %p486 = pneg %p192
      $region22: #{ian_features1_forward.1} parent=11 // pred_check_branch
        %488 = sbr.rel (%p486) target = $region24
      $region23: #{ian_features1_forward.1} parent=11 // pred_region
        _
      $region24: #{ian_features1_forward.1} parent=11 // pred_fallthru
        _
      // Predicated region
      $region25: #{ian_features1_forward.1} parent=11 // pred_check
        %p489 = pneg %p213
      $region26: #{ian_features1_forward.1} parent=11 // pred_check_branch
        %491 = sbr.rel (%p489) target = $region28
      $region27: #{ian_features1_forward.1} parent=11 // pred_region
        _
      $region28: #{ian_features1_forward.1} parent=11 // pred_fallthru
        _
      // Predicated region
      $region29: #{ian_features1_forward.1} parent=11 // pred_check
        %p492 = pneg %p234
      $region30: #{ian_features1_forward.1} parent=11 // pred_check_branch
        %494 = sbr.rel (%p492) target = $region32
      $region31: #{ian_features1_forward.1} parent=11 // pred_region
        _
      $region32: #{ian_features1_forward.1} parent=11 // pred_fallthru
        _
      // Predicated region
      $region33: #{ian_features1_forward.1} parent=11 // pred_check
        %p495 = pneg %p255
      $region34: #{ian_features1_forward.1} parent=11 // pred_check_branch
        %497 = sbr.rel (%p495) target = $region36
      $region35: #{ian_features1_forward.1} parent=11 // pred_region
        _
      $region36: #{ian_features1_forward.1} parent=11 // pred_fallthru
        _
      // Predicated region
      $region37: #{ian_features1_forward.1} parent=11 // pred_check
        %p498 = pneg %p276
      $region38: #{ian_features1_forward.1} parent=11 // pred_check_branch
        %500 = sbr.rel (%p498) target = $region40
      $region39: #{ian_features1_forward.1} parent=11 // pred_region
        _
      $region40: #{ian_features1_forward.1} parent=11 // pred_fallthru
        _
      // Predicated region
      $region41: #{ian_features1_forward.1} parent=11 // pred_check
        %p501 = pneg %p297
      $region42: #{ian_features1_forward.1} parent=11 // pred_check_branch
        %503 = sbr.rel (%p501) target = $region44
      $region43: #{ian_features1_forward.1} parent=11 // pred_region
        _
      $region44: #{ian_features1_forward.1} parent=11 // pred_fallthru
        _
      // Predicated region
      $region45: #{ian_features1_forward.1} parent=11 // pred_check
        %p504 = pneg %p318
      $region46: #{ian_features1_forward.1} parent=11 // pred_check_branch
        %506 = sbr.rel (%p504) target = $region48
      $region47: #{ian_features1_forward.1} parent=11 // pred_region
        _
      $region48: #{ian_features1_forward.1} parent=11 // pred_fallthru
        _
      // Predicated region
      $region49: #{ian_features1_forward.1} parent=11 // pred_check
        %p507 = pneg %p339
      $region50: #{ian_features1_forward.1} parent=11 // pred_check_branch
        %509 = sbr.rel (%p507) target = $region52
      $region51: #{ian_features1_forward.1} parent=11 // pred_region
        _
      $region52: #{ian_features1_forward.1} parent=11 // pred_fallthru
        _
      // Predicated region
      $region53: #{ian_features1_forward.1} parent=11 // pred_check
        %p510 = pneg %p360
      $region54: #{ian_features1_forward.1} parent=11 // pred_check_branch
        %512 = sbr.rel (%p510) target = $region56
      $region55: #{ian_features1_forward.1} parent=11 // pred_region
        _
      $region56: #{ian_features1_forward.1} parent=11 // pred_fallthru
        _
      // Predicated region
      $region57: #{ian_features1_forward.1} parent=11 // pred_check
        %p513 = pneg %p381
      $region58: #{ian_features1_forward.1} parent=11 // pred_check_branch
        %515 = sbr.rel (%p513) target = $region60
      $region59: #{ian_features1_forward.1} parent=11 // pred_region
        _
      $region60: #{ian_features1_forward.1} parent=11 // pred_fallthru
        _
      // Predicated region
      $region61: #{ian_features1_forward.1} parent=11 // pred_check
        %p516 = pneg %p402
      $region62: #{ian_features1_forward.1} parent=11 // pred_check_branch
        %518 = sbr.rel (%p516) target = $region64
      $region63: #{ian_features1_forward.1} parent=11 // pred_region
        _
      $region64: #{ian_features1_forward.1} parent=11 // pred_fallthru
        _
      // Predicated region
      $region65: #{ian_features1_forward.1} parent=11 // pred_check
        %p519 = pneg %p423
      $region66: #{ian_features1_forward.1} parent=11 // pred_check_branch
        %521 = sbr.rel (%p519) target = $region68
      $region67: #{ian_features1_forward.1} parent=11 // pred_region
        _
      $region68: #{ian_features1_forward.1} parent=11 // pred_fallthru
        _
      // Predicated region
      $region69: #{ian_features1_forward.1} parent=11 // pred_check
        %p522 = pneg %p444
      $region70: #{ian_features1_forward.1} parent=11 // pred_check_branch
        %524 = sbr.rel (%p522) target = $region72
      $region71: #{ian_features1_forward.1} parent=11 // pred_region
        _
      $region72: #{ian_features1_forward.1} parent=11 // pred_fallthru
        _
    $region12: #{ian_features1_forward.1} parent=5 // pred_fallthru
      _
    %p525 = scmp.lt.s32.totalorder %s25, 2
    // Predicated region
    $region73: #{ian_features1_forward.1} parent=5 // pred_check
      %p526 = pneg %p525
    $region74: #{ian_features1_forward.1} parent=5 // pred_check_branch
      %528 = sbr.rel (%p526) target = $region76
    $region75: #{ian_features1_forward.1} parent=5 // pred_region
      // Predicated region
      $region77: #{ian_features1_forward.1} parent=75 // pred_check
        %p529 = pneg %p45
      $region78: #{ian_features1_forward.1} parent=75 // pred_check_branch
        %531 = sbr.rel (%p529) target = $region80
      $region79: #{ian_features1_forward.1} parent=75 // pred_region
        %p532 = scmp.lt.s32.totalorder %s25, 1
        %s533 = scalar_select %p532, %s25, 1
        %s534 = smul.addr %s533, 32
        %s535 = smul.addr %s534, 8
        %s536 = scalar_lea.vmem %s0, %s535
      $region80: #{ian_features1_forward.1} parent=75 // pred_fallthru
        _
      // Predicated region
      $region81: #{ian_features1_forward.1} parent=75 // pred_check
        %p537 = pneg %p71
      $region82: #{ian_features1_forward.1} parent=75 // pred_check_branch
        %539 = sbr.rel (%p537) target = $region84
      $region83: #{ian_features1_forward.1} parent=75 // pred_region
        %p540 = scmp.lt.s32.totalorder %s25, 1
        %s541 = scalar_select %p540, %s25, 1
        %s542 = smul.addr %s541, 8
        %s543 = scalar_lea.vmem %s1, %s542
      $region84: #{ian_features1_forward.1} parent=75 // pred_fallthru
        _
      // Predicated region
      $region85: #{ian_features1_forward.1} parent=75 // pred_check
        %p544 = pneg %p97
      $region86: #{ian_features1_forward.1} parent=75 // pred_check_branch
        %546 = sbr.rel (%p544) target = $region88
      $region87: #{ian_features1_forward.1} parent=75 // pred_region
        %p547 = scmp.lt.s32.totalorder %s25, 1
        %s548 = scalar_select %p547, %s25, 1
        %s549 = smul.addr %s548, 64
        %s550 = smul.addr %s549, 8
        %s551 = scalar_lea.vmem %s2, %s550
      $region88: #{ian_features1_forward.1} parent=75 // pred_fallthru
        _
      // Predicated region
      $region89: #{ian_features1_forward.1} parent=75 // pred_check
        %p552 = pneg %p123
      $region90: #{ian_features1_forward.1} parent=75 // pred_check_branch
        %554 = sbr.rel (%p552) target = $region92
      $region91: #{ian_features1_forward.1} parent=75 // pred_region
        %p555 = scmp.lt.s32.totalorder %s25, 1
        %s556 = scalar_select %p555, %s25, 1
        %s557 = smul.addr %s556, 4
        %s558 = scalar_lea.vmem %s3, %s557
      $region92: #{ian_features1_forward.1} parent=75 // pred_fallthru
        _
    $region76: #{ian_features1_forward.1} parent=5 // pred_fallthru
      _
    %p559 = scmp.le.s32.totalorder 1, %s25
    %p560 = scmp.lt.s32.totalorder %s25, 3
    %p561 = pnand %p559, %p560
    %p562 = pneg %p561
    // Predicated region
    $region93: #{ian_features1_forward.1} parent=5 // pred_check
      _
    $region94: #{ian_features1_forward.1} parent=5 // pred_check_branch
      %564 = sbr.rel (%p561) target = $region96
    $region95: #{ian_features1_forward.1} parent=5 // pred_region
      %s565 = ssub.s32 %s25, 1
      %p566 = scmp.lt.s32.totalorder %s30, 1
      %s567 = scalar_select %p566, %s30, 1
      %s568 = smul.addr %s567, 32
      %s569 = smul.addr %s568, 8
      %s570 = scalar_lea.vmem %s0, %s569
      %p571 = pneg %p51
      %p572 = pneg %p48
      %p573 = scmp.lt.s32.totalorder %s30, 1
      %s574 = scalar_select %p573, %s30, 1
      %s575 = smul.addr %s574, 8
      %s576 = scalar_lea.vmem %s1, %s575
      %p577 = pneg %p77
      %p578 = pneg %p74
      %p579 = scmp.lt.s32.totalorder %s30, 1
      %s580 = scalar_select %p579, %s30, 1
      %s581 = smul.addr %s580, 64
      %s582 = smul.addr %s581, 8
      %s583 = scalar_lea.vmem %s2, %s582
      %p584 = pneg %p103
      %p585 = pneg %p100
      %p586 = scmp.lt.s32.totalorder %s30, 1
      %s587 = scalar_select %p586, %s30, 1
      %s588 = smul.addr %s587, 4
      %s589 = scalar_lea.vmem %s3, %s588
      %p590 = pneg %p129
      %p591 = pneg %p126
      %p592 = pneg %p150
      %p593 = pneg %p147
      %p594 = pneg %p171
      %p595 = pneg %p168
      %p596 = pneg %p192
      %p597 = pneg %p189
      %p598 = pneg %p213
      %p599 = pneg %p210
      %p600 = pneg %p234
      %p601 = pneg %p231
      %p602 = pneg %p255
      %p603 = pneg %p252
      %p604 = pneg %p276
      %p605 = pneg %p273
      %p606 = pneg %p297
      %p607 = pneg %p294
      %p608 = pneg %p318
      %p609 = pneg %p315
      %p610 = pneg %p339
      %p611 = pneg %p336
      %p612 = pneg %p360
      %p613 = pneg %p357
      %p614 = pneg %p381
      %p615 = pneg %p378
      %p616 = pneg %p402
      %p617 = pneg %p399
      %p618 = pneg %p423
      %p619 = pneg %p420
      %p620 = pneg %p444
      %p621 = pneg %p441
      %p622 = pneg %p465
      %p623 = pneg %p462
      %p624 = scmp.lt.s32.totalorder %s30, 1
      %s625 = scalar_select %p624, %s30, 1
      %s626 = smul.addr %s625, 32
      %s627 = smul.addr %s626, 8
      %s628 = scalar_lea.vmem %s0, %s627
      %p629 = scmp.lt.s32.totalorder %s30, 1
      %s630 = scalar_select %p629, %s30, 1
      %s631 = smul.addr %s630, 8
      %s632 = scalar_lea.vmem %s1, %s631
      %p633 = scmp.lt.s32.totalorder %s30, 1
      %s634 = scalar_select %p633, %s30, 1
      %s635 = smul.addr %s634, 64
      %s636 = smul.addr %s635, 8
      %s637 = scalar_lea.vmem %s2, %s636
      %p638 = scmp.lt.s32.totalorder %s30, 1
      %s639 = scalar_select %p638, %s30, 1
      %s640 = smul.addr %s639, 4
      %s641 = scalar_lea.vmem %s3, %s640
      %v642 = vld [vmem:[%s637] sm:$0xff]
      %v643 = vld [vmem:[%s637 + $0x8] sm:$0xff]
      %v644 = vld [vmem:[%s637 + $0x10] sm:$0xff]
      %v645 = vld [vmem:[%s637 + $0x18] sm:$0xff]
      %v646 = vld [vmem:[%s637 + $0x20] sm:$0xff]
      %v647 = vld [vmem:[%s637 + $0x28] sm:$0xff]
      %v648 = vld [vmem:[%s637 + $0x30] sm:$0xff]
      %v649 = vld [vmem:[%s637 + $0x38] sm:$0xff]
      %v650 = vld [vmem:[%s637 + $0x40] sm:$0xff]
      %v651 = vld [vmem:[%s637 + $0x48] sm:$0xff]
      %v652 = vld [vmem:[%s637 + $0x50] sm:$0xff]
      %v653 = vld [vmem:[%s637 + $0x58] sm:$0xff]
      %v654 = vld [vmem:[%s637 + $0x60] sm:$0xff]
      %v655 = vld [vmem:[%s637 + $0x68] sm:$0xff]
      %v656 = vld [vmem:[%s637 + $0x70] sm:$0xff]
      %v657 = vld [vmem:[%s637 + $0x78] sm:$0xff]
      %v658 = vld [vmem:[%s637 + $0x80] sm:$0xff]
      %v659 = vld [vmem:[%s637 + $0x88] sm:$0xff]
      %v660 = vld [vmem:[%s637 + $0x90] sm:$0xff]
      %v661 = vld [vmem:[%s637 + $0x98] sm:$0xff]
      %v662 = vld [vmem:[%s637 + $0xa0] sm:$0xff]
      %v663 = vld [vmem:[%s637 + $0xa8] sm:$0xff]
      %v664 = vld [vmem:[%s637 + $0xb0] sm:$0xff]
      %v665 = vld [vmem:[%s637 + $0xb8] sm:$0xff]
      %v666 = vld [vmem:[%s637 + $0xc0] sm:$0xff]
      %v667 = vld [vmem:[%s637 + $0xc8] sm:$0xff]
      %v668 = vld [vmem:[%s637 + $0xd0] sm:$0xff]
      %v669 = vld [vmem:[%s637 + $0xd8] sm:$0xff]
      %v670 = vld [vmem:[%s637 + $0xe0] sm:$0xff]
      %v671 = vld [vmem:[%s637 + $0xe8] sm:$0xff]
      %v672 = vld [vmem:[%s637 + $0xf0] sm:$0xff]
      %v673 = vld [vmem:[%s637 + $0xf8] sm:$0xff]
      %v674 = vld [vmem:[%s637 + $0x100] sm:$0xff]
      %v675 = vld [vmem:[%s637 + $0x108] sm:$0xff]
      %v676 = vld [vmem:[%s637 + $0x110] sm:$0xff]
      %v677 = vld [vmem:[%s637 + $0x118] sm:$0xff]
      %v678 = vld [vmem:[%s637 + $0x120] sm:$0xff]
      %v679 = vld [vmem:[%s637 + $0x128] sm:$0xff]
      %v680 = vld [vmem:[%s637 + $0x130] sm:$0xff]
      %v681 = vld [vmem:[%s637 + $0x138] sm:$0xff]
      %v682 = vld [vmem:[%s637 + $0x140] sm:$0xff]
      %v683 = vld [vmem:[%s637 + $0x148] sm:$0xff]
      %v684 = vld [vmem:[%s637 + $0x150] sm:$0xff]
      %v685 = vld [vmem:[%s637 + $0x158] sm:$0xff]
      %v686 = vld [vmem:[%s637 + $0x160] sm:$0xff]
      %v687 = vld [vmem:[%s637 + $0x168] sm:$0xff]
      %v688 = vld [vmem:[%s637 + $0x170] sm:$0xff]
      %v689 = vld [vmem:[%s637 + $0x178] sm:$0xff]
      %v690 = vld [vmem:[%s637 + $0x180] sm:$0xff]
      %v691 = vld [vmem:[%s637 + $0x188] sm:$0xff]
      %v692 = vld [vmem:[%s637 + $0x190] sm:$0xff]
      %v693 = vld [vmem:[%s637 + $0x198] sm:$0xff]
      %v694 = vld [vmem:[%s637 + $0x1a0] sm:$0xff]
      %v695 = vld [vmem:[%s637 + $0x1a8] sm:$0xff]
      %v696 = vld [vmem:[%s637 + $0x1b0] sm:$0xff]
      %v697 = vld [vmem:[%s637 + $0x1b8] sm:$0xff]
      %v698 = vld [vmem:[%s637 + $0x1c0] sm:$0xff]
      %v699 = vld [vmem:[%s637 + $0x1c8] sm:$0xff]
      %v700 = vld [vmem:[%s637 + $0x1d0] sm:$0xff]
      %v701 = vld [vmem:[%s637 + $0x1d8] sm:$0xff]
      %v702 = vld [vmem:[%s637 + $0x1e0] sm:$0xff]
      %v703 = vld [vmem:[%s637 + $0x1e8] sm:$0xff]
      %v704 = vld [vmem:[%s637 + $0x1f0] sm:$0xff]
      %v705 = vld [vmem:[%s637 + $0x1f8] sm:$0xff]
      %v706 = vld [vmem:[%s641] sm:$0xf]
      %v707 = vld [vmem:[%s632] sm:$0xff]
      %v708 = vld [vmem:[%s628] sm:$0xff]
      %v709 = vld [vmem:[%s628 + $0x8] sm:$0xff]
      %v710 = vld [vmem:[%s628 + $0x10] sm:$0xff]
      %v711 = vld [vmem:[%s628 + $0x18] sm:$0xff]
      %712 = vmatprep.subr.mxu0 %v703
      %713 = vmatpush1.msra.mxu0 %v702
      %714 = vmatprep.subr.mxu0 %v699
      %715 = vmatpush1.msra.mxu0 %v698
      %716 = vmatprep.subr.mxu0 %v695
      %717 = vmatpush1.msra.mxu0 %v694
      %718 = vmatprep.subr.mxu0 %v691
      %719 = vmatpush1.msra.mxu0 %v690
      %720 = vmatprep.subr.mxu0 %v687
      %721 = vmatpush1.msra.mxu0 %v686
      %722 = vmatprep.subr.mxu0 %v683
      %723 = vmatpush1.msra.mxu0 %v682
      %724 = vmatprep.subr.mxu0 %v679
      %725 = vmatpush1.msra.mxu0 %v678
      %726 = vmatprep.subr.mxu0 %v675
      %727 = vmatpush1.msra.mxu0 %v674
      %728 = vmatprep.subr.mxu0 %v671
      %729 = vmatpush1.msra.mxu0 %v670
      %730 = vmatprep.subr.mxu0 %v667
      %731 = vmatpush1.msra.mxu0 %v666
      %732 = vmatprep.subr.mxu0 %v663
      %733 = vmatpush1.msra.mxu0 %v662
      %734 = vmatprep.subr.mxu0 %v659
      %735 = vmatpush1.msra.mxu0 %v658
      %736 = vmatprep.subr.mxu0 %v655
      %737 = vmatpush1.msra.mxu0 %v654
      %738 = vmatprep.subr.mxu0 %v651
      %739 = vmatpush1.msra.mxu0 %v650
      %740 = vmatprep.subr.mxu0 %v647
      %741 = vmatpush1.msra.mxu0 %v646
      %742 = vmatprep.subr.mxu0 %v643
      %743 = vmatpush1.msra.mxu0 %v642
      %744 = vmatprep.subr.mxu0 0.0
      %745 = vmatpush2.msra.mxu0 0.0
      %746 = vmatprep.subr.mxu0 0.0
      %747 = vmatpush2.msra.mxu0 0.0
      %748 = vmatprep.subr.mxu0 0.0
      %749 = vmatpush2.msra.mxu0 0.0
      %750 = vmatprep.subr.mxu0 0.0
      %751 = vmatpush2.msra.mxu0 0.0
      %752 = vmatprep.subr.mxu0 0.0
      %753 = vmatpush2.msra.mxu0 0.0
      %754 = vmatprep.subr.mxu0 0.0
      %755 = vmatpush2.msra.mxu0 0.0
      %756 = vmatprep.subr.mxu0 0.0
      %757 = vmatpush2.msra.mxu0 0.0
      %758 = vmatprep.subr.mxu0 0.0
      %759 = vmatpush2.msra.mxu0 0.0
      %760 = vmatprep.subr.mxu0 0.0
      %761 = vmatpush2.msra.mxu0 0.0
      %762 = vmatprep.subr.mxu0 0.0
      %763 = vmatpush2.msra.mxu0 0.0
      %764 = vmatprep.subr.mxu0 0.0
      %765 = vmatpush2.msra.mxu0 0.0
      %766 = vmatprep.subr.mxu0 0.0
      %767 = vmatpush2.msra.mxu0 0.0
      %768 = vmatprep.subr.mxu0 0.0
      %769 = vmatpush2.msra.mxu0 0.0
      %770 = vmatprep.subr.mxu0 0.0
      %771 = vmatpush2.msra.mxu0 0.0
      %772 = vmatprep.subr.mxu0 0.0
      %773 = vmatpush2.msra.mxu0 0.0
      %774 = vmatprep.subr.mxu0 0.0
      %775 = vmatpush2.msra.mxu0 0.0
      %776 = vmatprep.mubr.f32.mxu0 0.0
      %777 = vmatmul.mubr.f32.gmra.mxu0 0.0
      %v778 = vpop.f32.mrf.mxu0
      %v779 = vadd.f32 %v708, %v778
      %v780 = vpop.f32.mrf.mxu0
      %v781 = vadd.f32 %v709, %v780
      %782 = vdwg.mxu0
      %783 = vmatprep.subr.mxu0 %v705
      %784 = vmatpush1.msra.mxu0 %v704
      %785 = vmatprep.subr.mxu0 %v701
      %786 = vmatpush1.msra.mxu0 %v700
      %787 = vmatprep.subr.mxu0 %v697
      %788 = vmatpush1.msra.mxu0 %v696
      %789 = vmatprep.subr.mxu0 %v693
      %790 = vmatpush1.msra.mxu0 %v692
      %791 = vmatprep.subr.mxu0 %v689
      %792 = vmatpush1.msra.mxu0 %v688
      %793 = vmatprep.subr.mxu0 %v685
      %794 = vmatpush1.msra.mxu0 %v684
      %795 = vmatprep.subr.mxu0 %v681
      %796 = vmatpush1.msra.mxu0 %v680
      %797 = vmatprep.subr.mxu0 %v677
      %798 = vmatpush1.msra.mxu0 %v676
      %799 = vmatprep.subr.mxu0 %v673
      %800 = vmatpush1.msra.mxu0 %v672
      %801 = vmatprep.subr.mxu0 %v669
      %802 = vmatpush1.msra.mxu0 %v668
      %803 = vmatprep.subr.mxu0 %v665
      %804 = vmatpush1.msra.mxu0 %v664
      %805 = vmatprep.subr.mxu0 %v661
      %806 = vmatpush1.msra.mxu0 %v660
      %807 = vmatprep.subr.mxu0 %v657
      %808 = vmatpush1.msra.mxu0 %v656
      %809 = vmatprep.subr.mxu0 %v653
      %810 = vmatpush1.msra.mxu0 %v652
      %811 = vmatprep.subr.mxu0 %v649
      %812 = vmatpush1.msra.mxu0 %v648
      %813 = vmatprep.subr.mxu0 %v645
      %814 = vmatpush1.msra.mxu0 %v644
      %815 = vmatprep.subr.mxu0 0.0
      %816 = vmatpush2.msra.mxu0 0.0
      %817 = vmatprep.subr.mxu0 0.0
      %818 = vmatpush2.msra.mxu0 0.0
      %819 = vmatprep.subr.mxu0 0.0
      %820 = vmatpush2.msra.mxu0 0.0
      %821 = vmatprep.subr.mxu0 0.0
      %822 = vmatpush2.msra.mxu0 0.0
      %823 = vmatprep.subr.mxu0 0.0
      %824 = vmatpush2.msra.mxu0 0.0
      %825 = vmatprep.subr.mxu0 0.0
      %826 = vmatpush2.msra.mxu0 0.0
      %827 = vmatprep.subr.mxu0 0.0
      %828 = vmatpush2.msra.mxu0 0.0
      %829 = vmatprep.subr.mxu0 0.0
      %830 = vmatpush2.msra.mxu0 0.0
      %831 = vmatprep.subr.mxu0 0.0
      %832 = vmatpush2.msra.mxu0 0.0
      %833 = vmatprep.subr.mxu0 0.0
      %834 = vmatpush2.msra.mxu0 0.0
      %835 = vmatprep.subr.mxu0 0.0
      %836 = vmatpush2.msra.mxu0 0.0
      %837 = vmatprep.subr.mxu0 0.0
      %838 = vmatpush2.msra.mxu0 0.0
      %839 = vmatprep.subr.mxu0 0.0
      %840 = vmatpush2.msra.mxu0 0.0
      %841 = vmatprep.subr.mxu0 0.0
      %842 = vmatpush2.msra.mxu0 0.0
      %843 = vmatprep.subr.mxu0 0.0
      %844 = vmatpush2.msra.mxu0 0.0
      %845 = vmatprep.subr.mxu0 0.0
      %846 = vmatpush2.msra.mxu0 0.0
      %847 = vmatprep.mubr.f32.mxu0 0.0
      %848 = vmatmul.mubr.f32.gmra.mxu0 0.0
      %v849 = vpop.f32.mrf.mxu0
      %v850 = vadd.f32 %v710, %v849
      %v851 = vpop.f32.mrf.mxu0
      %v852 = vadd.f32 %v711, %v851
      %853 = vdwg.mxu0
      %v855 = vlaneseq
      %v856 = vshrl.u32 %v855, 7
      %v857 = vsub.s32 0, %v856
      %v858 = vrot.slane %v706, %v857
      %v859 = vlaneseq
      %v860 = vshrl.u32 %v859, 7
      %v861 = vsub.s32 1, %v860
      %v862 = vrot.slane %v706, %v861
      %v863 = vlaneseq
      %v864 = vshrl.u32 %v863, 7
      %v865 = vsub.s32 2, %v864
      %v866 = vrot.slane %v706, %v865
      %v867 = vlaneseq
      %v868 = vshrl.u32 %v867, 7
      %v869 = vsub.s32 3, %v868
      %v870 = vrot.slane %v706, %v869
      %v875 = vadd.f32 %v779, %v858
      %v876 = vadd.f32 %v781, %v862
      %v877 = vadd.f32 %v850, %v866
      %v878 = vadd.f32 %v852, %v870
      %v879 = vxor.u32 %v875, 2147483648
      %v880 = vmul.f32 %v879, 1.442695
      %v881 = vpow.pop %v880
      %v882 = vadd.f32 %v881, 1.0
      %v883 = vrcp.pop %v882
      %v884 = vmul.f32 1.0, %v883
      %v885 = vxor.u32 %v876, 2147483648
      %v886 = vmul.f32 %v885, 1.442695
      %v887 = vpow.pop %v886
      %v888 = vadd.f32 %v887, 1.0
      %v889 = vrcp.pop %v888
      %v890 = vmul.f32 1.0, %v889
      %v891 = vtanh.pop %v877
      %v892 = vxor.u32 %v878, 2147483648
      %v893 = vmul.f32 %v892, 1.442695
      %v894 = vpow.pop %v893
      %v895 = vadd.f32 %v894, 1.0
      %v896 = vrcp.pop %v895
      %v897 = vmul.f32 1.0, %v896
      %v898 = vmul.f32 %v890, 0.0
      %v899 = vmul.f32 %v884, %v891
      %v900 = vadd.f32 %v898, %v899
      %v901 = vtanh.pop %v900
      %v902 = vmul.f32 %v897, %v901
      %vm903 = vcmp.gt.f32.partialorder %v707, 0.0
      %v904 = vsel %vm903, 1, 0
      %v905 = vcvt.s32.f32 %v904
      %907 = vset.pattern.permute.xlu0 0
      %908 = vperm.xlu0 %907, %v905
      %v909 = vpop.permute.xlu0 %908
      %v911 = vmul.f32 %v909, %v902
      %v912 = vsub.f32 1.0, %v905
      %914 = vset.pattern.permute.xlu0 0
      %915 = vperm.xlu0 %914, %v912
      %v916 = vpop.permute.xlu0 %915
      %v918 = vmul.f32 %v916, 0.0
      %v919 = vadd.f32 %v911, %v918
      %v920 = vmul.f32 %v909, %v900
      %v921 = vadd.f32 %v920, %v918
      %v922 = vadd.f32 %v911, 0.0
      %s923 = scalar_lea.vmem %s628, 32
      %v924 = vld [vmem:[%s923] sm:$0xff]
      %v925 = vld [vmem:[%s923 + $0x8] sm:$0xff]
      %v926 = vld [vmem:[%s923 + $0x10] sm:$0xff]
      %v927 = vld [vmem:[%s923 + $0x18] sm:$0xff]
      %928 = vmatprep.subr.mxu0 %v703
      %929 = vmatpush1.msra.mxu0 %v702
      %930 = vmatprep.subr.mxu0 %v699
      %931 = vmatpush1.msra.mxu0 %v698
      %932 = vmatprep.subr.mxu0 %v695
      %933 = vmatpush1.msra.mxu0 %v694
      %934 = vmatprep.subr.mxu0 %v691
      %935 = vmatpush1.msra.mxu0 %v690
      %936 = vmatprep.subr.mxu0 %v687
      %937 = vmatpush1.msra.mxu0 %v686
      %938 = vmatprep.subr.mxu0 %v683
      %939 = vmatpush1.msra.mxu0 %v682
      %940 = vmatprep.subr.mxu0 %v679
      %941 = vmatpush1.msra.mxu0 %v678
      %942 = vmatprep.subr.mxu0 %v675
      %943 = vmatpush1.msra.mxu0 %v674
      %944 = vmatprep.subr.mxu0 %v671
      %945 = vmatpush1.msra.mxu0 %v670
      %946 = vmatprep.subr.mxu0 %v667
      %947 = vmatpush1.msra.mxu0 %v666
      %948 = vmatprep.subr.mxu0 %v663
      %949 = vmatpush1.msra.mxu0 %v662
      %950 = vmatprep.subr.mxu0 %v659
      %951 = vmatpush1.msra.mxu0 %v658
      %952 = vmatprep.subr.mxu0 %v655
      %953 = vmatpush1.msra.mxu0 %v654
      %954 = vmatprep.subr.mxu0 %v651
      %955 = vmatpush1.msra.mxu0 %v650
      %956 = vmatprep.subr.mxu0 %v647
      %957 = vmatpush1.msra.mxu0 %v646
      %958 = vmatprep.subr.mxu0 %v643
      %959 = vmatpush1.msra.mxu0 %v642
      %960 = vmatprep.subr.mxu0 0.0
      %961 = vmatpush2.msra.mxu0 0.0
      %962 = vmatprep.subr.mxu0 0.0
      %963 = vmatpush2.msra.mxu0 0.0
      %964 = vmatprep.subr.mxu0 0.0
      %965 = vmatpush2.msra.mxu0 0.0
      %966 = vmatprep.subr.mxu0 0.0
      %967 = vmatpush2.msra.mxu0 0.0
      %968 = vmatprep.subr.mxu0 0.0
      %969 = vmatpush2.msra.mxu0 0.0
      %970 = vmatprep.subr.mxu0 0.0
      %971 = vmatpush2.msra.mxu0 0.0
      %972 = vmatprep.subr.mxu0 0.0
      %973 = vmatpush2.msra.mxu0 0.0
      %974 = vmatprep.subr.mxu0 0.0
      %975 = vmatpush2.msra.mxu0 0.0
      %976 = vmatprep.subr.mxu0 0.0
      %977 = vmatpush2.msra.mxu0 0.0
      %978 = vmatprep.subr.mxu0 0.0
      %979 = vmatpush2.msra.mxu0 0.0
      %980 = vmatprep.subr.mxu0 0.0
      %981 = vmatpush2.msra.mxu0 0.0
      %982 = vmatprep.subr.mxu0 0.0
      %983 = vmatpush2.msra.mxu0 0.0
      %984 = vmatprep.subr.mxu0 0.0
      %985 = vmatpush2.msra.mxu0 0.0
      %986 = vmatprep.subr.mxu0 0.0
      %987 = vmatpush2.msra.mxu0 0.0
      %988 = vmatprep.subr.mxu0 0.0
      %989 = vmatpush2.msra.mxu0 0.0
      %990 = vmatprep.subr.mxu0 0.0
      %991 = vmatpush2.msra.mxu0 0.0
      %992 = vmatprep.mubr.f32.mxu0 0.0
      %993 = vmatmul.mubr.f32.gmra.mxu0 %v919
      %v994 = vpop.f32.mrf.mxu0
      %v995 = vadd.f32 %v924, %v994
      %v996 = vpop.f32.mrf.mxu0
      %v997 = vadd.f32 %v925, %v996
      %998 = vdwg.mxu0
      %999 = vmatprep.subr.mxu0 %v705
      %1000 = vmatpush1.msra.mxu0 %v704
      %1001 = vmatprep.subr.mxu0 %v701
      %1002 = vmatpush1.msra.mxu0 %v700
      %1003 = vmatprep.subr.mxu0 %v697
      %1004 = vmatpush1.msra.mxu0 %v696
      %1005 = vmatprep.subr.mxu0 %v693
      %1006 = vmatpush1.msra.mxu0 %v692
      %1007 = vmatprep.subr.mxu0 %v689
      %1008 = vmatpush1.msra.mxu0 %v688
      %1009 = vmatprep.subr.mxu0 %v685
      %1010 = vmatpush1.msra.mxu0 %v684
      %1011 = vmatprep.subr.mxu0 %v681
      %1012 = vmatpush1.msra.mxu0 %v680
      %1013 = vmatprep.subr.mxu0 %v677
      %1014 = vmatpush1.msra.mxu0 %v676
      %1015 = vmatprep.subr.mxu0 %v673
      %1016 = vmatpush1.msra.mxu0 %v672
      %1017 = vmatprep.subr.mxu0 %v669
      %1018 = vmatpush1.msra.mxu0 %v668
      %1019 = vmatprep.subr.mxu0 %v665
      %1020 = vmatpush1.msra.mxu0 %v664
      %1021 = vmatprep.subr.mxu0 %v661
      %1022 = vmatpush1.msra.mxu0 %v660
      %1023 = vmatprep.subr.mxu0 %v657
      %1024 = vmatpush1.msra.mxu0 %v656
      %1025 = vmatprep.subr.mxu0 %v653
      %1026 = vmatpush1.msra.mxu0 %v652
      %1027 = vmatprep.subr.mxu0 %v649
      %1028 = vmatpush1.msra.mxu0 %v648
      %1029 = vmatprep.subr.mxu0 %v645
      %1030 = vmatpush1.msra.mxu0 %v644
      %1031 = vmatprep.subr.mxu0 0.0
      %1032 = vmatpush2.msra.mxu0 0.0
      %1033 = vmatprep.subr.mxu0 0.0
      %1034 = vmatpush2.msra.mxu0 0.0
      %1035 = vmatprep.subr.mxu0 0.0
      %1036 = vmatpush2.msra.mxu0 0.0
      %1037 = vmatprep.subr.mxu0 0.0
      %1038 = vmatpush2.msra.mxu0 0.0
      %1039 = vmatprep.subr.mxu0 0.0
      %1040 = vmatpush2.msra.mxu0 0.0
      %1041 = vmatprep.subr.mxu0 0.0
      %1042 = vmatpush2.msra.mxu0 0.0
      %1043 = vmatprep.subr.mxu0 0.0
      %1044 = vmatpush2.msra.mxu0 0.0
      %1045 = vmatprep.subr.mxu0 0.0
      %1046 = vmatpush2.msra.mxu0 0.0
      %1047 = vmatprep.subr.mxu0 0.0
      %1048 = vmatpush2.msra.mxu0 0.0
      %1049 = vmatprep.subr.mxu0 0.0
      %1050 = vmatpush2.msra.mxu0 0.0
      %1051 = vmatprep.subr.mxu0 0.0
      %1052 = vmatpush2.msra.mxu0 0.0
      %1053 = vmatprep.subr.mxu0 0.0
      %1054 = vmatpush2.msra.mxu0 0.0
      %1055 = vmatprep.subr.mxu0 0.0
      %1056 = vmatpush2.msra.mxu0 0.0
      %1057 = vmatprep.subr.mxu0 0.0
      %1058 = vmatpush2.msra.mxu0 0.0
      %1059 = vmatprep.subr.mxu0 0.0
      %1060 = vmatpush2.msra.mxu0 0.0
      %1061 = vmatprep.subr.mxu0 0.0
      %1062 = vmatpush2.msra.mxu0 0.0
      %1063 = vmatprep.mubr.f32.mxu0 0.0
      %1064 = vmatmul.mubr.f32.gmra.mxu0 %v919
      %v1065 = vpop.f32.mrf.mxu0
      %v1066 = vadd.f32 %v926, %v1065
      %v1067 = vpop.f32.mrf.mxu0
      %v1068 = vadd.f32 %v927, %v1067
      %1069 = vdwg.mxu0
      %v1070 = vadd.f32 %v995, %v858
      %v1071 = vadd.f32 %v997, %v862
      %v1072 = vadd.f32 %v1066, %v866
      %v1073 = vadd.f32 %v1068, %v870
      %v1074 = vxor.u32 %v1070, 2147483648
      %v1075 = vmul.f32 %v1074, 1.442695
      %v1076 = vpow.pop %v1075
      %v1077 = vadd.f32 %v1076, 1.0
      %v1078 = vrcp.pop %v1077
      %v1079 = vmul.f32 1.0, %v1078
      %v1080 = vxor.u32 %v1071, 2147483648
      %v1081 = vmul.f32 %v1080, 1.442695
      %v1082 = vpow.pop %v1081
      %v1083 = vadd.f32 %v1082, 1.0
      %v1084 = vrcp.pop %v1083
      %v1085 = vmul.f32 1.0, %v1084
      %v1086 = vtanh.pop %v1072
      %v1087 = vxor.u32 %v1073, 2147483648
      %v1088 = vmul.f32 %v1087, 1.442695
      %v1089 = vpow.pop %v1088
      %v1090 = vadd.f32 %v1089, 1.0
      %v1091 = vrcp.pop %v1090
      %v1092 = vmul.f32 1.0, %v1091
      %v1093 = vmul.f32 %v1085, %v921
      %v1094 = vmul.f32 %v1079, %v1086
      %v1095 = vadd.f32 %v1093, %v1094
      %v1096 = vtanh.pop %v1095
      %v1097 = vmul.f32 %v1092, %v1096
      %vm1098 = vcmp.gt.f32.partialorder %v707, 1.0
      %v1099 = vsel %vm1098, 1, 0
      %v1100 = vcvt.s32.f32 %v1099
      %1102 = vset.pattern.permute.xlu0 0
      %1103 = vperm.xlu0 %1102, %v1100
      %v1104 = vpop.permute.xlu0 %1103
      %v1106 = vmul.f32 %v1104, %v1097
      %v1107 = vsub.f32 1.0, %v1100
      %1109 = vset.pattern.permute.xlu0 0
      %1110 = vperm.xlu0 %1109, %v1107
      %v1111 = vpop.permute.xlu0 %1110
      %v1113 = vmul.f32 %v1111, %v919
      %v1114 = vadd.f32 %v1106, %v1113
      %v1115 = vmul.f32 %v1104, %v1095
      %v1116 = vmul.f32 %v1111, %v921
      %v1117 = vadd.f32 %v1115, %v1116
      %v1118 = vadd.f32 %v922, %v1106
      %s1119 = scalar_lea.vmem %s628, 64
      %v1120 = vld [vmem:[%s1119] sm:$0xff]
      %v1121 = vld [vmem:[%s1119 + $0x8] sm:$0xff]
      %v1122 = vld [vmem:[%s1119 + $0x10] sm:$0xff]
      %v1123 = vld [vmem:[%s1119 + $0x18] sm:$0xff]
      %1124 = vmatprep.subr.mxu0 %v703
      %1125 = vmatpush1.msra.mxu0 %v702
      %1126 = vmatprep.subr.mxu0 %v699
      %1127 = vmatpush1.msra.mxu0 %v698
      %1128 = vmatprep.subr.mxu0 %v695
      %1129 = vmatpush1.msra.mxu0 %v694
      %1130 = vmatprep.subr.mxu0 %v691
      %1131 = vmatpush1.msra.mxu0 %v690
      %1132 = vmatprep.subr.mxu0 %v687
      %1133 = vmatpush1.msra.mxu0 %v686
      %1134 = vmatprep.subr.mxu0 %v683
      %1135 = vmatpush1.msra.mxu0 %v682
      %1136 = vmatprep.subr.mxu0 %v679
      %1137 = vmatpush1.msra.mxu0 %v678
      %1138 = vmatprep.subr.mxu0 %v675
      %1139 = vmatpush1.msra.mxu0 %v674
      %1140 = vmatprep.subr.mxu0 %v671
      %1141 = vmatpush1.msra.mxu0 %v670
      %1142 = vmatprep.subr.mxu0 %v667
      %1143 = vmatpush1.msra.mxu0 %v666
      %1144 = vmatprep.subr.mxu0 %v663
      %1145 = vmatpush1.msra.mxu0 %v662
      %1146 = vmatprep.subr.mxu0 %v659
      %1147 = vmatpush1.msra.mxu0 %v658
      %1148 = vmatprep.subr.mxu0 %v655
      %1149 = vmatpush1.msra.mxu0 %v654
      %1150 = vmatprep.subr.mxu0 %v651
      %1151 = vmatpush1.msra.mxu0 %v650
      %1152 = vmatprep.subr.mxu0 %v647
      %1153 = vmatpush1.msra.mxu0 %v646
      %1154 = vmatprep.subr.mxu0 %v643
      %1155 = vmatpush1.msra.mxu0 %v642
      %1156 = vmatprep.subr.mxu0 0.0
      %1157 = vmatpush2.msra.mxu0 0.0
      %1158 = vmatprep.subr.mxu0 0.0
      %1159 = vmatpush2.msra.mxu0 0.0
      %1160 = vmatprep.subr.mxu0 0.0
      %1161 = vmatpush2.msra.mxu0 0.0
      %1162 = vmatprep.subr.mxu0 0.0
      %1163 = vmatpush2.msra.mxu0 0.0
      %1164 = vmatprep.subr.mxu0 0.0
      %1165 = vmatpush2.msra.mxu0 0.0
      %1166 = vmatprep.subr.mxu0 0.0
      %1167 = vmatpush2.msra.mxu0 0.0
      %1168 = vmatprep.subr.mxu0 0.0
      %1169 = vmatpush2.msra.mxu0 0.0
      %1170 = vmatprep.subr.mxu0 0.0
      %1171 = vmatpush2.msra.mxu0 0.0
      %1172 = vmatprep.subr.mxu0 0.0
      %1173 = vmatpush2.msra.mxu0 0.0
      %1174 = vmatprep.subr.mxu0 0.0
      %1175 = vmatpush2.msra.mxu0 0.0
      %1176 = vmatprep.subr.mxu0 0.0
      %1177 = vmatpush2.msra.mxu0 0.0
      %1178 = vmatprep.subr.mxu0 0.0
      %1179 = vmatpush2.msra.mxu0 0.0
      %1180 = vmatprep.subr.mxu0 0.0
      %1181 = vmatpush2.msra.mxu0 0.0
      %1182 = vmatprep.subr.mxu0 0.0
      %1183 = vmatpush2.msra.mxu0 0.0
      %1184 = vmatprep.subr.mxu0 0.0
      %1185 = vmatpush2.msra.mxu0 0.0
      %1186 = vmatprep.subr.mxu0 0.0
      %1187 = vmatpush2.msra.mxu0 0.0
      %1188 = vmatprep.mubr.f32.mxu0 0.0
      %1189 = vmatmul.mubr.f32.gmra.mxu0 %v1114
      %v1190 = vpop.f32.mrf.mxu0
      %v1191 = vadd.f32 %v1120, %v1190
      %v1192 = vpop.f32.mrf.mxu0
      %v1193 = vadd.f32 %v1121, %v1192
      %1194 = vdwg.mxu0
      %1195 = vmatprep.subr.mxu0 %v705
      %1196 = vmatpush1.msra.mxu0 %v704
      %1197 = vmatprep.subr.mxu0 %v701
      %1198 = vmatpush1.msra.mxu0 %v700
      %1199 = vmatprep.subr.mxu0 %v697
      %1200 = vmatpush1.msra.mxu0 %v696
      %1201 = vmatprep.subr.mxu0 %v693
      %1202 = vmatpush1.msra.mxu0 %v692
      %1203 = vmatprep.subr.mxu0 %v689
      %1204 = vmatpush1.msra.mxu0 %v688
      %1205 = vmatprep.subr.mxu0 %v685
      %1206 = vmatpush1.msra.mxu0 %v684
      %1207 = vmatprep.subr.mxu0 %v681
      %1208 = vmatpush1.msra.mxu0 %v680
      %1209 = vmatprep.subr.mxu0 %v677
      %1210 = vmatpush1.msra.mxu0 %v676
      %1211 = vmatprep.subr.mxu0 %v673
      %1212 = vmatpush1.msra.mxu0 %v672
      %1213 = vmatprep.subr.mxu0 %v669
      %1214 = vmatpush1.msra.mxu0 %v668
      %1215 = vmatprep.subr.mxu0 %v665
      %1216 = vmatpush1.msra.mxu0 %v664
      %1217 = vmatprep.subr.mxu0 %v661
      %1218 = vmatpush1.msra.mxu0 %v660
      %1219 = vmatprep.subr.mxu0 %v657
      %1220 = vmatpush1.msra.mxu0 %v656
      %1221 = vmatprep.subr.mxu0 %v653
      %1222 = vmatpush1.msra.mxu0 %v652
      %1223 = vmatprep.subr.mxu0 %v649
      %1224 = vmatpush1.msra.mxu0 %v648
      %1225 = vmatprep.subr.mxu0 %v645
      %1226 = vmatpush1.msra.mxu0 %v644
      %1227 = vmatprep.subr.mxu0 0.0
      %1228 = vmatpush2.msra.mxu0 0.0
      %1229 = vmatprep.subr.mxu0 0.0
      %1230 = vmatpush2.msra.mxu0 0.0
      %1231 = vmatprep.subr.mxu0 0.0
      %1232 = vmatpush2.msra.mxu0 0.0
      %1233 = vmatprep.subr.mxu0 0.0
      %1234 = vmatpush2.msra.mxu0 0.0
      %1235 = vmatprep.subr.mxu0 0.0
      %1236 = vmatpush2.msra.mxu0 0.0
      %1237 = vmatprep.subr.mxu0 0.0
      %1238 = vmatpush2.msra.mxu0 0.0
      %1239 = vmatprep.subr.mxu0 0.0
      %1240 = vmatpush2.msra.mxu0 0.0
      %1241 = vmatprep.subr.mxu0 0.0
      %1242 = vmatpush2.msra.mxu0 0.0
      %1243 = vmatprep.subr.mxu0 0.0
      %1244 = vmatpush2.msra.mxu0 0.0
      %1245 = vmatprep.subr.mxu0 0.0
      %1246 = vmatpush2.msra.mxu0 0.0
      %1247 = vmatprep.subr.mxu0 0.0
      %1248 = vmatpush2.msra.mxu0 0.0
      %1249 = vmatprep.subr.mxu0 0.0
      %1250 = vmatpush2.msra.mxu0 0.0
      %1251 = vmatprep.subr.mxu0 0.0
      %1252 = vmatpush2.msra.mxu0 0.0
      %1253 = vmatprep.subr.mxu0 0.0
      %1254 = vmatpush2.msra.mxu0 0.0
      %1255 = vmatprep.subr.mxu0 0.0
      %1256 = vmatpush2.msra.mxu0 0.0
      %1257 = vmatprep.subr.mxu0 0.0
      %1258 = vmatpush2.msra.mxu0 0.0
      %1259 = vmatprep.mubr.f32.mxu0 0.0
      %1260 = vmatmul.mubr.f32.gmra.mxu0 %v1114
      %v1261 = vpop.f32.mrf.mxu0
      %v1262 = vadd.f32 %v1122, %v1261
      %v1263 = vpop.f32.mrf.mxu0
      %v1264 = vadd.f32 %v1123, %v1263
      %1265 = vdwg.mxu0
      %v1266 = vadd.f32 %v1191, %v858
      %v1267 = vadd.f32 %v1193, %v862
      %v1268 = vadd.f32 %v1262, %v866
      %v1269 = vadd.f32 %v1264, %v870
      %v1270 = vxor.u32 %v1266, 2147483648
      %v1271 = vmul.f32 %v1270, 1.442695
      %v1272 = vpow.pop %v1271
      %v1273 = vadd.f32 %v1272, 1.0
      %v1274 = vrcp.pop %v1273
      %v1275 = vmul.f32 1.0, %v1274
      %v1276 = vxor.u32 %v1267, 2147483648
      %v1277 = vmul.f32 %v1276, 1.442695
      %v1278 = vpow.pop %v1277
      %v1279 = vadd.f32 %v1278, 1.0
      %v1280 = vrcp.pop %v1279
      %v1281 = vmul.f32 1.0, %v1280
      %v1282 = vtanh.pop %v1268
      %v1283 = vxor.u32 %v1269, 2147483648
      %v1284 = vmul.f32 %v1283, 1.442695
      %v1285 = vpow.pop %v1284
      %v1286 = vadd.f32 %v1285, 1.0
      %v1287 = vrcp.pop %v1286
      %v1288 = vmul.f32 1.0, %v1287
      %v1289 = vmul.f32 %v1281, %v1117
      %v1290 = vmul.f32 %v1275, %v1282
      %v1291 = vadd.f32 %v1289, %v1290
      %v1292 = vtanh.pop %v1291
      %v1293 = vmul.f32 %v1288, %v1292
      %vm1294 = vcmp.gt.f32.partialorder %v707, 2.0
      %v1295 = vsel %vm1294, 1, 0
      %v1296 = vcvt.s32.f32 %v1295
      %1298 = vset.pattern.permute.xlu0 0
      %1299 = vperm.xlu0 %1298, %v1296
      %v1300 = vpop.permute.xlu0 %1299
      %v1302 = vmul.f32 %v1300, %v1293
      %v1303 = vsub.f32 1.0, %v1296
      %1305 = vset.pattern.permute.xlu0 0
      %1306 = vperm.xlu0 %1305, %v1303
      %v1307 = vpop.permute.xlu0 %1306
      %v1309 = vmul.f32 %v1307, %v1114
      %v1310 = vadd.f32 %v1302, %v1309
      %v1311 = vmul.f32 %v1300, %v1291
      %v1312 = vmul.f32 %v1307, %v1117
      %v1313 = vadd.f32 %v1311, %v1312
      %v1314 = vadd.f32 %v1118, %v1302
      %s1315 = scalar_lea.vmem %s628, 96
      %v1316 = vld [vmem:[%s1315] sm:$0xff]
      %v1317 = vld [vmem:[%s1315 + $0x8] sm:$0xff]
      %v1318 = vld [vmem:[%s1315 + $0x10] sm:$0xff]
      %v1319 = vld [vmem:[%s1315 + $0x18] sm:$0xff]
      %1320 = vmatprep.subr.mxu0 %v703
      %1321 = vmatpush1.msra.mxu0 %v702
      %1322 = vmatprep.subr.mxu0 %v699
      %1323 = vmatpush1.msra.mxu0 %v698
      %1324 = vmatprep.subr.mxu0 %v695
      %1325 = vmatpush1.msra.mxu0 %v694
      %1326 = vmatprep.subr.mxu0 %v691
      %1327 = vmatpush1.msra.mxu0 %v690
      %1328 = vmatprep.subr.mxu0 %v687
      %1329 = vmatpush1.msra.mxu0 %v686
      %1330 = vmatprep.subr.mxu0 %v683
      %1331 = vmatpush1.msra.mxu0 %v682
      %1332 = vmatprep.subr.mxu0 %v679
      %1333 = vmatpush1.msra.mxu0 %v678
      %1334 = vmatprep.subr.mxu0 %v675
      %1335 = vmatpush1.msra.mxu0 %v674
      %1336 = vmatprep.subr.mxu0 %v671
      %1337 = vmatpush1.msra.mxu0 %v670
      %1338 = vmatprep.subr.mxu0 %v667
      %1339 = vmatpush1.msra.mxu0 %v666
      %1340 = vmatprep.subr.mxu0 %v663
      %1341 = vmatpush1.msra.mxu0 %v662
      %1342 = vmatprep.subr.mxu0 %v659
      %1343 = vmatpush1.msra.mxu0 %v658
      %1344 = vmatprep.subr.mxu0 %v655
      %1345 = vmatpush1.msra.mxu0 %v654
      %1346 = vmatprep.subr.mxu0 %v651
      %1347 = vmatpush1.msra.mxu0 %v650
      %1348 = vmatprep.subr.mxu0 %v647
      %1349 = vmatpush1.msra.mxu0 %v646
      %1350 = vmatprep.subr.mxu0 %v643
      %1351 = vmatpush1.msra.mxu0 %v642
      %1352 = vmatprep.subr.mxu0 0.0
      %1353 = vmatpush2.msra.mxu0 0.0
      %1354 = vmatprep.subr.mxu0 0.0
      %1355 = vmatpush2.msra.mxu0 0.0
      %1356 = vmatprep.subr.mxu0 0.0
      %1357 = vmatpush2.msra.mxu0 0.0
      %1358 = vmatprep.subr.mxu0 0.0
      %1359 = vmatpush2.msra.mxu0 0.0
      %1360 = vmatprep.subr.mxu0 0.0
      %1361 = vmatpush2.msra.mxu0 0.0
      %1362 = vmatprep.subr.mxu0 0.0
      %1363 = vmatpush2.msra.mxu0 0.0
      %1364 = vmatprep.subr.mxu0 0.0
      %1365 = vmatpush2.msra.mxu0 0.0
      %1366 = vmatprep.subr.mxu0 0.0
      %1367 = vmatpush2.msra.mxu0 0.0
      %1368 = vmatprep.subr.mxu0 0.0
      %1369 = vmatpush2.msra.mxu0 0.0
      %1370 = vmatprep.subr.mxu0 0.0
      %1371 = vmatpush2.msra.mxu0 0.0
      %1372 = vmatprep.subr.mxu0 0.0
      %1373 = vmatpush2.msra.mxu0 0.0
      %1374 = vmatprep.subr.mxu0 0.0
      %1375 = vmatpush2.msra.mxu0 0.0
      %1376 = vmatprep.subr.mxu0 0.0
      %1377 = vmatpush2.msra.mxu0 0.0
      %1378 = vmatprep.subr.mxu0 0.0
      %1379 = vmatpush2.msra.mxu0 0.0
      %1380 = vmatprep.subr.mxu0 0.0
      %1381 = vmatpush2.msra.mxu0 0.0
      %1382 = vmatprep.subr.mxu0 0.0
      %1383 = vmatpush2.msra.mxu0 0.0
      %1384 = vmatprep.mubr.f32.mxu0 0.0
      %1385 = vmatmul.mubr.f32.gmra.mxu0 %v1310
      %v1386 = vpop.f32.mrf.mxu0
      %v1387 = vadd.f32 %v1316, %v1386
      %v1388 = vpop.f32.mrf.mxu0
      %v1389 = vadd.f32 %v1317, %v1388
      %1390 = vdwg.mxu0
      %1391 = vmatprep.subr.mxu0 %v705
      %1392 = vmatpush1.msra.mxu0 %v704
      %1393 = vmatprep.subr.mxu0 %v701
      %1394 = vmatpush1.msra.mxu0 %v700
      %1395 = vmatprep.subr.mxu0 %v697
      %1396 = vmatpush1.msra.mxu0 %v696
      %1397 = vmatprep.subr.mxu0 %v693
      %1398 = vmatpush1.msra.mxu0 %v692
      %1399 = vmatprep.subr.mxu0 %v689
      %1400 = vmatpush1.msra.mxu0 %v688
      %1401 = vmatprep.subr.mxu0 %v685
      %1402 = vmatpush1.msra.mxu0 %v684
      %1403 = vmatprep.subr.mxu0 %v681
      %1404 = vmatpush1.msra.mxu0 %v680
      %1405 = vmatprep.subr.mxu0 %v677
      %1406 = vmatpush1.msra.mxu0 %v676
      %1407 = vmatprep.subr.mxu0 %v673
      %1408 = vmatpush1.msra.mxu0 %v672
      %1409 = vmatprep.subr.mxu0 %v669
      %1410 = vmatpush1.msra.mxu0 %v668
      %1411 = vmatprep.subr.mxu0 %v665
      %1412 = vmatpush1.msra.mxu0 %v664
      %1413 = vmatprep.subr.mxu0 %v661
      %1414 = vmatpush1.msra.mxu0 %v660
      %1415 = vmatprep.subr.mxu0 %v657
      %1416 = vmatpush1.msra.mxu0 %v656
      %1417 = vmatprep.subr.mxu0 %v653
      %1418 = vmatpush1.msra.mxu0 %v652
      %1419 = vmatprep.subr.mxu0 %v649
      %1420 = vmatpush1.msra.mxu0 %v648
      %1421 = vmatprep.subr.mxu0 %v645
      %1422 = vmatpush1.msra.mxu0 %v644
      %1423 = vmatprep.subr.mxu0 0.0
      %1424 = vmatpush2.msra.mxu0 0.0
      %1425 = vmatprep.subr.mxu0 0.0
      %1426 = vmatpush2.msra.mxu0 0.0
      %1427 = vmatprep.subr.mxu0 0.0
      %1428 = vmatpush2.msra.mxu0 0.0
      %1429 = vmatprep.subr.mxu0 0.0
      %1430 = vmatpush2.msra.mxu0 0.0
      %1431 = vmatprep.subr.mxu0 0.0
      %1432 = vmatpush2.msra.mxu0 0.0
      %1433 = vmatprep.subr.mxu0 0.0
      %1434 = vmatpush2.msra.mxu0 0.0
      %1435 = vmatprep.subr.mxu0 0.0
      %1436 = vmatpush2.msra.mxu0 0.0
      %1437 = vmatprep.subr.mxu0 0.0
      %1438 = vmatpush2.msra.mxu0 0.0
      %1439 = vmatprep.subr.mxu0 0.0
      %1440 = vmatpush2.msra.mxu0 0.0
      %1441 = vmatprep.subr.mxu0 0.0
      %1442 = vmatpush2.msra.mxu0 0.0
      %1443 = vmatprep.subr.mxu0 0.0
      %1444 = vmatpush2.msra.mxu0 0.0
      %1445 = vmatprep.subr.mxu0 0.0
      %1446 = vmatpush2.msra.mxu0 0.0
      %1447 = vmatprep.subr.mxu0 0.0
      %1448 = vmatpush2.msra.mxu0 0.0
      %1449 = vmatprep.subr.mxu0 0.0
      %1450 = vmatpush2.msra.mxu0 0.0
      %1451 = vmatprep.subr.mxu0 0.0
      %1452 = vmatpush2.msra.mxu0 0.0
      %1453 = vmatprep.subr.mxu0 0.0
      %1454 = vmatpush2.msra.mxu0 0.0
      %1455 = vmatprep.mubr.f32.mxu0 0.0
      %1456 = vmatmul.mubr.f32.gmra.mxu0 %v1310
      %v1457 = vpop.f32.mrf.mxu0
      %v1458 = vadd.f32 %v1318, %v1457
      %v1459 = vpop.f32.mrf.mxu0
      %v1460 = vadd.f32 %v1319, %v1459
      %1461 = vdwg.mxu0
      %v1462 = vadd.f32 %v1387, %v858
      %v1463 = vadd.f32 %v1389, %v862
      %v1464 = vadd.f32 %v1458, %v866
      %v1465 = vadd.f32 %v1460, %v870
      %v1466 = vxor.u32 %v1462, 2147483648
      %v1467 = vmul.f32 %v1466, 1.442695
      %v1468 = vpow.pop %v1467
      %v1469 = vadd.f32 %v1468, 1.0
      %v1470 = vrcp.pop %v1469
      %v1471 = vmul.f32 1.0, %v1470
      %v1472 = vxor.u32 %v1463, 2147483648
      %v1473 = vmul.f32 %v1472, 1.442695
      %v1474 = vpow.pop %v1473
      %v1475 = vadd.f32 %v1474, 1.0
      %v1476 = vrcp.pop %v1475
      %v1477 = vmul.f32 1.0, %v1476
      %v1478 = vtanh.pop %v1464
      %v1479 = vxor.u32 %v1465, 2147483648
      %v1480 = vmul.f32 %v1479, 1.442695
      %v1481 = vpow.pop %v1480
      %v1482 = vadd.f32 %v1481, 1.0
      %v1483 = vrcp.pop %v1482
      %v1484 = vmul.f32 1.0, %v1483
      %v1485 = vmul.f32 %v1477, %v1313
      %v1486 = vmul.f32 %v1471, %v1478
      %v1487 = vadd.f32 %v1485, %v1486
      %v1488 = vtanh.pop %v1487
      %v1489 = vmul.f32 %v1484, %v1488
      %vm1490 = vcmp.gt.f32.partialorder %v707, 3.0
      %v1491 = vsel %vm1490, 1, 0
      %v1492 = vcvt.s32.f32 %v1491
      %1494 = vset.pattern.permute.xlu0 0
      %1495 = vperm.xlu0 %1494, %v1492
      %v1496 = vpop.permute.xlu0 %1495
      %v1498 = vmul.f32 %v1496, %v1489
      %v1499 = vsub.f32 1.0, %v1492
      %1501 = vset.pattern.permute.xlu0 0
      %1502 = vperm.xlu0 %1501, %v1499
      %v1503 = vpop.permute.xlu0 %1502
      %v1505 = vmul.f32 %v1503, %v1310
      %v1506 = vadd.f32 %v1498, %v1505
      %v1507 = vmul.f32 %v1496, %v1487
      %v1508 = vmul.f32 %v1503, %v1313
      %v1509 = vadd.f32 %v1507, %v1508
      %v1510 = vadd.f32 %v1314, %v1498
      %s1511 = scalar_lea.vmem %s628, 128
      %v1512 = vld [vmem:[%s1511] sm:$0xff]
      %v1513 = vld [vmem:[%s1511 + $0x8] sm:$0xff]
      %v1514 = vld [vmem:[%s1511 + $0x10] sm:$0xff]
      %v1515 = vld [vmem:[%s1511 + $0x18] sm:$0xff]
      %1516 = vmatprep.subr.mxu0 %v703
      %1517 = vmatpush1.msra.mxu0 %v702
      %1518 = vmatprep.subr.mxu0 %v699
      %1519 = vmatpush1.msra.mxu0 %v698
      %1520 = vmatprep.subr.mxu0 %v695
      %1521 = vmatpush1.msra.mxu0 %v694
      %1522 = vmatprep.subr.mxu0 %v691
      %1523 = vmatpush1.msra.mxu0 %v690
      %1524 = vmatprep.subr.mxu0 %v687
      %1525 = vmatpush1.msra.mxu0 %v686
      %1526 = vmatprep.subr.mxu0 %v683
      %1527 = vmatpush1.msra.mxu0 %v682
      %1528 = vmatprep.subr.mxu0 %v679
      %1529 = vmatpush1.msra.mxu0 %v678
      %1530 = vmatprep.subr.mxu0 %v675
      %1531 = vmatpush1.msra.mxu0 %v674
      %1532 = vmatprep.subr.mxu0 %v671
      %1533 = vmatpush1.msra.mxu0 %v670
      %1534 = vmatprep.subr.mxu0 %v667
      %1535 = vmatpush1.msra.mxu0 %v666
      %1536 = vmatprep.subr.mxu0 %v663
      %1537 = vmatpush1.msra.mxu0 %v662
      %1538 = vmatprep.subr.mxu0 %v659
      %1539 = vmatpush1.msra.mxu0 %v658
      %1540 = vmatprep.subr.mxu0 %v655
      %1541 = vmatpush1.msra.mxu0 %v654
      %1542 = vmatprep.subr.mxu0 %v651
      %1543 = vmatpush1.msra.mxu0 %v650
      %1544 = vmatprep.subr.mxu0 %v647
      %1545 = vmatpush1.msra.mxu0 %v646
      %1546 = vmatprep.subr.mxu0 %v643
      %1547 = vmatpush1.msra.mxu0 %v642
      %1548 = vmatprep.subr.mxu0 0.0
      %1549 = vmatpush2.msra.mxu0 0.0
      %1550 = vmatprep.subr.mxu0 0.0
      %1551 = vmatpush2.msra.mxu0 0.0
      %1552 = vmatprep.subr.mxu0 0.0
      %1553 = vmatpush2.msra.mxu0 0.0
      %1554 = vmatprep.subr.mxu0 0.0
      %1555 = vmatpush2.msra.mxu0 0.0
      %1556 = vmatprep.subr.mxu0 0.0
      %1557 = vmatpush2.msra.mxu0 0.0
      %1558 = vmatprep.subr.mxu0 0.0
      %1559 = vmatpush2.msra.mxu0 0.0
      %1560 = vmatprep.subr.mxu0 0.0
      %1561 = vmatpush2.msra.mxu0 0.0
      %1562 = vmatprep.subr.mxu0 0.0
      %1563 = vmatpush2.msra.mxu0 0.0
      %1564 = vmatprep.subr.mxu0 0.0
      %1565 = vmatpush2.msra.mxu0 0.0
      %1566 = vmatprep.subr.mxu0 0.0
      %1567 = vmatpush2.msra.mxu0 0.0
      %1568 = vmatprep.subr.mxu0 0.0
      %1569 = vmatpush2.msra.mxu0 0.0
      %1570 = vmatprep.subr.mxu0 0.0
      %1571 = vmatpush2.msra.mxu0 0.0
      %1572 = vmatprep.subr.mxu0 0.0
      %1573 = vmatpush2.msra.mxu0 0.0
      %1574 = vmatprep.subr.mxu0 0.0
      %1575 = vmatpush2.msra.mxu0 0.0
      %1576 = vmatprep.subr.mxu0 0.0
      %1577 = vmatpush2.msra.mxu0 0.0
      %1578 = vmatprep.subr.mxu0 0.0
      %1579 = vmatpush2.msra.mxu0 0.0
      %1580 = vmatprep.mubr.f32.mxu0 0.0
      %1581 = vmatmul.mubr.f32.gmra.mxu0 %v1506
      %v1582 = vpop.f32.mrf.mxu0
      %v1583 = vadd.f32 %v1512, %v1582
      %v1584 = vpop.f32.mrf.mxu0
      %v1585 = vadd.f32 %v1513, %v1584
      %1586 = vdwg.mxu0
      %1587 = vmatprep.subr.mxu0 %v705
      %1588 = vmatpush1.msra.mxu0 %v704
      %1589 = vmatprep.subr.mxu0 %v701
      %1590 = vmatpush1.msra.mxu0 %v700
      %1591 = vmatprep.subr.mxu0 %v697
      %1592 = vmatpush1.msra.mxu0 %v696
      %1593 = vmatprep.subr.mxu0 %v693
      %1594 = vmatpush1.msra.mxu0 %v692
      %1595 = vmatprep.subr.mxu0 %v689
      %1596 = vmatpush1.msra.mxu0 %v688
      %1597 = vmatprep.subr.mxu0 %v685
      %1598 = vmatpush1.msra.mxu0 %v684
      %1599 = vmatprep.subr.mxu0 %v681
      %1600 = vmatpush1.msra.mxu0 %v680
      %1601 = vmatprep.subr.mxu0 %v677
      %1602 = vmatpush1.msra.mxu0 %v676
      %1603 = vmatprep.subr.mxu0 %v673
      %1604 = vmatpush1.msra.mxu0 %v672
      %1605 = vmatprep.subr.mxu0 %v669
      %1606 = vmatpush1.msra.mxu0 %v668
      %1607 = vmatprep.subr.mxu0 %v665
      %1608 = vmatpush1.msra.mxu0 %v664
      %1609 = vmatprep.subr.mxu0 %v661
      %1610 = vmatpush1.msra.mxu0 %v660
      %1611 = vmatprep.subr.mxu0 %v657
      %1612 = vmatpush1.msra.mxu0 %v656
      %1613 = vmatprep.subr.mxu0 %v653
      %1614 = vmatpush1.msra.mxu0 %v652
      %1615 = vmatprep.subr.mxu0 %v649
      %1616 = vmatpush1.msra.mxu0 %v648
      %1617 = vmatprep.subr.mxu0 %v645
      %1618 = vmatpush1.msra.mxu0 %v644
      %1619 = vmatprep.subr.mxu0 0.0
      %1620 = vmatpush2.msra.mxu0 0.0
      %1621 = vmatprep.subr.mxu0 0.0
      %1622 = vmatpush2.msra.mxu0 0.0
      %1623 = vmatprep.subr.mxu0 0.0
      %1624 = vmatpush2.msra.mxu0 0.0
      %1625 = vmatprep.subr.mxu0 0.0
      %1626 = vmatpush2.msra.mxu0 0.0
      %1627 = vmatprep.subr.mxu0 0.0
      %1628 = vmatpush2.msra.mxu0 0.0
      %1629 = vmatprep.subr.mxu0 0.0
      %1630 = vmatpush2.msra.mxu0 0.0
      %1631 = vmatprep.subr.mxu0 0.0
      %1632 = vmatpush2.msra.mxu0 0.0
      %1633 = vmatprep.subr.mxu0 0.0
      %1634 = vmatpush2.msra.mxu0 0.0
      %1635 = vmatprep.subr.mxu0 0.0
      %1636 = vmatpush2.msra.mxu0 0.0
      %1637 = vmatprep.subr.mxu0 0.0
      %1638 = vmatpush2.msra.mxu0 0.0
      %1639 = vmatprep.subr.mxu0 0.0
      %1640 = vmatpush2.msra.mxu0 0.0
      %1641 = vmatprep.subr.mxu0 0.0
      %1642 = vmatpush2.msra.mxu0 0.0
      %1643 = vmatprep.subr.mxu0 0.0
      %1644 = vmatpush2.msra.mxu0 0.0
      %1645 = vmatprep.subr.mxu0 0.0
      %1646 = vmatpush2.msra.mxu0 0.0
      %1647 = vmatprep.subr.mxu0 0.0
      %1648 = vmatpush2.msra.mxu0 0.0
      %1649 = vmatprep.subr.mxu0 0.0
      %1650 = vmatpush2.msra.mxu0 0.0
      %1651 = vmatprep.mubr.f32.mxu0 0.0
      %1652 = vmatmul.mubr.f32.gmra.mxu0 %v1506
      %v1653 = vpop.f32.mrf.mxu0
      %v1654 = vadd.f32 %v1514, %v1653
      %v1655 = vpop.f32.mrf.mxu0
      %v1656 = vadd.f32 %v1515, %v1655
      %1657 = vdwg.mxu0
      %v1658 = vadd.f32 %v1583, %v858
      %v1659 = vadd.f32 %v1585, %v862
      %v1660 = vadd.f32 %v1654, %v866
      %v1661 = vadd.f32 %v1656, %v870
      %v1662 = vxor.u32 %v1658, 2147483648
      %v1663 = vmul.f32 %v1662, 1.442695
      %v1664 = vpow.pop %v1663
      %v1665 = vadd.f32 %v1664, 1.0
      %v1666 = vrcp.pop %v1665
      %v1667 = vmul.f32 1.0, %v1666
      %v1668 = vxor.u32 %v1659, 2147483648
      %v1669 = vmul.f32 %v1668, 1.442695
      %v1670 = vpow.pop %v1669
      %v1671 = vadd.f32 %v1670, 1.0
      %v1672 = vrcp.pop %v1671
      %v1673 = vmul.f32 1.0, %v1672
      %v1674 = vtanh.pop %v1660
      %v1675 = vxor.u32 %v1661, 2147483648
      %v1676 = vmul.f32 %v1675, 1.442695
      %v1677 = vpow.pop %v1676
      %v1678 = vadd.f32 %v1677, 1.0
      %v1679 = vrcp.pop %v1678
      %v1680 = vmul.f32 1.0, %v1679
      %v1681 = vmul.f32 %v1673, %v1509
      %v1682 = vmul.f32 %v1667, %v1674
      %v1683 = vadd.f32 %v1681, %v1682
      %v1684 = vtanh.pop %v1683
      %v1685 = vmul.f32 %v1680, %v1684
      %vm1686 = vcmp.gt.f32.partialorder %v707, 4.0
      %v1687 = vsel %vm1686, 1, 0
      %v1688 = vcvt.s32.f32 %v1687
      %1690 = vset.pattern.permute.xlu0 0
      %1691 = vperm.xlu0 %1690, %v1688
      %v1692 = vpop.permute.xlu0 %1691
      %v1694 = vmul.f32 %v1692, %v1685
      %v1695 = vsub.f32 1.0, %v1688
      %1697 = vset.pattern.permute.xlu0 0
      %1698 = vperm.xlu0 %1697, %v1695
      %v1699 = vpop.permute.xlu0 %1698
      %v1701 = vmul.f32 %v1699, %v1506
      %v1702 = vadd.f32 %v1694, %v1701
      %v1703 = vmul.f32 %v1692, %v1683
      %v1704 = vmul.f32 %v1699, %v1509
      %v1705 = vadd.f32 %v1703, %v1704
      %v1706 = vadd.f32 %v1510, %v1694
      %s1707 = scalar_lea.vmem %s628, 160
      %v1708 = vld [vmem:[%s1707] sm:$0xff]
      %v1709 = vld [vmem:[%s1707 + $0x8] sm:$0xff]
      %v1710 = vld [vmem:[%s1707 + $0x10] sm:$0xff]
      %v1711 = vld [vmem:[%s1707 + $0x18] sm:$0xff]
      %1712 = vmatprep.subr.mxu0 %v703
      %1713 = vmatpush1.msra.mxu0 %v702
      %1714 = vmatprep.subr.mxu0 %v699
      %1715 = vmatpush1.msra.mxu0 %v698
      %1716 = vmatprep.subr.mxu0 %v695
      %1717 = vmatpush1.msra.mxu0 %v694
      %1718 = vmatprep.subr.mxu0 %v691
      %1719 = vmatpush1.msra.mxu0 %v690
      %1720 = vmatprep.subr.mxu0 %v687
      %1721 = vmatpush1.msra.mxu0 %v686
      %1722 = vmatprep.subr.mxu0 %v683
      %1723 = vmatpush1.msra.mxu0 %v682
      %1724 = vmatprep.subr.mxu0 %v679
      %1725 = vmatpush1.msra.mxu0 %v678
      %1726 = vmatprep.subr.mxu0 %v675
      %1727 = vmatpush1.msra.mxu0 %v674
      %1728 = vmatprep.subr.mxu0 %v671
      %1729 = vmatpush1.msra.mxu0 %v670
      %1730 = vmatprep.subr.mxu0 %v667
      %1731 = vmatpush1.msra.mxu0 %v666
      %1732 = vmatprep.subr.mxu0 %v663
      %1733 = vmatpush1.msra.mxu0 %v662
      %1734 = vmatprep.subr.mxu0 %v659
      %1735 = vmatpush1.msra.mxu0 %v658
      %1736 = vmatprep.subr.mxu0 %v655
      %1737 = vmatpush1.msra.mxu0 %v654
      %1738 = vmatprep.subr.mxu0 %v651
      %1739 = vmatpush1.msra.mxu0 %v650
      %1740 = vmatprep.subr.mxu0 %v647
      %1741 = vmatpush1.msra.mxu0 %v646
      %1742 = vmatprep.subr.mxu0 %v643
      %1743 = vmatpush1.msra.mxu0 %v642
      %1744 = vmatprep.subr.mxu0 0.0
      %1745 = vmatpush2.msra.mxu0 0.0
      %1746 = vmatprep.subr.mxu0 0.0
      %1747 = vmatpush2.msra.mxu0 0.0
      %1748 = vmatprep.subr.mxu0 0.0
      %1749 = vmatpush2.msra.mxu0 0.0
      %1750 = vmatprep.subr.mxu0 0.0
      %1751 = vmatpush2.msra.mxu0 0.0
      %1752 = vmatprep.subr.mxu0 0.0
      %1753 = vmatpush2.msra.mxu0 0.0
      %1754 = vmatprep.subr.mxu0 0.0
      %1755 = vmatpush2.msra.mxu0 0.0
      %1756 = vmatprep.subr.mxu0 0.0
      %1757 = vmatpush2.msra.mxu0 0.0
      %1758 = vmatprep.subr.mxu0 0.0
      %1759 = vmatpush2.msra.mxu0 0.0
      %1760 = vmatprep.subr.mxu0 0.0
      %1761 = vmatpush2.msra.mxu0 0.0
      %1762 = vmatprep.subr.mxu0 0.0
      %1763 = vmatpush2.msra.mxu0 0.0
      %1764 = vmatprep.subr.mxu0 0.0
      %1765 = vmatpush2.msra.mxu0 0.0
      %1766 = vmatprep.subr.mxu0 0.0
      %1767 = vmatpush2.msra.mxu0 0.0
      %1768 = vmatprep.subr.mxu0 0.0
      %1769 = vmatpush2.msra.mxu0 0.0
      %1770 = vmatprep.subr.mxu0 0.0
      %1771 = vmatpush2.msra.mxu0 0.0
      %1772 = vmatprep.subr.mxu0 0.0
      %1773 = vmatpush2.msra.mxu0 0.0
      %1774 = vmatprep.subr.mxu0 0.0
      %1775 = vmatpush2.msra.mxu0 0.0
      %1776 = vmatprep.mubr.f32.mxu0 0.0
      %1777 = vmatmul.mubr.f32.gmra.mxu0 %v1702
      %v1778 = vpop.f32.mrf.mxu0
      %v1779 = vadd.f32 %v1708, %v1778
      %v1780 = vpop.f32.mrf.mxu0
      %v1781 = vadd.f32 %v1709, %v1780
      %1782 = vdwg.mxu0
      %1783 = vmatprep.subr.mxu0 %v705
      %1784 = vmatpush1.msra.mxu0 %v704
      %1785 = vmatprep.subr.mxu0 %v701
      %1786 = vmatpush1.msra.mxu0 %v700
      %1787 = vmatprep.subr.mxu0 %v697
      %1788 = vmatpush1.msra.mxu0 %v696
      %1789 = vmatprep.subr.mxu0 %v693
      %1790 = vmatpush1.msra.mxu0 %v692
      %1791 = vmatprep.subr.mxu0 %v689
      %1792 = vmatpush1.msra.mxu0 %v688
      %1793 = vmatprep.subr.mxu0 %v685
      %1794 = vmatpush1.msra.mxu0 %v684
      %1795 = vmatprep.subr.mxu0 %v681
      %1796 = vmatpush1.msra.mxu0 %v680
      %1797 = vmatprep.subr.mxu0 %v677
      %1798 = vmatpush1.msra.mxu0 %v676
      %1799 = vmatprep.subr.mxu0 %v673
      %1800 = vmatpush1.msra.mxu0 %v672
      %1801 = vmatprep.subr.mxu0 %v669
      %1802 = vmatpush1.msra.mxu0 %v668
      %1803 = vmatprep.subr.mxu0 %v665
      %1804 = vmatpush1.msra.mxu0 %v664
      %1805 = vmatprep.subr.mxu0 %v661
      %1806 = vmatpush1.msra.mxu0 %v660
      %1807 = vmatprep.subr.mxu0 %v657
      %1808 = vmatpush1.msra.mxu0 %v656
      %1809 = vmatprep.subr.mxu0 %v653
      %1810 = vmatpush1.msra.mxu0 %v652
      %1811 = vmatprep.subr.mxu0 %v649
      %1812 = vmatpush1.msra.mxu0 %v648
      %1813 = vmatprep.subr.mxu0 %v645
      %1814 = vmatpush1.msra.mxu0 %v644
      %1815 = vmatprep.subr.mxu0 0.0
      %1816 = vmatpush2.msra.mxu0 0.0
      %1817 = vmatprep.subr.mxu0 0.0
      %1818 = vmatpush2.msra.mxu0 0.0
      %1819 = vmatprep.subr.mxu0 0.0
      %1820 = vmatpush2.msra.mxu0 0.0
      %1821 = vmatprep.subr.mxu0 0.0
      %1822 = vmatpush2.msra.mxu0 0.0
      %1823 = vmatprep.subr.mxu0 0.0
      %1824 = vmatpush2.msra.mxu0 0.0
      %1825 = vmatprep.subr.mxu0 0.0
      %1826 = vmatpush2.msra.mxu0 0.0
      %1827 = vmatprep.subr.mxu0 0.0
      %1828 = vmatpush2.msra.mxu0 0.0
      %1829 = vmatprep.subr.mxu0 0.0
      %1830 = vmatpush2.msra.mxu0 0.0
      %1831 = vmatprep.subr.mxu0 0.0
      %1832 = vmatpush2.msra.mxu0 0.0
      %1833 = vmatprep.subr.mxu0 0.0
      %1834 = vmatpush2.msra.mxu0 0.0
      %1835 = vmatprep.subr.mxu0 0.0
      %1836 = vmatpush2.msra.mxu0 0.0
      %1837 = vmatprep.subr.mxu0 0.0
      %1838 = vmatpush2.msra.mxu0 0.0
      %1839 = vmatprep.subr.mxu0 0.0
      %1840 = vmatpush2.msra.mxu0 0.0
      %1841 = vmatprep.subr.mxu0 0.0
      %1842 = vmatpush2.msra.mxu0 0.0
      %1843 = vmatprep.subr.mxu0 0.0
      %1844 = vmatpush2.msra.mxu0 0.0
      %1845 = vmatprep.subr.mxu0 0.0
      %1846 = vmatpush2.msra.mxu0 0.0
      %1847 = vmatprep.mubr.f32.mxu0 0.0
      %1848 = vmatmul.mubr.f32.gmra.mxu0 %v1702
      %v1849 = vpop.f32.mrf.mxu0
      %v1850 = vadd.f32 %v1710, %v1849
      %v1851 = vpop.f32.mrf.mxu0
      %v1852 = vadd.f32 %v1711, %v1851
      %1853 = vdwg.mxu0
      %v1854 = vadd.f32 %v1779, %v858
      %v1855 = vadd.f32 %v1781, %v862
      %v1856 = vadd.f32 %v1850, %v866
      %v1857 = vadd.f32 %v1852, %v870
      %v1858 = vxor.u32 %v1854, 2147483648
      %v1859 = vmul.f32 %v1858, 1.442695
      %v1860 = vpow.pop %v1859
      %v1861 = vadd.f32 %v1860, 1.0
      %v1862 = vrcp.pop %v1861
      %v1863 = vmul.f32 1.0, %v1862
      %v1864 = vxor.u32 %v1855, 2147483648
      %v1865 = vmul.f32 %v1864, 1.442695
      %v1866 = vpow.pop %v1865
      %v1867 = vadd.f32 %v1866, 1.0
      %v1868 = vrcp.pop %v1867
      %v1869 = vmul.f32 1.0, %v1868
      %v1870 = vtanh.pop %v1856
      %v1871 = vxor.u32 %v1857, 2147483648
      %v1872 = vmul.f32 %v1871, 1.442695
      %v1873 = vpow.pop %v1872
      %v1874 = vadd.f32 %v1873, 1.0
      %v1875 = vrcp.pop %v1874
      %v1876 = vmul.f32 1.0, %v1875
      %v1877 = vmul.f32 %v1869, %v1705
      %v1878 = vmul.f32 %v1863, %v1870
      %v1879 = vadd.f32 %v1877, %v1878
      %v1880 = vtanh.pop %v1879
      %v1881 = vmul.f32 %v1876, %v1880
      %vm1882 = vcmp.gt.f32.partialorder %v707, 5.0
      %v1883 = vsel %vm1882, 1, 0
      %v1884 = vcvt.s32.f32 %v1883
      %1886 = vset.pattern.permute.xlu0 0
      %1887 = vperm.xlu0 %1886, %v1884
      %v1888 = vpop.permute.xlu0 %1887
      %v1890 = vmul.f32 %v1888, %v1881
      %v1891 = vsub.f32 1.0, %v1884
      %1893 = vset.pattern.permute.xlu0 0
      %1894 = vperm.xlu0 %1893, %v1891
      %v1895 = vpop.permute.xlu0 %1894
      %v1897 = vmul.f32 %v1895, %v1702
      %v1898 = vadd.f32 %v1890, %v1897
      %v1899 = vmul.f32 %v1888, %v1879
      %v1900 = vmul.f32 %v1895, %v1705
      %v1901 = vadd.f32 %v1899, %v1900
      %v1902 = vadd.f32 %v1706, %v1890
      %s1903 = scalar_lea.vmem %s628, 192
      %v1904 = vld [vmem:[%s1903] sm:$0xff]
      %v1905 = vld [vmem:[%s1903 + $0x8] sm:$0xff]
      %v1906 = vld [vmem:[%s1903 + $0x10] sm:$0xff]
      %v1907 = vld [vmem:[%s1903 + $0x18] sm:$0xff]
      %1908 = vmatprep.subr.mxu0 %v703
      %1909 = vmatpush1.msra.mxu0 %v702
      %1910 = vmatprep.subr.mxu0 %v699
      %1911 = vmatpush1.msra.mxu0 %v698
      %1912 = vmatprep.subr.mxu0 %v695
      %1913 = vmatpush1.msra.mxu0 %v694
      %1914 = vmatprep.subr.mxu0 %v691
      %1915 = vmatpush1.msra.mxu0 %v690
      %1916 = vmatprep.subr.mxu0 %v687
      %1917 = vmatpush1.msra.mxu0 %v686
      %1918 = vmatprep.subr.mxu0 %v683
      %1919 = vmatpush1.msra.mxu0 %v682
      %1920 = vmatprep.subr.mxu0 %v679
      %1921 = vmatpush1.msra.mxu0 %v678
      %1922 = vmatprep.subr.mxu0 %v675
      %1923 = vmatpush1.msra.mxu0 %v674
      %1924 = vmatprep.subr.mxu0 %v671
      %1925 = vmatpush1.msra.mxu0 %v670
      %1926 = vmatprep.subr.mxu0 %v667
      %1927 = vmatpush1.msra.mxu0 %v666
      %1928 = vmatprep.subr.mxu0 %v663
      %1929 = vmatpush1.msra.mxu0 %v662
      %1930 = vmatprep.subr.mxu0 %v659
      %1931 = vmatpush1.msra.mxu0 %v658
      %1932 = vmatprep.subr.mxu0 %v655
      %1933 = vmatpush1.msra.mxu0 %v654
      %1934 = vmatprep.subr.mxu0 %v651
      %1935 = vmatpush1.msra.mxu0 %v650
      %1936 = vmatprep.subr.mxu0 %v647
      %1937 = vmatpush1.msra.mxu0 %v646
      %1938 = vmatprep.subr.mxu0 %v643
      %1939 = vmatpush1.msra.mxu0 %v642
      %1940 = vmatprep.subr.mxu0 0.0
      %1941 = vmatpush2.msra.mxu0 0.0
      %1942 = vmatprep.subr.mxu0 0.0
      %1943 = vmatpush2.msra.mxu0 0.0
      %1944 = vmatprep.subr.mxu0 0.0
      %1945 = vmatpush2.msra.mxu0 0.0
      %1946 = vmatprep.subr.mxu0 0.0
      %1947 = vmatpush2.msra.mxu0 0.0
      %1948 = vmatprep.subr.mxu0 0.0
      %1949 = vmatpush2.msra.mxu0 0.0
      %1950 = vmatprep.subr.mxu0 0.0
      %1951 = vmatpush2.msra.mxu0 0.0
      %1952 = vmatprep.subr.mxu0 0.0
      %1953 = vmatpush2.msra.mxu0 0.0
      %1954 = vmatprep.subr.mxu0 0.0
      %1955 = vmatpush2.msra.mxu0 0.0
      %1956 = vmatprep.subr.mxu0 0.0
      %1957 = vmatpush2.msra.mxu0 0.0
      %1958 = vmatprep.subr.mxu0 0.0
      %1959 = vmatpush2.msra.mxu0 0.0
      %1960 = vmatprep.subr.mxu0 0.0
      %1961 = vmatpush2.msra.mxu0 0.0
      %1962 = vmatprep.subr.mxu0 0.0
      %1963 = vmatpush2.msra.mxu0 0.0
      %1964 = vmatprep.subr.mxu0 0.0
      %1965 = vmatpush2.msra.mxu0 0.0
      %1966 = vmatprep.subr.mxu0 0.0
      %1967 = vmatpush2.msra.mxu0 0.0
      %1968 = vmatprep.subr.mxu0 0.0
      %1969 = vmatpush2.msra.mxu0 0.0
      %1970 = vmatprep.subr.mxu0 0.0
      %1971 = vmatpush2.msra.mxu0 0.0
      %1972 = vmatprep.mubr.f32.mxu0 0.0
      %1973 = vmatmul.mubr.f32.gmra.mxu0 %v1898
      %v1974 = vpop.f32.mrf.mxu0
      %v1975 = vadd.f32 %v1904, %v1974
      %v1976 = vpop.f32.mrf.mxu0
      %v1977 = vadd.f32 %v1905, %v1976
      %1978 = vdwg.mxu0
      %1979 = vmatprep.subr.mxu0 %v705
      %1980 = vmatpush1.msra.mxu0 %v704
      %1981 = vmatprep.subr.mxu0 %v701
      %1982 = vmatpush1.msra.mxu0 %v700
      %1983 = vmatprep.subr.mxu0 %v697
      %1984 = vmatpush1.msra.mxu0 %v696
      %1985 = vmatprep.subr.mxu0 %v693
      %1986 = vmatpush1.msra.mxu0 %v692
      %1987 = vmatprep.subr.mxu0 %v689
      %1988 = vmatpush1.msra.mxu0 %v688
      %1989 = vmatprep.subr.mxu0 %v685
      %1990 = vmatpush1.msra.mxu0 %v684
      %1991 = vmatprep.subr.mxu0 %v681
      %1992 = vmatpush1.msra.mxu0 %v680
      %1993 = vmatprep.subr.mxu0 %v677
      %1994 = vmatpush1.msra.mxu0 %v676
      %1995 = vmatprep.subr.mxu0 %v673
      %1996 = vmatpush1.msra.mxu0 %v672
      %1997 = vmatprep.subr.mxu0 %v669
      %1998 = vmatpush1.msra.mxu0 %v668
      %1999 = vmatprep.subr.mxu0 %v665
      %2000 = vmatpush1.msra.mxu0 %v664
      %2001 = vmatprep.subr.mxu0 %v661
      %2002 = vmatpush1.msra.mxu0 %v660
      %2003 = vmatprep.subr.mxu0 %v657
      %2004 = vmatpush1.msra.mxu0 %v656
      %2005 = vmatprep.subr.mxu0 %v653
      %2006 = vmatpush1.msra.mxu0 %v652
      %2007 = vmatprep.subr.mxu0 %v649
      %2008 = vmatpush1.msra.mxu0 %v648
      %2009 = vmatprep.subr.mxu0 %v645
      %2010 = vmatpush1.msra.mxu0 %v644
      %2011 = vmatprep.subr.mxu0 0.0
      %2012 = vmatpush2.msra.mxu0 0.0
      %2013 = vmatprep.subr.mxu0 0.0
      %2014 = vmatpush2.msra.mxu0 0.0
      %2015 = vmatprep.subr.mxu0 0.0
      %2016 = vmatpush2.msra.mxu0 0.0
      %2017 = vmatprep.subr.mxu0 0.0
      %2018 = vmatpush2.msra.mxu0 0.0
      %2019 = vmatprep.subr.mxu0 0.0
      %2020 = vmatpush2.msra.mxu0 0.0
      %2021 = vmatprep.subr.mxu0 0.0
      %2022 = vmatpush2.msra.mxu0 0.0
      %2023 = vmatprep.subr.mxu0 0.0
      %2024 = vmatpush2.msra.mxu0 0.0
      %2025 = vmatprep.subr.mxu0 0.0
      %2026 = vmatpush2.msra.mxu0 0.0
      %2027 = vmatprep.subr.mxu0 0.0
      %2028 = vmatpush2.msra.mxu0 0.0
      %2029 = vmatprep.subr.mxu0 0.0
      %2030 = vmatpush2.msra.mxu0 0.0
      %2031 = vmatprep.subr.mxu0 0.0
      %2032 = vmatpush2.msra.mxu0 0.0
      %2033 = vmatprep.subr.mxu0 0.0
      %2034 = vmatpush2.msra.mxu0 0.0
      %2035 = vmatprep.subr.mxu0 0.0
      %2036 = vmatpush2.msra.mxu0 0.0
      %2037 = vmatprep.subr.mxu0 0.0
      %2038 = vmatpush2.msra.mxu0 0.0
      %2039 = vmatprep.subr.mxu0 0.0
      %2040 = vmatpush2.msra.mxu0 0.0
      %2041 = vmatprep.subr.mxu0 0.0
      %2042 = vmatpush2.msra.mxu0 0.0
      %2043 = vmatprep.mubr.f32.mxu0 0.0
      %2044 = vmatmul.mubr.f32.gmra.mxu0 %v1898
      %v2045 = vpop.f32.mrf.mxu0
      %v2046 = vadd.f32 %v1906, %v2045
      %v2047 = vpop.f32.mrf.mxu0
      %v2048 = vadd.f32 %v1907, %v2047
      %2049 = vdwg.mxu0
      %v2050 = vadd.f32 %v1975, %v858
      %v2051 = vadd.f32 %v1977, %v862
      %v2052 = vadd.f32 %v2046, %v866
      %v2053 = vadd.f32 %v2048, %v870
      %v2054 = vxor.u32 %v2050, 2147483648
      %v2055 = vmul.f32 %v2054, 1.442695
      %v2056 = vpow.pop %v2055
      %v2057 = vadd.f32 %v2056, 1.0
      %v2058 = vrcp.pop %v2057
      %v2059 = vmul.f32 1.0, %v2058
      %v2060 = vxor.u32 %v2051, 2147483648
      %v2061 = vmul.f32 %v2060, 1.442695
      %v2062 = vpow.pop %v2061
      %v2063 = vadd.f32 %v2062, 1.0
      %v2064 = vrcp.pop %v2063
      %v2065 = vmul.f32 1.0, %v2064
      %v2066 = vtanh.pop %v2052
      %v2067 = vxor.u32 %v2053, 2147483648
      %v2068 = vmul.f32 %v2067, 1.442695
      %v2069 = vpow.pop %v2068
      %v2070 = vadd.f32 %v2069, 1.0
      %v2071 = vrcp.pop %v2070
      %v2072 = vmul.f32 1.0, %v2071
      %v2073 = vmul.f32 %v2065, %v1901
      %v2074 = vmul.f32 %v2059, %v2066
      %v2075 = vadd.f32 %v2073, %v2074
      %v2076 = vtanh.pop %v2075
      %v2077 = vmul.f32 %v2072, %v2076
      %vm2078 = vcmp.gt.f32.partialorder %v707, 6.0
      %v2079 = vsel %vm2078, 1, 0
      %v2080 = vcvt.s32.f32 %v2079
      %2082 = vset.pattern.permute.xlu0 0
      %2083 = vperm.xlu0 %2082, %v2080
      %v2084 = vpop.permute.xlu0 %2083
      %v2086 = vmul.f32 %v2084, %v2077
      %v2087 = vsub.f32 1.0, %v2080
      %2089 = vset.pattern.permute.xlu0 0
      %2090 = vperm.xlu0 %2089, %v2087
      %v2091 = vpop.permute.xlu0 %2090
      %v2093 = vmul.f32 %v2091, %v1898
      %v2094 = vadd.f32 %v2086, %v2093
      %v2095 = vmul.f32 %v2084, %v2075
      %v2096 = vmul.f32 %v2091, %v1901
      %v2097 = vadd.f32 %v2095, %v2096
      %v2098 = vadd.f32 %v1902, %v2086
      %s2099 = scalar_lea.vmem %s628, 224
      %v2100 = vld [vmem:[%s2099] sm:$0xff]
      %v2101 = vld [vmem:[%s2099 + $0x8] sm:$0xff]
      %v2102 = vld [vmem:[%s2099 + $0x10] sm:$0xff]
      %v2103 = vld [vmem:[%s2099 + $0x18] sm:$0xff]
      %2104 = vmatprep.subr.mxu0 %v703
      %2105 = vmatpush1.msra.mxu0 %v702
      %2106 = vmatprep.subr.mxu0 %v699
      %2107 = vmatpush1.msra.mxu0 %v698
      %2108 = vmatprep.subr.mxu0 %v695
      %2109 = vmatpush1.msra.mxu0 %v694
      %2110 = vmatprep.subr.mxu0 %v691
      %2111 = vmatpush1.msra.mxu0 %v690
      %2112 = vmatprep.subr.mxu0 %v687
      %2113 = vmatpush1.msra.mxu0 %v686
      %2114 = vmatprep.subr.mxu0 %v683
      %2115 = vmatpush1.msra.mxu0 %v682
      %2116 = vmatprep.subr.mxu0 %v679
      %2117 = vmatpush1.msra.mxu0 %v678
      %2118 = vmatprep.subr.mxu0 %v675
      %2119 = vmatpush1.msra.mxu0 %v674
      %2120 = vmatprep.subr.mxu0 %v671
      %2121 = vmatpush1.msra.mxu0 %v670
      %2122 = vmatprep.subr.mxu0 %v667
      %2123 = vmatpush1.msra.mxu0 %v666
      %2124 = vmatprep.subr.mxu0 %v663
      %2125 = vmatpush1.msra.mxu0 %v662
      %2126 = vmatprep.subr.mxu0 %v659
      %2127 = vmatpush1.msra.mxu0 %v658
      %2128 = vmatprep.subr.mxu0 %v655
      %2129 = vmatpush1.msra.mxu0 %v654
      %2130 = vmatprep.subr.mxu0 %v651
      %2131 = vmatpush1.msra.mxu0 %v650
      %2132 = vmatprep.subr.mxu0 %v647
      %2133 = vmatpush1.msra.mxu0 %v646
      %2134 = vmatprep.subr.mxu0 %v643
      %2135 = vmatpush1.msra.mxu0 %v642
      %2136 = vmatprep.subr.mxu0 0.0
      %2137 = vmatpush2.msra.mxu0 0.0
      %2138 = vmatprep.subr.mxu0 0.0
      %2139 = vmatpush2.msra.mxu0 0.0
      %2140 = vmatprep.subr.mxu0 0.0
      %2141 = vmatpush2.msra.mxu0 0.0
      %2142 = vmatprep.subr.mxu0 0.0
      %2143 = vmatpush2.msra.mxu0 0.0
      %2144 = vmatprep.subr.mxu0 0.0
      %2145 = vmatpush2.msra.mxu0 0.0
      %2146 = vmatprep.subr.mxu0 0.0
      %2147 = vmatpush2.msra.mxu0 0.0
      %2148 = vmatprep.subr.mxu0 0.0
      %2149 = vmatpush2.msra.mxu0 0.0
      %2150 = vmatprep.subr.mxu0 0.0
      %2151 = vmatpush2.msra.mxu0 0.0
      %2152 = vmatprep.subr.mxu0 0.0
      %2153 = vmatpush2.msra.mxu0 0.0
      %2154 = vmatprep.subr.mxu0 0.0
      %2155 = vmatpush2.msra.mxu0 0.0
      %2156 = vmatprep.subr.mxu0 0.0
      %2157 = vmatpush2.msra.mxu0 0.0
      %2158 = vmatprep.subr.mxu0 0.0
      %2159 = vmatpush2.msra.mxu0 0.0
      %2160 = vmatprep.subr.mxu0 0.0
      %2161 = vmatpush2.msra.mxu0 0.0
      %2162 = vmatprep.subr.mxu0 0.0
      %2163 = vmatpush2.msra.mxu0 0.0
      %2164 = vmatprep.subr.mxu0 0.0
      %2165 = vmatpush2.msra.mxu0 0.0
      %2166 = vmatprep.subr.mxu0 0.0
      %2167 = vmatpush2.msra.mxu0 0.0
      %2168 = vmatprep.mubr.f32.mxu0 0.0
      %2169 = vmatmul.mubr.f32.gmra.mxu0 %v2094
      %v2170 = vpop.f32.mrf.mxu0
      %v2171 = vadd.f32 %v2100, %v2170
      %v2172 = vpop.f32.mrf.mxu0
      %v2173 = vadd.f32 %v2101, %v2172
      %2174 = vdwg.mxu0
      %2175 = vmatprep.subr.mxu0 %v705
      %2176 = vmatpush1.msra.mxu0 %v704
      %2177 = vmatprep.subr.mxu0 %v701
      %2178 = vmatpush1.msra.mxu0 %v700
      %2179 = vmatprep.subr.mxu0 %v697
      %2180 = vmatpush1.msra.mxu0 %v696
      %2181 = vmatprep.subr.mxu0 %v693
      %2182 = vmatpush1.msra.mxu0 %v692
      %2183 = vmatprep.subr.mxu0 %v689
      %2184 = vmatpush1.msra.mxu0 %v688
      %2185 = vmatprep.subr.mxu0 %v685
      %2186 = vmatpush1.msra.mxu0 %v684
      %2187 = vmatprep.subr.mxu0 %v681
      %2188 = vmatpush1.msra.mxu0 %v680
      %2189 = vmatprep.subr.mxu0 %v677
      %2190 = vmatpush1.msra.mxu0 %v676
      %2191 = vmatprep.subr.mxu0 %v673
      %2192 = vmatpush1.msra.mxu0 %v672
      %2193 = vmatprep.subr.mxu0 %v669
      %2194 = vmatpush1.msra.mxu0 %v668
      %2195 = vmatprep.subr.mxu0 %v665
      %2196 = vmatpush1.msra.mxu0 %v664
      %2197 = vmatprep.subr.mxu0 %v661
      %2198 = vmatpush1.msra.mxu0 %v660
      %2199 = vmatprep.subr.mxu0 %v657
      %2200 = vmatpush1.msra.mxu0 %v656
      %2201 = vmatprep.subr.mxu0 %v653
      %2202 = vmatpush1.msra.mxu0 %v652
      %2203 = vmatprep.subr.mxu0 %v649
      %2204 = vmatpush1.msra.mxu0 %v648
      %2205 = vmatprep.subr.mxu0 %v645
      %2206 = vmatpush1.msra.mxu0 %v644
      %2207 = vmatprep.subr.mxu0 0.0
      %2208 = vmatpush2.msra.mxu0 0.0
      %2209 = vmatprep.subr.mxu0 0.0
      %2210 = vmatpush2.msra.mxu0 0.0
      %2211 = vmatprep.subr.mxu0 0.0
      %2212 = vmatpush2.msra.mxu0 0.0
      %2213 = vmatprep.subr.mxu0 0.0
      %2214 = vmatpush2.msra.mxu0 0.0
      %2215 = vmatprep.subr.mxu0 0.0
      %2216 = vmatpush2.msra.mxu0 0.0
      %2217 = vmatprep.subr.mxu0 0.0
      %2218 = vmatpush2.msra.mxu0 0.0
      %2219 = vmatprep.subr.mxu0 0.0
      %2220 = vmatpush2.msra.mxu0 0.0
      %2221 = vmatprep.subr.mxu0 0.0
      %2222 = vmatpush2.msra.mxu0 0.0
      %2223 = vmatprep.subr.mxu0 0.0
      %2224 = vmatpush2.msra.mxu0 0.0
      %2225 = vmatprep.subr.mxu0 0.0
      %2226 = vmatpush2.msra.mxu0 0.0
      %2227 = vmatprep.subr.mxu0 0.0
      %2228 = vmatpush2.msra.mxu0 0.0
      %2229 = vmatprep.subr.mxu0 0.0
      %2230 = vmatpush2.msra.mxu0 0.0
      %2231 = vmatprep.subr.mxu0 0.0
      %2232 = vmatpush2.msra.mxu0 0.0
      %2233 = vmatprep.subr.mxu0 0.0
      %2234 = vmatpush2.msra.mxu0 0.0
      %2235 = vmatprep.subr.mxu0 0.0
      %2236 = vmatpush2.msra.mxu0 0.0
      %2237 = vmatprep.subr.mxu0 0.0
      %2238 = vmatpush2.msra.mxu0 0.0
      %2239 = vmatprep.mubr.f32.mxu0 0.0
      %2240 = vmatmul.mubr.f32.gmra.mxu0 %v2094
      %v2241 = vpop.f32.mrf.mxu0
      %v2242 = vadd.f32 %v2102, %v2241
      %v2243 = vpop.f32.mrf.mxu0
      %v2244 = vadd.f32 %v2103, %v2243
      %2245 = vdwg.mxu0
      %v2246 = vadd.f32 %v2171, %v858
      %v2247 = vadd.f32 %v2173, %v862
      %v2248 = vadd.f32 %v2242, %v866
      %v2249 = vadd.f32 %v2244, %v870
      %v2250 = vxor.u32 %v2246, 2147483648
      %v2251 = vmul.f32 %v2250, 1.442695
      %v2252 = vpow.pop %v2251
      %v2253 = vadd.f32 %v2252, 1.0
      %v2254 = vrcp.pop %v2253
      %v2255 = vmul.f32 1.0, %v2254
      %v2256 = vxor.u32 %v2247, 2147483648
      %v2257 = vmul.f32 %v2256, 1.442695
      %v2258 = vpow.pop %v2257
      %v2259 = vadd.f32 %v2258, 1.0
      %v2260 = vrcp.pop %v2259
      %v2261 = vmul.f32 1.0, %v2260
      %v2262 = vtanh.pop %v2248
      %v2263 = vxor.u32 %v2249, 2147483648
      %v2264 = vmul.f32 %v2263, 1.442695
      %v2265 = vpow.pop %v2264
      %v2266 = vadd.f32 %v2265, 1.0
      %v2267 = vrcp.pop %v2266
      %v2268 = vmul.f32 1.0, %v2267
      %v2269 = vmul.f32 %v2261, %v2097
      %v2270 = vmul.f32 %v2255, %v2262
      %v2271 = vadd.f32 %v2269, %v2270
      %v2272 = vtanh.pop %v2271
      %v2273 = vmul.f32 %v2268, %v2272
      %vm2274 = vcmp.gt.f32.partialorder %v707, 7.0
      %v2275 = vsel %vm2274, 1, 0
      %v2276 = vcvt.s32.f32 %v2275
      %2278 = vset.pattern.permute.xlu0 0
      %2279 = vperm.xlu0 %2278, %v2276
      %v2280 = vpop.permute.xlu0 %2279
      %v2282 = vmul.f32 %v2280, %v2273
      %v2283 = vadd.f32 %v2098, %v2282
      %2285 = vset.pattern.permute.xlu0 0
      %2286 = vperm.xlu0 %2285, %v707
      %v2287 = vpop.permute.xlu0 %2286
      %v2289 = vrcp.pop %v2287
      %v2290 = vmul.f32 %v2283, %v2289
      %p2291 = scmp.eq.s32.totalorder %s30, 0
      // Predicated region
      $region97: #{ian_features1_forward.1} parent=95 // pred_check
        %p2292 = pneg %p2291
      $region98: #{ian_features1_forward.1} parent=95 // pred_check_branch
        %2294 = sbr.rel (%p2292) target = $region100
      $region99: #{ian_features1_forward.1} parent=95 // pred_region
        %2295 = vst [vmem:[#allocation2] sm:$0xff] %v2290
      $region100: #{ian_features1_forward.1} parent=95 // pred_fallthru
        _
      %p2296 = scmp.eq.s32.totalorder %s30, 1
      // Predicated region
      $region101: #{ian_features1_forward.1} parent=95 // pred_check
        %p2297 = pneg %p2296
      $region102: #{ian_features1_forward.1} parent=95 // pred_check_branch
        %2299 = sbr.rel (%p2297) target = $region104
      $region103: #{ian_features1_forward.1} parent=95 // pred_region
        %v2300 = vld [vmem:[#allocation2] sm:$0xff]
        %v2301 = vld [vmem:[%s5] sm:$0xff]
        %v2302 = vld [vmem:[%s5 + $0x8] sm:$0xff]
        %v2303 = vld [vmem:[%s5 + $0x10] sm:$0xff]
        %v2304 = vld [vmem:[%s5 + $0x18] sm:$0xff]
        %v2305 = vld [vmem:[%s5 + $0x20] sm:$0xff]
        %v2306 = vld [vmem:[%s5 + $0x28] sm:$0xff]
        %v2307 = vld [vmem:[%s5 + $0x30] sm:$0xff]
        %v2308 = vld [vmem:[%s5 + $0x38] sm:$0xff]
        %v2309 = vld [vmem:[%s5 + $0x40] sm:$0xff]
        %v2310 = vld [vmem:[%s5 + $0x48] sm:$0xff]
        %v2311 = vld [vmem:[%s5 + $0x50] sm:$0xff]
        %v2312 = vld [vmem:[%s5 + $0x58] sm:$0xff]
        %v2313 = vld [vmem:[%s5 + $0x60] sm:$0xff]
        %v2314 = vld [vmem:[%s5 + $0x68] sm:$0xff]
        %v2315 = vld [vmem:[%s5 + $0x70] sm:$0xff]
        %v2316 = vld [vmem:[%s5 + $0x78] sm:$0xff]
        %v2317 = vld [vmem:[%s6] sm:$0x1]
        %v2319 = vlaneseq
        %v2320 = vshrl.u32 %v2319, 7
        %v2321 = vsub.s32 0, %v2320
        %v2322 = vrot.slane %v2317, %v2321
        %2324 = vmatprep.subr.mxu0 0.0
        %2325 = vmatpush1.msra.mxu0 %v2316
        %2326 = vmatprep.subr.mxu0 0.0
        %2327 = vmatpush1.msra.mxu0 %v2315
        %2328 = vmatprep.subr.mxu0 0.0
        %2329 = vmatpush1.msra.mxu0 %v2314
        %2330 = vmatprep.subr.mxu0 0.0
        %2331 = vmatpush1.msra.mxu0 %v2313
        %2332 = vmatprep.subr.mxu0 0.0
        %2333 = vmatpush1.msra.mxu0 %v2312
        %2334 = vmatprep.subr.mxu0 0.0
        %2335 = vmatpush1.msra.mxu0 %v2311
        %2336 = vmatprep.subr.mxu0 0.0
        %2337 = vmatpush1.msra.mxu0 %v2310
        %2338 = vmatprep.subr.mxu0 0.0
        %2339 = vmatpush1.msra.mxu0 %v2309
        %2340 = vmatprep.subr.mxu0 0.0
        %2341 = vmatpush1.msra.mxu0 %v2308
        %2342 = vmatprep.subr.mxu0 0.0
        %2343 = vmatpush1.msra.mxu0 %v2307
        %2344 = vmatprep.subr.mxu0 0.0
        %2345 = vmatpush1.msra.mxu0 %v2306
        %2346 = vmatprep.subr.mxu0 0.0
        %2347 = vmatpush1.msra.mxu0 %v2305
        %2348 = vmatprep.subr.mxu0 0.0
        %2349 = vmatpush1.msra.mxu0 %v2304
        %2350 = vmatprep.subr.mxu0 0.0
        %2351 = vmatpush1.msra.mxu0 %v2303
        %2352 = vmatprep.subr.mxu0 0.0
        %2353 = vmatpush1.msra.mxu0 %v2302
        %2354 = vmatprep.subr.mxu0 0.0
        %2355 = vmatpush1.msra.mxu0 %v2301
        %2356 = vmatprep.subr.mxu0 0.0
        %2357 = vmatpush2.msra.mxu0 0.0
        %2358 = vmatprep.subr.mxu0 0.0
        %2359 = vmatpush2.msra.mxu0 0.0
        %2360 = vmatprep.subr.mxu0 0.0
        %2361 = vmatpush2.msra.mxu0 0.0
        %2362 = vmatprep.subr.mxu0 0.0
        %2363 = vmatpush2.msra.mxu0 0.0
        %2364 = vmatprep.subr.mxu0 0.0
        %2365 = vmatpush2.msra.mxu0 0.0
        %2366 = vmatprep.subr.mxu0 0.0
        %2367 = vmatpush2.msra.mxu0 0.0
        %2368 = vmatprep.subr.mxu0 0.0
        %2369 = vmatpush2.msra.mxu0 0.0
        %2370 = vmatprep.subr.mxu0 0.0
        %2371 = vmatpush2.msra.mxu0 0.0
        %2372 = vmatprep.subr.mxu0 0.0
        %2373 = vmatpush2.msra.mxu0 0.0
        %2374 = vmatprep.subr.mxu0 0.0
        %2375 = vmatpush2.msra.mxu0 0.0
        %2376 = vmatprep.subr.mxu0 0.0
        %2377 = vmatpush2.msra.mxu0 0.0
        %2378 = vmatprep.subr.mxu0 0.0
        %2379 = vmatpush2.msra.mxu0 0.0
        %2380 = vmatprep.subr.mxu0 0.0
        %2381 = vmatpush2.msra.mxu0 0.0
        %2382 = vmatprep.subr.mxu0 0.0
        %2383 = vmatpush2.msra.mxu0 0.0
        %2384 = vmatprep.subr.mxu0 0.0
        %2385 = vmatpush2.msra.mxu0 0.0
        %2386 = vmatprep.subr.mxu0 0.0
        %2387 = vmatpush2.msra.mxu0 0.0
        %2388 = vmatprep.mubr.f32.mxu0 0.0
        %2389 = vmatmul.mubr.f32.gmra.mxu0 %v2290
        %v2390 = vpop.f32.mrf.mxu0
        %v2391 = vadd.f32 %v2322, %v2390
        %v2392 = vpop.f32.mrf.mxu0
        %2393 = vdwg.mxu0
        %v2394 = vld [vmem:[%s7] sm:$0xff]
        %v2395 = vld [vmem:[%s7 + $0x8] sm:$0xff]
        %v2396 = vld [vmem:[%s7 + $0x10] sm:$0xff]
        %v2397 = vld [vmem:[%s7 + $0x18] sm:$0xff]
        %v2398 = vld [vmem:[%s7 + $0x20] sm:$0xff]
        %v2399 = vld [vmem:[%s7 + $0x28] sm:$0xff]
        %v2400 = vld [vmem:[%s7 + $0x30] sm:$0xff]
        %v2401 = vld [vmem:[%s7 + $0x38] sm:$0xff]
        %v2402 = vld [vmem:[%s7 + $0x40] sm:$0xff]
        %v2403 = vld [vmem:[%s7 + $0x48] sm:$0xff]
        %v2404 = vld [vmem:[%s7 + $0x50] sm:$0xff]
        %v2405 = vld [vmem:[%s7 + $0x58] sm:$0xff]
        %v2406 = vld [vmem:[%s7 + $0x60] sm:$0xff]
        %v2407 = vld [vmem:[%s7 + $0x68] sm:$0xff]
        %v2408 = vld [vmem:[%s7 + $0x70] sm:$0xff]
        %v2409 = vld [vmem:[%s7 + $0x78] sm:$0xff]
        %v2410 = vld [vmem:[%s8] sm:$0x1]
        %v2412 = vlaneseq
        %v2413 = vshrl.u32 %v2412, 7
        %v2414 = vsub.s32 0, %v2413
        %v2415 = vrot.slane %v2410, %v2414
        %2417 = vmatprep.subr.mxu0 0.0
        %2418 = vmatpush1.msra.mxu0 %v2409
        %2419 = vmatprep.subr.mxu0 0.0
        %2420 = vmatpush1.msra.mxu0 %v2408
        %2421 = vmatprep.subr.mxu0 0.0
        %2422 = vmatpush1.msra.mxu0 %v2407
        %2423 = vmatprep.subr.mxu0 0.0
        %2424 = vmatpush1.msra.mxu0 %v2406
        %2425 = vmatprep.subr.mxu0 0.0
        %2426 = vmatpush1.msra.mxu0 %v2405
        %2427 = vmatprep.subr.mxu0 0.0
        %2428 = vmatpush1.msra.mxu0 %v2404
        %2429 = vmatprep.subr.mxu0 0.0
        %2430 = vmatpush1.msra.mxu0 %v2403
        %2431 = vmatprep.subr.mxu0 0.0
        %2432 = vmatpush1.msra.mxu0 %v2402
        %2433 = vmatprep.subr.mxu0 0.0
        %2434 = vmatpush1.msra.mxu0 %v2401
        %2435 = vmatprep.subr.mxu0 0.0
        %2436 = vmatpush1.msra.mxu0 %v2400
        %2437 = vmatprep.subr.mxu0 0.0
        %2438 = vmatpush1.msra.mxu0 %v2399
        %2439 = vmatprep.subr.mxu0 0.0
        %2440 = vmatpush1.msra.mxu0 %v2398
        %2441 = vmatprep.subr.mxu0 0.0
        %2442 = vmatpush1.msra.mxu0 %v2397
        %2443 = vmatprep.subr.mxu0 0.0
        %2444 = vmatpush1.msra.mxu0 %v2396
        %2445 = vmatprep.subr.mxu0 0.0
        %2446 = vmatpush1.msra.mxu0 %v2395
        %2447 = vmatprep.subr.mxu0 0.0
        %2448 = vmatpush1.msra.mxu0 %v2394
        %2449 = vmatprep.subr.mxu0 0.0
        %2450 = vmatpush2.msra.mxu0 0.0
        %2451 = vmatprep.subr.mxu0 0.0
        %2452 = vmatpush2.msra.mxu0 0.0
        %2453 = vmatprep.subr.mxu0 0.0
        %2454 = vmatpush2.msra.mxu0 0.0
        %2455 = vmatprep.subr.mxu0 0.0
        %2456 = vmatpush2.msra.mxu0 0.0
        %2457 = vmatprep.subr.mxu0 0.0
        %2458 = vmatpush2.msra.mxu0 0.0
        %2459 = vmatprep.subr.mxu0 0.0
        %2460 = vmatpush2.msra.mxu0 0.0
        %2461 = vmatprep.subr.mxu0 0.0
        %2462 = vmatpush2.msra.mxu0 0.0
        %2463 = vmatprep.subr.mxu0 0.0
        %2464 = vmatpush2.msra.mxu0 0.0
        %2465 = vmatprep.subr.mxu0 0.0
        %2466 = vmatpush2.msra.mxu0 0.0
        %2467 = vmatprep.subr.mxu0 0.0
        %2468 = vmatpush2.msra.mxu0 0.0
        %2469 = vmatprep.subr.mxu0 0.0
        %2470 = vmatpush2.msra.mxu0 0.0
        %2471 = vmatprep.subr.mxu0 0.0
        %2472 = vmatpush2.msra.mxu0 0.0
        %2473 = vmatprep.subr.mxu0 0.0
        %2474 = vmatpush2.msra.mxu0 0.0
        %2475 = vmatprep.subr.mxu0 0.0
        %2476 = vmatpush2.msra.mxu0 0.0
        %2477 = vmatprep.subr.mxu0 0.0
        %2478 = vmatpush2.msra.mxu0 0.0
        %2479 = vmatprep.subr.mxu0 0.0
        %2480 = vmatpush2.msra.mxu0 0.0
        %2481 = vmatprep.mubr.f32.mxu0 0.0
        %2482 = vmatmul.mubr.f32.gmra.mxu0 %v2391
        %v2483 = vpop.f32.mrf.mxu0
        %v2484 = vadd.f32 %v2415, %v2483
        %v2485 = vpop.f32.mrf.mxu0
        %2486 = vdwg.mxu0
        %v2487 = vld [vmem:[%s9] sm:$0xff]
        %v2488 = vld [vmem:[%s9 + $0x8] sm:$0xff]
        %v2489 = vld [vmem:[%s9 + $0x10] sm:$0xff]
        %v2490 = vld [vmem:[%s9 + $0x18] sm:$0xff]
        %v2491 = vld [vmem:[%s9 + $0x20] sm:$0xff]
        %v2492 = vld [vmem:[%s9 + $0x28] sm:$0xff]
        %v2493 = vld [vmem:[%s9 + $0x30] sm:$0xff]
        %v2494 = vld [vmem:[%s9 + $0x38] sm:$0xff]
        %v2495 = vld [vmem:[%s9 + $0x40] sm:$0xff]
        %v2496 = vld [vmem:[%s9 + $0x48] sm:$0xff]
        %v2497 = vld [vmem:[%s9 + $0x50] sm:$0xff]
        %v2498 = vld [vmem:[%s9 + $0x58] sm:$0xff]
        %v2499 = vld [vmem:[%s9 + $0x60] sm:$0xff]
        %v2500 = vld [vmem:[%s9 + $0x68] sm:$0xff]
        %v2501 = vld [vmem:[%s9 + $0x70] sm:$0xff]
        %v2502 = vld [vmem:[%s9 + $0x78] sm:$0xff]
        %v2503 = vld [vmem:[%s10] sm:$0x1]
        %v2505 = vlaneseq
        %v2506 = vshrl.u32 %v2505, 7
        %v2507 = vsub.s32 0, %v2506
        %v2508 = vrot.slane %v2503, %v2507
        %2510 = vmatprep.subr.mxu0 0.0
        %2511 = vmatpush1.msra.mxu0 %v2502
        %2512 = vmatprep.subr.mxu0 0.0
        %2513 = vmatpush1.msra.mxu0 %v2501
        %2514 = vmatprep.subr.mxu0 0.0
        %2515 = vmatpush1.msra.mxu0 %v2500
        %2516 = vmatprep.subr.mxu0 0.0
        %2517 = vmatpush1.msra.mxu0 %v2499
        %2518 = vmatprep.subr.mxu0 0.0
        %2519 = vmatpush1.msra.mxu0 %v2498
        %2520 = vmatprep.subr.mxu0 0.0
        %2521 = vmatpush1.msra.mxu0 %v2497
        %2522 = vmatprep.subr.mxu0 0.0
        %2523 = vmatpush1.msra.mxu0 %v2496
        %2524 = vmatprep.subr.mxu0 0.0
        %2525 = vmatpush1.msra.mxu0 %v2495
        %2526 = vmatprep.subr.mxu0 0.0
        %2527 = vmatpush1.msra.mxu0 %v2494
        %2528 = vmatprep.subr.mxu0 0.0
        %2529 = vmatpush1.msra.mxu0 %v2493
        %2530 = vmatprep.subr.mxu0 0.0
        %2531 = vmatpush1.msra.mxu0 %v2492
        %2532 = vmatprep.subr.mxu0 0.0
        %2533 = vmatpush1.msra.mxu0 %v2491
        %2534 = vmatprep.subr.mxu0 0.0
        %2535 = vmatpush1.msra.mxu0 %v2490
        %2536 = vmatprep.subr.mxu0 0.0
        %2537 = vmatpush1.msra.mxu0 %v2489
        %2538 = vmatprep.subr.mxu0 0.0
        %2539 = vmatpush1.msra.mxu0 %v2488
        %2540 = vmatprep.subr.mxu0 0.0
        %2541 = vmatpush1.msra.mxu0 %v2487
        %2542 = vmatprep.subr.mxu0 0.0
        %2543 = vmatpush2.msra.mxu0 0.0
        %2544 = vmatprep.subr.mxu0 0.0
        %2545 = vmatpush2.msra.mxu0 0.0
        %2546 = vmatprep.subr.mxu0 0.0
        %2547 = vmatpush2.msra.mxu0 0.0
        %2548 = vmatprep.subr.mxu0 0.0
        %2549 = vmatpush2.msra.mxu0 0.0
        %2550 = vmatprep.subr.mxu0 0.0
        %2551 = vmatpush2.msra.mxu0 0.0
        %2552 = vmatprep.subr.mxu0 0.0
        %2553 = vmatpush2.msra.mxu0 0.0
        %2554 = vmatprep.subr.mxu0 0.0
        %2555 = vmatpush2.msra.mxu0 0.0
        %2556 = vmatprep.subr.mxu0 0.0
        %2557 = vmatpush2.msra.mxu0 0.0
        %2558 = vmatprep.subr.mxu0 0.0
        %2559 = vmatpush2.msra.mxu0 0.0
        %2560 = vmatprep.subr.mxu0 0.0
        %2561 = vmatpush2.msra.mxu0 0.0
        %2562 = vmatprep.subr.mxu0 0.0
        %2563 = vmatpush2.msra.mxu0 0.0
        %2564 = vmatprep.subr.mxu0 0.0
        %2565 = vmatpush2.msra.mxu0 0.0
        %2566 = vmatprep.subr.mxu0 0.0
        %2567 = vmatpush2.msra.mxu0 0.0
        %2568 = vmatprep.subr.mxu0 0.0
        %2569 = vmatpush2.msra.mxu0 0.0
        %2570 = vmatprep.subr.mxu0 0.0
        %2571 = vmatpush2.msra.mxu0 0.0
        %2572 = vmatprep.subr.mxu0 0.0
        %2573 = vmatpush2.msra.mxu0 0.0
        %2574 = vmatprep.mubr.f32.mxu0 0.0
        %2575 = vmatmul.mubr.f32.gmra.mxu0 %v2300
        %v2576 = vpop.f32.mrf.mxu0
        %v2577 = vadd.f32 %v2508, %v2576
        %v2578 = vpop.f32.mrf.mxu0
        %2579 = vdwg.mxu0
        %v2580 = vld [vmem:[%s11] sm:$0xff]
        %v2581 = vld [vmem:[%s11 + $0x8] sm:$0xff]
        %v2582 = vld [vmem:[%s11 + $0x10] sm:$0xff]
        %v2583 = vld [vmem:[%s11 + $0x18] sm:$0xff]
        %v2584 = vld [vmem:[%s11 + $0x20] sm:$0xff]
        %v2585 = vld [vmem:[%s11 + $0x28] sm:$0xff]
        %v2586 = vld [vmem:[%s11 + $0x30] sm:$0xff]
        %v2587 = vld [vmem:[%s11 + $0x38] sm:$0xff]
        %v2588 = vld [vmem:[%s11 + $0x40] sm:$0xff]
        %v2589 = vld [vmem:[%s11 + $0x48] sm:$0xff]
        %v2590 = vld [vmem:[%s11 + $0x50] sm:$0xff]
        %v2591 = vld [vmem:[%s11 + $0x58] sm:$0xff]
        %v2592 = vld [vmem:[%s11 + $0x60] sm:$0xff]
        %v2593 = vld [vmem:[%s11 + $0x68] sm:$0xff]
        %v2594 = vld [vmem:[%s11 + $0x70] sm:$0xff]
        %v2595 = vld [vmem:[%s11 + $0x78] sm:$0xff]
        %v2596 = vld [vmem:[%s12] sm:$0x1]
        %v2598 = vlaneseq
        %v2599 = vshrl.u32 %v2598, 7
        %v2600 = vsub.s32 0, %v2599
        %v2601 = vrot.slane %v2596, %v2600
        %2603 = vmatprep.subr.mxu0 0.0
        %2604 = vmatpush1.msra.mxu0 %v2595
        %2605 = vmatprep.subr.mxu0 0.0
        %2606 = vmatpush1.msra.mxu0 %v2594
        %2607 = vmatprep.subr.mxu0 0.0
        %2608 = vmatpush1.msra.mxu0 %v2593
        %2609 = vmatprep.subr.mxu0 0.0
        %2610 = vmatpush1.msra.mxu0 %v2592
        %2611 = vmatprep.subr.mxu0 0.0
        %2612 = vmatpush1.msra.mxu0 %v2591
        %2613 = vmatprep.subr.mxu0 0.0
        %2614 = vmatpush1.msra.mxu0 %v2590
        %2615 = vmatprep.subr.mxu0 0.0
        %2616 = vmatpush1.msra.mxu0 %v2589
        %2617 = vmatprep.subr.mxu0 0.0
        %2618 = vmatpush1.msra.mxu0 %v2588
        %2619 = vmatprep.subr.mxu0 0.0
        %2620 = vmatpush1.msra.mxu0 %v2587
        %2621 = vmatprep.subr.mxu0 0.0
        %2622 = vmatpush1.msra.mxu0 %v2586
        %2623 = vmatprep.subr.mxu0 0.0
        %2624 = vmatpush1.msra.mxu0 %v2585
        %2625 = vmatprep.subr.mxu0 0.0
        %2626 = vmatpush1.msra.mxu0 %v2584
        %2627 = vmatprep.subr.mxu0 0.0
        %2628 = vmatpush1.msra.mxu0 %v2583
        %2629 = vmatprep.subr.mxu0 0.0
        %2630 = vmatpush1.msra.mxu0 %v2582
        %2631 = vmatprep.subr.mxu0 0.0
        %2632 = vmatpush1.msra.mxu0 %v2581
        %2633 = vmatprep.subr.mxu0 0.0
        %2634 = vmatpush1.msra.mxu0 %v2580
        %2635 = vmatprep.subr.mxu0 0.0
        %2636 = vmatpush2.msra.mxu0 0.0
        %2637 = vmatprep.subr.mxu0 0.0
        %2638 = vmatpush2.msra.mxu0 0.0
        %2639 = vmatprep.subr.mxu0 0.0
        %2640 = vmatpush2.msra.mxu0 0.0
        %2641 = vmatprep.subr.mxu0 0.0
        %2642 = vmatpush2.msra.mxu0 0.0
        %2643 = vmatprep.subr.mxu0 0.0
        %2644 = vmatpush2.msra.mxu0 0.0
        %2645 = vmatprep.subr.mxu0 0.0
        %2646 = vmatpush2.msra.mxu0 0.0
        %2647 = vmatprep.subr.mxu0 0.0
        %2648 = vmatpush2.msra.mxu0 0.0
        %2649 = vmatprep.subr.mxu0 0.0
        %2650 = vmatpush2.msra.mxu0 0.0
        %2651 = vmatprep.subr.mxu0 0.0
        %2652 = vmatpush2.msra.mxu0 0.0
        %2653 = vmatprep.subr.mxu0 0.0
        %2654 = vmatpush2.msra.mxu0 0.0
        %2655 = vmatprep.subr.mxu0 0.0
        %2656 = vmatpush2.msra.mxu0 0.0
        %2657 = vmatprep.subr.mxu0 0.0
        %2658 = vmatpush2.msra.mxu0 0.0
        %2659 = vmatprep.subr.mxu0 0.0
        %2660 = vmatpush2.msra.mxu0 0.0
        %2661 = vmatprep.subr.mxu0 0.0
        %2662 = vmatpush2.msra.mxu0 0.0
        %2663 = vmatprep.subr.mxu0 0.0
        %2664 = vmatpush2.msra.mxu0 0.0
        %2665 = vmatprep.subr.mxu0 0.0
        %2666 = vmatpush2.msra.mxu0 0.0
        %2667 = vmatprep.mubr.f32.mxu0 0.0
        %2668 = vmatmul.mubr.f32.gmra.mxu0 %v2577
        %v2669 = vpop.f32.mrf.mxu0
        %v2670 = vadd.f32 %v2601, %v2669
        %v2671 = vpop.f32.mrf.mxu0
        %2672 = vdwg.mxu0
        %v2673 = vld [vmem:[%s4] sm:$0xff]
        %v2674 = vld [vmem:[%s13] sm:$0xff]
        %v2675 = vld [vmem:[%s13 + $0x8] sm:$0xff]
        %v2676 = vld [vmem:[%s13 + $0x10] sm:$0xff]
        %v2677 = vld [vmem:[%s13 + $0x18] sm:$0xff]
        %v2678 = vld [vmem:[%s13 + $0x20] sm:$0xff]
        %v2679 = vld [vmem:[%s13 + $0x28] sm:$0xff]
        %v2680 = vld [vmem:[%s13 + $0x30] sm:$0xff]
        %v2681 = vld [vmem:[%s13 + $0x38] sm:$0xff]
        %v2682 = vld [vmem:[%s13 + $0x40] sm:$0xff]
        %v2683 = vld [vmem:[%s13 + $0x48] sm:$0xff]
        %v2684 = vld [vmem:[%s13 + $0x50] sm:$0xff]
        %v2685 = vld [vmem:[%s13 + $0x58] sm:$0xff]
        %v2686 = vld [vmem:[%s13 + $0x60] sm:$0xff]
        %v2687 = vld [vmem:[%s13 + $0x68] sm:$0xff]
        %v2688 = vld [vmem:[%s13 + $0x70] sm:$0xff]
        %v2689 = vld [vmem:[%s13 + $0x78] sm:$0xff]
        %v2690 = vld [vmem:[%s13 + $0x80] sm:$0xff]
        %v2691 = vld [vmem:[%s13 + $0x88] sm:$0xff]
        %v2692 = vld [vmem:[%s13 + $0x90] sm:$0xff]
        %v2693 = vld [vmem:[%s13 + $0x98] sm:$0xff]
        %v2694 = vld [vmem:[%s13 + $0xa0] sm:$0xff]
        %v2695 = vld [vmem:[%s13 + $0xa8] sm:$0xff]
        %v2696 = vld [vmem:[%s13 + $0xb0] sm:$0xff]
        %v2697 = vld [vmem:[%s13 + $0xb8] sm:$0xff]
        %v2698 = vld [vmem:[%s13 + $0xc0] sm:$0xff]
        %v2699 = vld [vmem:[%s13 + $0xc8] sm:$0xff]
        %v2700 = vld [vmem:[%s13 + $0xd0] sm:$0xff]
        %v2701 = vld [vmem:[%s13 + $0xd8] sm:$0xff]
        %v2702 = vld [vmem:[%s13 + $0xe0] sm:$0xff]
        %v2703 = vld [vmem:[%s13 + $0xe8] sm:$0xff]
        %v2704 = vld [vmem:[%s13 + $0xf0] sm:$0xff]
        %v2705 = vld [vmem:[%s13 + $0xf8] sm:$0xff]
        %v2706 = vld [vmem:[%s13 + $0x100] sm:$0xff]
        %v2707 = vld [vmem:[%s13 + $0x108] sm:$0xff]
        %v2708 = vld [vmem:[%s13 + $0x110] sm:$0xff]
        %v2709 = vld [vmem:[%s13 + $0x118] sm:$0xff]
        %v2710 = vld [vmem:[%s13 + $0x120] sm:$0xff]
        %v2711 = vld [vmem:[%s13 + $0x128] sm:$0xff]
        %v2712 = vld [vmem:[%s13 + $0x130] sm:$0xff]
        %v2713 = vld [vmem:[%s13 + $0x138] sm:$0xff]
        %v2714 = vld [vmem:[%s13 + $0x140] sm:$0xff]
        %v2715 = vld [vmem:[%s13 + $0x148] sm:$0xff]
        %v2716 = vld [vmem:[%s13 + $0x150] sm:$0xff]
        %v2717 = vld [vmem:[%s13 + $0x158] sm:$0xff]
        %v2718 = vld [vmem:[%s13 + $0x160] sm:$0xff]
        %v2719 = vld [vmem:[%s13 + $0x168] sm:$0xff]
        %v2720 = vld [vmem:[%s13 + $0x170] sm:$0xff]
        %v2721 = vld [vmem:[%s13 + $0x178] sm:$0xff]
        %v2722 = vld [vmem:[%s13 + $0x180] sm:$0xff]
        %v2723 = vld [vmem:[%s13 + $0x188] sm:$0xff]
        %v2724 = vld [vmem:[%s13 + $0x190] sm:$0xff]
        %v2725 = vld [vmem:[%s13 + $0x198] sm:$0xff]
        %v2726 = vld [vmem:[%s13 + $0x1a0] sm:$0xff]
        %v2727 = vld [vmem:[%s13 + $0x1a8] sm:$0xff]
        %v2728 = vld [vmem:[%s13 + $0x1b0] sm:$0xff]
        %v2729 = vld [vmem:[%s13 + $0x1b8] sm:$0xff]
        %v2730 = vld [vmem:[%s13 + $0x1c0] sm:$0xff]
        %v2731 = vld [vmem:[%s13 + $0x1c8] sm:$0xff]
        %v2732 = vld [vmem:[%s13 + $0x1d0] sm:$0xff]
        %v2733 = vld [vmem:[%s13 + $0x1d8] sm:$0xff]
        %v2734 = vld [vmem:[%s13 + $0x1e0] sm:$0xff]
        %v2735 = vld [vmem:[%s13 + $0x1e8] sm:$0xff]
        %v2736 = vld [vmem:[%s13 + $0x1f0] sm:$0xff]
        %v2737 = vld [vmem:[%s13 + $0x1f8] sm:$0xff]
        %v2738 = vld [vmem:[%s14] sm:$0xf]
        %v2740 = vlaneseq
        %v2741 = vshrl.u32 %v2740, 7
        %v2742 = vsub.s32 0, %v2741
        %v2743 = vrot.slane %v2738, %v2742
        %v2744 = vlaneseq
        %v2745 = vshrl.u32 %v2744, 7
        %v2746 = vsub.s32 1, %v2745
        %v2747 = vrot.slane %v2738, %v2746
        %v2748 = vlaneseq
        %v2749 = vshrl.u32 %v2748, 7
        %v2750 = vsub.s32 2, %v2749
        %v2751 = vrot.slane %v2738, %v2750
        %v2752 = vlaneseq
        %v2753 = vshrl.u32 %v2752, 7
        %v2754 = vsub.s32 3, %v2753
        %v2755 = vrot.slane %v2738, %v2754
        %2760 = vmatprep.subr.mxu0 %v2735
        %2761 = vmatpush1.msra.mxu0 %v2734
        %2762 = vmatprep.subr.mxu0 %v2731
        %2763 = vmatpush1.msra.mxu0 %v2730
        %2764 = vmatprep.subr.mxu0 %v2727
        %2765 = vmatpush1.msra.mxu0 %v2726
        %2766 = vmatprep.subr.mxu0 %v2723
        %2767 = vmatpush1.msra.mxu0 %v2722
        %2768 = vmatprep.subr.mxu0 %v2719
        %2769 = vmatpush1.msra.mxu0 %v2718
        %2770 = vmatprep.subr.mxu0 %v2715
        %2771 = vmatpush1.msra.mxu0 %v2714
        %2772 = vmatprep.subr.mxu0 %v2711
        %2773 = vmatpush1.msra.mxu0 %v2710
        %2774 = vmatprep.subr.mxu0 %v2707
        %2775 = vmatpush1.msra.mxu0 %v2706
        %2776 = vmatprep.subr.mxu0 %v2703
        %2777 = vmatpush1.msra.mxu0 %v2702
        %2778 = vmatprep.subr.mxu0 %v2699
        %2779 = vmatpush1.msra.mxu0 %v2698
        %2780 = vmatprep.subr.mxu0 %v2695
        %2781 = vmatpush1.msra.mxu0 %v2694
        %2782 = vmatprep.subr.mxu0 %v2691
        %2783 = vmatpush1.msra.mxu0 %v2690
        %2784 = vmatprep.subr.mxu0 %v2687
        %2785 = vmatpush1.msra.mxu0 %v2686
        %2786 = vmatprep.subr.mxu0 %v2683
        %2787 = vmatpush1.msra.mxu0 %v2682
        %2788 = vmatprep.subr.mxu0 %v2679
        %2789 = vmatpush1.msra.mxu0 %v2678
        %2790 = vmatprep.subr.mxu0 %v2675
        %2791 = vmatpush1.msra.mxu0 %v2674
        %2792 = vmatprep.subr.mxu0 0.0
        %2793 = vmatpush2.msra.mxu0 0.0
        %2794 = vmatprep.subr.mxu0 0.0
        %2795 = vmatpush2.msra.mxu0 0.0
        %2796 = vmatprep.subr.mxu0 0.0
        %2797 = vmatpush2.msra.mxu0 0.0
        %2798 = vmatprep.subr.mxu0 0.0
        %2799 = vmatpush2.msra.mxu0 0.0
        %2800 = vmatprep.subr.mxu0 0.0
        %2801 = vmatpush2.msra.mxu0 0.0
        %2802 = vmatprep.subr.mxu0 0.0
        %2803 = vmatpush2.msra.mxu0 0.0
        %2804 = vmatprep.subr.mxu0 0.0
        %2805 = vmatpush2.msra.mxu0 0.0
        %2806 = vmatprep.subr.mxu0 0.0
        %2807 = vmatpush2.msra.mxu0 0.0
        %2808 = vmatprep.subr.mxu0 0.0
        %2809 = vmatpush2.msra.mxu0 0.0
        %2810 = vmatprep.subr.mxu0 0.0
        %2811 = vmatpush2.msra.mxu0 0.0
        %2812 = vmatprep.subr.mxu0 0.0
        %2813 = vmatpush2.msra.mxu0 0.0
        %2814 = vmatprep.subr.mxu0 0.0
        %2815 = vmatpush2.msra.mxu0 0.0
        %2816 = vmatprep.subr.mxu0 0.0
        %2817 = vmatpush2.msra.mxu0 0.0
        %2818 = vmatprep.subr.mxu0 0.0
        %2819 = vmatpush2.msra.mxu0 0.0
        %2820 = vmatprep.subr.mxu0 0.0
        %2821 = vmatpush2.msra.mxu0 0.0
        %2822 = vmatprep.subr.mxu0 0.0
        %2823 = vmatpush2.msra.mxu0 0.0
        %2824 = vmatprep.mubr.f32.mxu0 0.0
        %2825 = vmatmul.mubr.f32.gmra.mxu0 %v2673
        %v2826 = vpop.f32.mrf.mxu0
        %v2827 = vadd.f32 %v2743, %v2826
        %v2828 = vpop.f32.mrf.mxu0
        %v2829 = vadd.f32 %v2747, %v2828
        %2830 = vdwg.mxu0
        %2831 = vmatprep.subr.mxu0 %v2737
        %2832 = vmatpush1.msra.mxu0 %v2736
        %2833 = vmatprep.subr.mxu0 %v2733
        %2834 = vmatpush1.msra.mxu0 %v2732
        %2835 = vmatprep.subr.mxu0 %v2729
        %2836 = vmatpush1.msra.mxu0 %v2728
        %2837 = vmatprep.subr.mxu0 %v2725
        %2838 = vmatpush1.msra.mxu0 %v2724
        %2839 = vmatprep.subr.mxu0 %v2721
        %2840 = vmatpush1.msra.mxu0 %v2720
        %2841 = vmatprep.subr.mxu0 %v2717
        %2842 = vmatpush1.msra.mxu0 %v2716
        %2843 = vmatprep.subr.mxu0 %v2713
        %2844 = vmatpush1.msra.mxu0 %v2712
        %2845 = vmatprep.subr.mxu0 %v2709
        %2846 = vmatpush1.msra.mxu0 %v2708
        %2847 = vmatprep.subr.mxu0 %v2705
        %2848 = vmatpush1.msra.mxu0 %v2704
        %2849 = vmatprep.subr.mxu0 %v2701
        %2850 = vmatpush1.msra.mxu0 %v2700
        %2851 = vmatprep.subr.mxu0 %v2697
        %2852 = vmatpush1.msra.mxu0 %v2696
        %2853 = vmatprep.subr.mxu0 %v2693
        %2854 = vmatpush1.msra.mxu0 %v2692
        %2855 = vmatprep.subr.mxu0 %v2689
        %2856 = vmatpush1.msra.mxu0 %v2688
        %2857 = vmatprep.subr.mxu0 %v2685
        %2858 = vmatpush1.msra.mxu0 %v2684
        %2859 = vmatprep.subr.mxu0 %v2681
        %2860 = vmatpush1.msra.mxu0 %v2680
        %2861 = vmatprep.subr.mxu0 %v2677
        %2862 = vmatpush1.msra.mxu0 %v2676
        %2863 = vmatprep.subr.mxu0 0.0
        %2864 = vmatpush2.msra.mxu0 0.0
        %2865 = vmatprep.subr.mxu0 0.0
        %2866 = vmatpush2.msra.mxu0 0.0
        %2867 = vmatprep.subr.mxu0 0.0
        %2868 = vmatpush2.msra.mxu0 0.0
        %2869 = vmatprep.subr.mxu0 0.0
        %2870 = vmatpush2.msra.mxu0 0.0
        %2871 = vmatprep.subr.mxu0 0.0
        %2872 = vmatpush2.msra.mxu0 0.0
        %2873 = vmatprep.subr.mxu0 0.0
        %2874 = vmatpush2.msra.mxu0 0.0
        %2875 = vmatprep.subr.mxu0 0.0
        %2876 = vmatpush2.msra.mxu0 0.0
        %2877 = vmatprep.subr.mxu0 0.0
        %2878 = vmatpush2.msra.mxu0 0.0
        %2879 = vmatprep.subr.mxu0 0.0
        %2880 = vmatpush2.msra.mxu0 0.0
        %2881 = vmatprep.subr.mxu0 0.0
        %2882 = vmatpush2.msra.mxu0 0.0
        %2883 = vmatprep.subr.mxu0 0.0
        %2884 = vmatpush2.msra.mxu0 0.0
        %2885 = vmatprep.subr.mxu0 0.0
        %2886 = vmatpush2.msra.mxu0 0.0
        %2887 = vmatprep.subr.mxu0 0.0
        %2888 = vmatpush2.msra.mxu0 0.0
        %2889 = vmatprep.subr.mxu0 0.0
        %2890 = vmatpush2.msra.mxu0 0.0
        %2891 = vmatprep.subr.mxu0 0.0
        %2892 = vmatpush2.msra.mxu0 0.0
        %2893 = vmatprep.subr.mxu0 0.0
        %2894 = vmatpush2.msra.mxu0 0.0
        %2895 = vmatprep.mubr.f32.mxu0 0.0
        %2896 = vmatmul.mubr.f32.gmra.mxu0 %v2673
        %v2897 = vpop.f32.mrf.mxu0
        %v2898 = vadd.f32 %v2751, %v2897
        %v2899 = vpop.f32.mrf.mxu0
        %v2900 = vadd.f32 %v2755, %v2899
        %2901 = vdwg.mxu0
        %v2902 = vld [vmem:[%s15] sm:$0xff]
        %v2903 = vld [vmem:[%s15 + $0x8] sm:$0xff]
        %v2904 = vld [vmem:[%s15 + $0x10] sm:$0xff]
        %v2905 = vld [vmem:[%s15 + $0x18] sm:$0xff]
        %v2906 = vld [vmem:[%s15 + $0x20] sm:$0xff]
        %v2907 = vld [vmem:[%s15 + $0x28] sm:$0xff]
        %v2908 = vld [vmem:[%s15 + $0x30] sm:$0xff]
        %v2909 = vld [vmem:[%s15 + $0x38] sm:$0xff]
        %v2910 = vld [vmem:[%s15 + $0x40] sm:$0xff]
        %v2911 = vld [vmem:[%s15 + $0x48] sm:$0xff]
        %v2912 = vld [vmem:[%s15 + $0x50] sm:$0xff]
        %v2913 = vld [vmem:[%s15 + $0x58] sm:$0xff]
        %v2914 = vld [vmem:[%s15 + $0x60] sm:$0xff]
        %v2915 = vld [vmem:[%s15 + $0x68] sm:$0xff]
        %v2916 = vld [vmem:[%s15 + $0x70] sm:$0xff]
        %v2917 = vld [vmem:[%s15 + $0x78] sm:$0xff]
        %v2918 = vld [vmem:[%s16] sm:$0xff]
        %v2919 = vld [vmem:[%s16 + $0x8] sm:$0xff]
        %v2920 = vld [vmem:[%s16 + $0x10] sm:$0xff]
        %v2921 = vld [vmem:[%s16 + $0x18] sm:$0xff]
        %v2922 = vld [vmem:[%s16 + $0x20] sm:$0xff]
        %v2923 = vld [vmem:[%s16 + $0x28] sm:$0xff]
        %v2924 = vld [vmem:[%s16 + $0x30] sm:$0xff]
        %v2925 = vld [vmem:[%s16 + $0x38] sm:$0xff]
        %v2926 = vld [vmem:[%s16 + $0x40] sm:$0xff]
        %v2927 = vld [vmem:[%s16 + $0x48] sm:$0xff]
        %v2928 = vld [vmem:[%s16 + $0x50] sm:$0xff]
        %v2929 = vld [vmem:[%s16 + $0x58] sm:$0xff]
        %v2930 = vld [vmem:[%s16 + $0x60] sm:$0xff]
        %v2931 = vld [vmem:[%s16 + $0x68] sm:$0xff]
        %v2932 = vld [vmem:[%s16 + $0x70] sm:$0xff]
        %v2933 = vld [vmem:[%s16 + $0x78] sm:$0xff]
        %2934 = vmatprep.subr.mxu0 0.0
        %2935 = vmatpush1.msra.mxu0 %v2933
        %2936 = vmatprep.subr.mxu0 0.0
        %2937 = vmatpush1.msra.mxu0 %v2932
        %2938 = vmatprep.subr.mxu0 0.0
        %2939 = vmatpush1.msra.mxu0 %v2931
        %2940 = vmatprep.subr.mxu0 0.0
        %2941 = vmatpush1.msra.mxu0 %v2930
        %2942 = vmatprep.subr.mxu0 0.0
        %2943 = vmatpush1.msra.mxu0 %v2929
        %2944 = vmatprep.subr.mxu0 0.0
        %2945 = vmatpush1.msra.mxu0 %v2928
        %2946 = vmatprep.subr.mxu0 0.0
        %2947 = vmatpush1.msra.mxu0 %v2927
        %2948 = vmatprep.subr.mxu0 0.0
        %2949 = vmatpush1.msra.mxu0 %v2926
        %2950 = vmatprep.subr.mxu0 0.0
        %2951 = vmatpush1.msra.mxu0 %v2925
        %2952 = vmatprep.subr.mxu0 0.0
        %2953 = vmatpush1.msra.mxu0 %v2924
        %2954 = vmatprep.subr.mxu0 0.0
        %2955 = vmatpush1.msra.mxu0 %v2923
        %2956 = vmatprep.subr.mxu0 0.0
        %2957 = vmatpush1.msra.mxu0 %v2922
        %2958 = vmatprep.subr.mxu0 0.0
        %2959 = vmatpush1.msra.mxu0 %v2921
        %2960 = vmatprep.subr.mxu0 0.0
        %2961 = vmatpush1.msra.mxu0 %v2920
        %2962 = vmatprep.subr.mxu0 0.0
        %2963 = vmatpush1.msra.mxu0 %v2919
        %2964 = vmatprep.subr.mxu0 0.0
        %2965 = vmatpush1.msra.mxu0 %v2918
        %2966 = vmatprep.subr.mxu0 0.0
        %2967 = vmatpush2.msra.mxu0 0.0
        %2968 = vmatprep.subr.mxu0 0.0
        %2969 = vmatpush2.msra.mxu0 0.0
        %2970 = vmatprep.subr.mxu0 0.0
        %2971 = vmatpush2.msra.mxu0 0.0
        %2972 = vmatprep.subr.mxu0 0.0
        %2973 = vmatpush2.msra.mxu0 0.0
        %2974 = vmatprep.subr.mxu0 0.0
        %2975 = vmatpush2.msra.mxu0 0.0
        %2976 = vmatprep.subr.mxu0 0.0
        %2977 = vmatpush2.msra.mxu0 0.0
        %2978 = vmatprep.subr.mxu0 0.0
        %2979 = vmatpush2.msra.mxu0 0.0
        %2980 = vmatprep.subr.mxu0 0.0
        %2981 = vmatpush2.msra.mxu0 0.0
        %2982 = vmatprep.subr.mxu0 0.0
        %2983 = vmatpush2.msra.mxu0 0.0
        %2984 = vmatprep.subr.mxu0 0.0
        %2985 = vmatpush2.msra.mxu0 0.0
        %2986 = vmatprep.subr.mxu0 0.0
        %2987 = vmatpush2.msra.mxu0 0.0
        %2988 = vmatprep.subr.mxu0 0.0
        %2989 = vmatpush2.msra.mxu0 0.0
        %2990 = vmatprep.subr.mxu0 0.0
        %2991 = vmatpush2.msra.mxu0 0.0
        %2992 = vmatprep.subr.mxu0 0.0
        %2993 = vmatpush2.msra.mxu0 0.0
        %2994 = vmatprep.subr.mxu0 0.0
        %2995 = vmatpush2.msra.mxu0 0.0
        %2996 = vmatprep.subr.mxu0 0.0
        %2997 = vmatpush2.msra.mxu0 0.0
        %2998 = vmatprep.mubr.f32.mxu0 0.0
        %2999 = vmatmul.mubr.f32.gmra.mxu0 %v2670
        %v3000 = vpop.f32.mrf.mxu0
        %v3001 = vadd.f32 0.0, %v3000
        %v3002 = vpop.f32.mrf.mxu0
        %3003 = vdwg.mxu0
        %3004 = vmatprep.subr.mxu0 0.0
        %3005 = vmatpush1.msra.mxu0 %v2917
        %3006 = vmatprep.subr.mxu0 0.0
        %3007 = vmatpush1.msra.mxu0 %v2916
        %3008 = vmatprep.subr.mxu0 0.0
        %3009 = vmatpush1.msra.mxu0 %v2915
        %3010 = vmatprep.subr.mxu0 0.0
        %3011 = vmatpush1.msra.mxu0 %v2914
        %3012 = vmatprep.subr.mxu0 0.0
        %3013 = vmatpush1.msra.mxu0 %v2913
        %3014 = vmatprep.subr.mxu0 0.0
        %3015 = vmatpush1.msra.mxu0 %v2912
        %3016 = vmatprep.subr.mxu0 0.0
        %3017 = vmatpush1.msra.mxu0 %v2911
        %3018 = vmatprep.subr.mxu0 0.0
        %3019 = vmatpush1.msra.mxu0 %v2910
        %3020 = vmatprep.subr.mxu0 0.0
        %3021 = vmatpush1.msra.mxu0 %v2909
        %3022 = vmatprep.subr.mxu0 0.0
        %3023 = vmatpush1.msra.mxu0 %v2908
        %3024 = vmatprep.subr.mxu0 0.0
        %3025 = vmatpush1.msra.mxu0 %v2907
        %3026 = vmatprep.subr.mxu0 0.0
        %3027 = vmatpush1.msra.mxu0 %v2906
        %3028 = vmatprep.subr.mxu0 0.0
        %3029 = vmatpush1.msra.mxu0 %v2905
        %3030 = vmatprep.subr.mxu0 0.0
        %3031 = vmatpush1.msra.mxu0 %v2904
        %3032 = vmatprep.subr.mxu0 0.0
        %3033 = vmatpush1.msra.mxu0 %v2903
        %3034 = vmatprep.subr.mxu0 0.0
        %3035 = vmatpush1.msra.mxu0 %v2902
        %3036 = vmatprep.subr.mxu0 0.0
        %3037 = vmatpush2.msra.mxu0 0.0
        %3038 = vmatprep.subr.mxu0 0.0
        %3039 = vmatpush2.msra.mxu0 0.0
        %3040 = vmatprep.subr.mxu0 0.0
        %3041 = vmatpush2.msra.mxu0 0.0
        %3042 = vmatprep.subr.mxu0 0.0
        %3043 = vmatpush2.msra.mxu0 0.0
        %3044 = vmatprep.subr.mxu0 0.0
        %3045 = vmatpush2.msra.mxu0 0.0
        %3046 = vmatprep.subr.mxu0 0.0
        %3047 = vmatpush2.msra.mxu0 0.0
        %3048 = vmatprep.subr.mxu0 0.0
        %3049 = vmatpush2.msra.mxu0 0.0
        %3050 = vmatprep.subr.mxu0 0.0
        %3051 = vmatpush2.msra.mxu0 0.0
        %3052 = vmatprep.subr.mxu0 0.0
        %3053 = vmatpush2.msra.mxu0 0.0
        %3054 = vmatprep.subr.mxu0 0.0
        %3055 = vmatpush2.msra.mxu0 0.0
        %3056 = vmatprep.subr.mxu0 0.0
        %3057 = vmatpush2.msra.mxu0 0.0
        %3058 = vmatprep.subr.mxu0 0.0
        %3059 = vmatpush2.msra.mxu0 0.0
        %3060 = vmatprep.subr.mxu0 0.0
        %3061 = vmatpush2.msra.mxu0 0.0
        %3062 = vmatprep.subr.mxu0 0.0
        %3063 = vmatpush2.msra.mxu0 0.0
        %3064 = vmatprep.subr.mxu0 0.0
        %3065 = vmatpush2.msra.mxu0 0.0
        %3066 = vmatprep.subr.mxu0 0.0
        %3067 = vmatpush2.msra.mxu0 0.0
        %3068 = vmatprep.mubr.f32.mxu0 0.0
        %3069 = vmatmul.mubr.f32.gmra.mxu0 %v2484
        %v3070 = vpop.f32.mrf.mxu0
        %v3071 = vadd.f32 %v3001, %v3070
        %v3072 = vpop.f32.mrf.mxu0
        %3073 = vdwg.mxu0
        %v3074 = vld [vmem:[%s17] sm:$0xff]
        %v3075 = vld [vmem:[%s17 + $0x8] sm:$0xff]
        %v3076 = vld [vmem:[%s17 + $0x10] sm:$0xff]
        %v3077 = vld [vmem:[%s17 + $0x18] sm:$0xff]
        %v3078 = vld [vmem:[%s17 + $0x20] sm:$0xff]
        %v3079 = vld [vmem:[%s17 + $0x28] sm:$0xff]
        %v3080 = vld [vmem:[%s17 + $0x30] sm:$0xff]
        %v3081 = vld [vmem:[%s17 + $0x38] sm:$0xff]
        %v3082 = vld [vmem:[%s17 + $0x40] sm:$0xff]
        %v3083 = vld [vmem:[%s17 + $0x48] sm:$0xff]
        %v3084 = vld [vmem:[%s17 + $0x50] sm:$0xff]
        %v3085 = vld [vmem:[%s17 + $0x58] sm:$0xff]
        %v3086 = vld [vmem:[%s17 + $0x60] sm:$0xff]
        %v3087 = vld [vmem:[%s17 + $0x68] sm:$0xff]
        %v3088 = vld [vmem:[%s17 + $0x70] sm:$0xff]
        %v3089 = vld [vmem:[%s17 + $0x78] sm:$0xff]
        %v3090 = vld [vmem:[%s17 + $0x80] sm:$0xff]
        %v3091 = vld [vmem:[%s17 + $0x88] sm:$0xff]
        %v3092 = vld [vmem:[%s17 + $0x90] sm:$0xff]
        %v3093 = vld [vmem:[%s17 + $0x98] sm:$0xff]
        %v3094 = vld [vmem:[%s17 + $0xa0] sm:$0xff]
        %v3095 = vld [vmem:[%s17 + $0xa8] sm:$0xff]
        %v3096 = vld [vmem:[%s17 + $0xb0] sm:$0xff]
        %v3097 = vld [vmem:[%s17 + $0xb8] sm:$0xff]
        %v3098 = vld [vmem:[%s17 + $0xc0] sm:$0xff]
        %v3099 = vld [vmem:[%s17 + $0xc8] sm:$0xff]
        %v3100 = vld [vmem:[%s17 + $0xd0] sm:$0xff]
        %v3101 = vld [vmem:[%s17 + $0xd8] sm:$0xff]
        %v3102 = vld [vmem:[%s17 + $0xe0] sm:$0xff]
        %v3103 = vld [vmem:[%s17 + $0xe8] sm:$0xff]
        %v3104 = vld [vmem:[%s17 + $0xf0] sm:$0xff]
        %v3105 = vld [vmem:[%s17 + $0xf8] sm:$0xff]
        %v3106 = vld [vmem:[%s17 + $0x100] sm:$0xff]
        %v3107 = vld [vmem:[%s17 + $0x108] sm:$0xff]
        %v3108 = vld [vmem:[%s17 + $0x110] sm:$0xff]
        %v3109 = vld [vmem:[%s17 + $0x118] sm:$0xff]
        %v3110 = vld [vmem:[%s17 + $0x120] sm:$0xff]
        %v3111 = vld [vmem:[%s17 + $0x128] sm:$0xff]
        %v3112 = vld [vmem:[%s17 + $0x130] sm:$0xff]
        %v3113 = vld [vmem:[%s17 + $0x138] sm:$0xff]
        %v3114 = vld [vmem:[%s17 + $0x140] sm:$0xff]
        %v3115 = vld [vmem:[%s17 + $0x148] sm:$0xff]
        %v3116 = vld [vmem:[%s17 + $0x150] sm:$0xff]
        %v3117 = vld [vmem:[%s17 + $0x158] sm:$0xff]
        %v3118 = vld [vmem:[%s17 + $0x160] sm:$0xff]
        %v3119 = vld [vmem:[%s17 + $0x168] sm:$0xff]
        %v3120 = vld [vmem:[%s17 + $0x170] sm:$0xff]
        %v3121 = vld [vmem:[%s17 + $0x178] sm:$0xff]
        %v3122 = vld [vmem:[%s17 + $0x180] sm:$0xff]
        %v3123 = vld [vmem:[%s17 + $0x188] sm:$0xff]
        %v3124 = vld [vmem:[%s17 + $0x190] sm:$0xff]
        %v3125 = vld [vmem:[%s17 + $0x198] sm:$0xff]
        %v3126 = vld [vmem:[%s17 + $0x1a0] sm:$0xff]
        %v3127 = vld [vmem:[%s17 + $0x1a8] sm:$0xff]
        %v3128 = vld [vmem:[%s17 + $0x1b0] sm:$0xff]
        %v3129 = vld [vmem:[%s17 + $0x1b8] sm:$0xff]
        %v3130 = vld [vmem:[%s17 + $0x1c0] sm:$0xff]
        %v3131 = vld [vmem:[%s17 + $0x1c8] sm:$0xff]
        %v3132 = vld [vmem:[%s17 + $0x1d0] sm:$0xff]
        %v3133 = vld [vmem:[%s17 + $0x1d8] sm:$0xff]
        %v3134 = vld [vmem:[%s17 + $0x1e0] sm:$0xff]
        %v3135 = vld [vmem:[%s17 + $0x1e8] sm:$0xff]
        %v3136 = vld [vmem:[%s17 + $0x1f0] sm:$0xff]
        %v3137 = vld [vmem:[%s17 + $0x1f8] sm:$0xff]
        %3138 = vmatprep.subr.mxu0 0.0
        %3139 = vmatpush1.msra.mxu0 %v3089
        %3140 = vmatprep.subr.mxu0 0.0
        %3141 = vmatpush1.msra.mxu0 %v3088
        %3142 = vmatprep.subr.mxu0 0.0
        %3143 = vmatpush1.msra.mxu0 %v3087
        %3144 = vmatprep.subr.mxu0 0.0
        %3145 = vmatpush1.msra.mxu0 %v3086
        %3146 = vmatprep.subr.mxu0 0.0
        %3147 = vmatpush1.msra.mxu0 %v3085
        %3148 = vmatprep.subr.mxu0 0.0
        %3149 = vmatpush1.msra.mxu0 %v3084
        %3150 = vmatprep.subr.mxu0 0.0
        %3151 = vmatpush1.msra.mxu0 %v3083
        %3152 = vmatprep.subr.mxu0 0.0
        %3153 = vmatpush1.msra.mxu0 %v3082
        %3154 = vmatprep.subr.mxu0 0.0
        %3155 = vmatpush1.msra.mxu0 %v3081
        %3156 = vmatprep.subr.mxu0 0.0
        %3157 = vmatpush1.msra.mxu0 %v3080
        %3158 = vmatprep.subr.mxu0 0.0
        %3159 = vmatpush1.msra.mxu0 %v3079
        %3160 = vmatprep.subr.mxu0 0.0
        %3161 = vmatpush1.msra.mxu0 %v3078
        %3162 = vmatprep.subr.mxu0 0.0
        %3163 = vmatpush1.msra.mxu0 %v3077
        %3164 = vmatprep.subr.mxu0 0.0
        %3165 = vmatpush1.msra.mxu0 %v3076
        %3166 = vmatprep.subr.mxu0 0.0
        %3167 = vmatpush1.msra.mxu0 %v3075
        %3168 = vmatprep.subr.mxu0 0.0
        %3169 = vmatpush1.msra.mxu0 %v3074
        %3170 = vmatprep.subr.mxu0 0.0
        %3171 = vmatpush2.msra.mxu0 %v3105
        %3172 = vmatprep.subr.mxu0 0.0
        %3173 = vmatpush2.msra.mxu0 %v3104
        %3174 = vmatprep.subr.mxu0 0.0
        %3175 = vmatpush2.msra.mxu0 %v3103
        %3176 = vmatprep.subr.mxu0 0.0
        %3177 = vmatpush2.msra.mxu0 %v3102
        %3178 = vmatprep.subr.mxu0 0.0
        %3179 = vmatpush2.msra.mxu0 %v3101
        %3180 = vmatprep.subr.mxu0 0.0
        %3181 = vmatpush2.msra.mxu0 %v3100
        %3182 = vmatprep.subr.mxu0 0.0
        %3183 = vmatpush2.msra.mxu0 %v3099
        %3184 = vmatprep.subr.mxu0 0.0
        %3185 = vmatpush2.msra.mxu0 %v3098
        %3186 = vmatprep.subr.mxu0 0.0
        %3187 = vmatpush2.msra.mxu0 %v3097
        %3188 = vmatprep.subr.mxu0 0.0
        %3189 = vmatpush2.msra.mxu0 %v3096
        %3190 = vmatprep.subr.mxu0 0.0
        %3191 = vmatpush2.msra.mxu0 %v3095
        %3192 = vmatprep.subr.mxu0 0.0
        %3193 = vmatpush2.msra.mxu0 %v3094
        %3194 = vmatprep.subr.mxu0 0.0
        %3195 = vmatpush2.msra.mxu0 %v3093
        %3196 = vmatprep.subr.mxu0 0.0
        %3197 = vmatpush2.msra.mxu0 %v3092
        %3198 = vmatprep.subr.mxu0 0.0
        %3199 = vmatpush2.msra.mxu0 %v3091
        %3200 = vmatprep.subr.mxu0 0.0
        %3201 = vmatpush2.msra.mxu0 %v3090
        %3202 = vmatprep.mubr.f32.mxu0 %v2829
        %3203 = vmatmul.mubr.f32.gmra.mxu0 %v2827
        %v3204 = vpop.f32.mrf.mxu0
        %v3205 = vadd.f32 0.0, %v3204
        %v3206 = vpop.f32.mrf.mxu0
        %3207 = vdwg.mxu0
        %3208 = vmatprep.subr.mxu0 0.0
        %3209 = vmatpush1.msra.mxu0 %v3121
        %3210 = vmatprep.subr.mxu0 0.0
        %3211 = vmatpush1.msra.mxu0 %v3120
        %3212 = vmatprep.subr.mxu0 0.0
        %3213 = vmatpush1.msra.mxu0 %v3119
        %3214 = vmatprep.subr.mxu0 0.0
        %3215 = vmatpush1.msra.mxu0 %v3118
        %3216 = vmatprep.subr.mxu0 0.0
        %3217 = vmatpush1.msra.mxu0 %v3117
        %3218 = vmatprep.subr.mxu0 0.0
        %3219 = vmatpush1.msra.mxu0 %v3116
        %3220 = vmatprep.subr.mxu0 0.0
        %3221 = vmatpush1.msra.mxu0 %v3115
        %3222 = vmatprep.subr.mxu0 0.0
        %3223 = vmatpush1.msra.mxu0 %v3114
        %3224 = vmatprep.subr.mxu0 0.0
        %3225 = vmatpush1.msra.mxu0 %v3113
        %3226 = vmatprep.subr.mxu0 0.0
        %3227 = vmatpush1.msra.mxu0 %v3112
        %3228 = vmatprep.subr.mxu0 0.0
        %3229 = vmatpush1.msra.mxu0 %v3111
        %3230 = vmatprep.subr.mxu0 0.0
        %3231 = vmatpush1.msra.mxu0 %v3110
        %3232 = vmatprep.subr.mxu0 0.0
        %3233 = vmatpush1.msra.mxu0 %v3109
        %3234 = vmatprep.subr.mxu0 0.0
        %3235 = vmatpush1.msra.mxu0 %v3108
        %3236 = vmatprep.subr.mxu0 0.0
        %3237 = vmatpush1.msra.mxu0 %v3107
        %3238 = vmatprep.subr.mxu0 0.0
        %3239 = vmatpush1.msra.mxu0 %v3106
        %3240 = vmatprep.subr.mxu0 0.0
        %3241 = vmatpush2.msra.mxu0 %v3137
        %3242 = vmatprep.subr.mxu0 0.0
        %3243 = vmatpush2.msra.mxu0 %v3136
        %3244 = vmatprep.subr.mxu0 0.0
        %3245 = vmatpush2.msra.mxu0 %v3135
        %3246 = vmatprep.subr.mxu0 0.0
        %3247 = vmatpush2.msra.mxu0 %v3134
        %3248 = vmatprep.subr.mxu0 0.0
        %3249 = vmatpush2.msra.mxu0 %v3133
        %3250 = vmatprep.subr.mxu0 0.0
        %3251 = vmatpush2.msra.mxu0 %v3132
        %3252 = vmatprep.subr.mxu0 0.0
        %3253 = vmatpush2.msra.mxu0 %v3131
        %3254 = vmatprep.subr.mxu0 0.0
        %3255 = vmatpush2.msra.mxu0 %v3130
        %3256 = vmatprep.subr.mxu0 0.0
        %3257 = vmatpush2.msra.mxu0 %v3129
        %3258 = vmatprep.subr.mxu0 0.0
        %3259 = vmatpush2.msra.mxu0 %v3128
        %3260 = vmatprep.subr.mxu0 0.0
        %3261 = vmatpush2.msra.mxu0 %v3127
        %3262 = vmatprep.subr.mxu0 0.0
        %3263 = vmatpush2.msra.mxu0 %v3126
        %3264 = vmatprep.subr.mxu0 0.0
        %3265 = vmatpush2.msra.mxu0 %v3125
        %3266 = vmatprep.subr.mxu0 0.0
        %3267 = vmatpush2.msra.mxu0 %v3124
        %3268 = vmatprep.subr.mxu0 0.0
        %3269 = vmatpush2.msra.mxu0 %v3123
        %3270 = vmatprep.subr.mxu0 0.0
        %3271 = vmatpush2.msra.mxu0 %v3122
        %3272 = vmatprep.mubr.f32.mxu0 %v2900
        %3273 = vmatmul.mubr.f32.gmra.mxu0 %v2898
        %v3274 = vpop.f32.mrf.mxu0
        %v3275 = vadd.f32 %v3205, %v3274
        %v3276 = vpop.f32.mrf.mxu0
        %3277 = vdwg.mxu0
        %v3278 = vadd.f32 %v3071, %v3275
        %v3279 = vld [vmem:[%s18] sm:$0x1]
        %v3281 = vlaneseq
        %v3282 = vshrl.u32 %v3281, 7
        %v3283 = vsub.s32 0, %v3282
        %v3284 = vrot.slane %v3279, %v3283
        %v3286 = vadd.f32 %v3278, %v3284
        %3287 = vst [vmem:[%s19] sm:$0xff] %v3286
      $region104: #{ian_features1_forward.1} parent=95 // pred_fallthru
        _
      // Predicated region
      $region105: #{ian_features1_forward.1} parent=95 // pred_check
        %p3288 = pneg %p462
      $region106: #{ian_features1_forward.1} parent=95 // pred_check_branch
        %3290 = sbr.rel (%p3288) target = $region108
      $region107: #{ian_features1_forward.1} parent=95 // pred_region
        _
      $region108: #{ian_features1_forward.1} parent=95 // pred_fallthru
        _
      // Predicated region
      $region109: #{ian_features1_forward.1} parent=95 // pred_check
        %p3291 = pneg %p462
      $region110: #{ian_features1_forward.1} parent=95 // pred_check_branch
        %3293 = sbr.rel (%p3291) target = $region112
      $region111: #{ian_features1_forward.1} parent=95 // pred_region
        _
      $region112: #{ian_features1_forward.1} parent=95 // pred_fallthru
        _
    $region96: #{ian_features1_forward.1} parent=5 // pred_fallthru
      _
    %p3294 = scmp.le.s32.totalorder 2, %s25
    // Predicated region
    $region113: #{ian_features1_forward.1} parent=5 // pred_check
      %p3295 = pneg %p3294
    $region114: #{ian_features1_forward.1} parent=5 // pred_check_branch
      %3297 = sbr.rel (%p3295) target = $region116
    $region115: #{ian_features1_forward.1} parent=5 // pred_region
      %s3298 = ssub.s32 %s25, 2
    $region116: #{ian_features1_forward.1} parent=5 // pred_fallthru
      _
  $region6: #{ian_features1_forward.1} parent=0 // loop_footer
    %s29 = sadd.s32 1, %s25
  $region7: #{ian_features1_forward.1} parent=0 // loop_footer_branch
    %24 = sbr.rel target = $region3
  $region8: #{ian_features1_forward.1} parent=0 // loop_exit
    _

</llo_original>
